<compile_context>
chip_gen: v5e
topology: v5e:2x2
jax: 0.10.0
libtpu: 0.0.40
codegen_flags: <defaults>
</compile_context>

<pallas_src>
import functools
import math

import jax
import jax.numpy as jnp
import numpy as np
from jax import lax
from jax.experimental import pallas as pl
from jax.experimental.pallas import tpu as pltpu


LN_EPS = 1e-5

# dot_general dimension numbers (identical patterns to the official TPU Pallas
# flash-attention kernels, so they are guaranteed to lower on Mosaic):
NT_DIMS = (((1,), (1,)), ((), ()))   # (M,K) x (N,K) -> (M,N)
TN_DIMS = (((0,), (0,)), ((), ()))   # (K,M) x (K,N) -> (M,N)


def _layernorm(z, g, b, eps):
    mu = jnp.mean(z, axis=-1, keepdims=True)
    var = jnp.mean((z - mu) ** 2, axis=-1, keepdims=True)
    return (z - mu) * lax.rsqrt(var + eps) * g + b


# ----------------------------------------------------------------------------
# Fused Pallas kernel: whole encoder (all layers) in a single invocation
# ----------------------------------------------------------------------------

def fused_encoder_kernel(x_ref, pe_ref,
                         wqkv_ref, bqkv_ref, wout_ref, bout_ref,
                         w1_ref, b1_ref, w2_ref, b2_ref,
                         g1_ref, bt1_ref, g2_ref, bt2_ref,
                         o_ref, *, num_heads, num_layers, batch, seq, eps):
    B, S, H = batch, seq, num_heads
    E = x_ref.shape[-1]
    Hd = E // H
    scale = 1.0 / math.sqrt(Hd)

    # --- Fourier positional encoding: broadcast (S,E) over batch in-register ---
    pe = pe_ref[...]                                    # (S, E)
    x = x_ref[...] + jnp.concatenate([pe] * B, axis=0)  # (B*S, E)

    for l in range(num_layers):                          # static, fully unrolled
        # ---------------- attention ----------------
        # QKV projection for the whole (B*S, E) activation at once.
        qkv = jnp.dot(x, wqkv_ref[l],
                      preferred_element_type=jnp.float32) + bqkv_ref[l]  # (B*S, 3E)

        # Per-(batch, head) attention, assembled directly in the module's quirky
        #   attn_output.permute(1,3,0,2).reshape(B, S, E)
        # layout: per batch the flattened order is (head_dim, head, seq), i.e. a
        # (Hd, H*S) matrix built by lane-concatenating per-head (Hd, S_q) outputs.
        mb_list = []
        for b in range(B):
            r0 = b * S
            heads_t = []
            for h in range(H):
                c0 = h * 3 * Hd
                qb = qkv[r0:r0 + S, c0:c0 + Hd]                 # (S, Hd)
                kb = qkv[r0:r0 + S, c0 + Hd:c0 + 2 * Hd]        # (S, Hd)
                vb = qkv[r0:r0 + S, c0 + 2 * Hd:c0 + 3 * Hd]    # (S, Hd)

                # scores^T : (S_kv, S_q) = K Q^T  (NT matmul)
                st = lax.dot_general(kb, qb, NT_DIMS,
                                     preferred_element_type=jnp.float32) * scale
                # softmax over the KV axis (axis 0 of scores^T)
                st = st - jnp.max(st, axis=0, keepdims=True)
                et = jnp.exp(st)
                wt = et * pl.reciprocal(jnp.sum(et, axis=0, keepdims=True))
                # attn_output^T for this head: (Hd, S_q) = V^T W^T (TN matmul)
                heads_t.append(
                    lax.dot_general(vb, wt, TN_DIMS,
                                    preferred_element_type=jnp.float32))
            cb = jnp.concatenate(heads_t, axis=1)   # (Hd, H*S), order (d, h, s)
            mb_list.append(cb.reshape(S, E))        # == permute(1,3,0,2).reshape
        merged = jnp.concatenate(mb_list, axis=0)   # (B*S, E)

        # out_proj + residual + LayerNorm (norm1)
        y = jnp.dot(merged, wout_ref[l],
                    preferred_element_type=jnp.float32) + bout_ref[l]
        x = _layernorm(x + y, g1_ref[l], bt1_ref[l], eps)

        # ---------------- feedforward ----------------
        hdn = jnp.dot(x, w1_ref[l],
                      preferred_element_type=jnp.float32) + b1_ref[l]
        hdn = jnp.maximum(hdn, 0.0)
        ff = jnp.dot(hdn, w2_ref[l],
                     preferred_element_type=jnp.float32) + b2_ref[l]
        x = _layernorm(x + ff, g2_ref[l], bt2_ref[l], eps)

    o_ref[...] = x


# ----------------------------------------------------------------------------
# Wrapper
# ----------------------------------------------------------------------------

def fourier_pe(seq_len, embed_dim):
    freqs = jnp.power(
        10000.0, -jnp.arange(0, embed_dim, 2, dtype=jnp.float32) / embed_dim)
    pos = jnp.arange(seq_len, dtype=jnp.float32)[:, None]
    sinusoid = pos * freqs[None, :]
    return jnp.concatenate([jnp.sin(sinusoid), jnp.cos(sinusoid)], axis=-1)  # (S,E)


def transformer_forward(x, params, num_heads):
    B, S, E = x.shape
    L = params["w_qkv"].shape[0]
    pe = fourier_pe(S, E)

    kern = functools.partial(
        fused_encoder_kernel,
        num_heads=num_heads, num_layers=L, batch=B, seq=S, eps=LN_EPS)

    args = (
        x.reshape(B * S, E), pe,
        params["w_qkv"], params["b_qkv"], params["w_out"], params["b_out"],
        params["w1"], params["b1"], params["w2"], params["b2"],
        params["g1"], params["bt1"], params["g2"], params["bt2"],
    )
    vmem_spec = pl.BlockSpec(memory_space=pltpu.MemorySpace.VMEM)
    out2d = pl.pallas_call(
        kern,
        out_shape=jax.ShapeDtypeStruct((B * S, E), jnp.float32),
        in_specs=[vmem_spec] * len(args),
        out_specs=vmem_spec,
    )(*args)
    return out2d.reshape(B, S, E)


# ----------------------------------------------------------------------------
# Pure-JAX reference (mirrors the PyTorch forward exactly)
# ----------------------------------------------------------------------------

def _layernorm_ref(z, g, b):
    mu = jnp.mean(z, axis=-1, keepdims=True)
    var = jnp.mean((z - mu) ** 2, axis=-1, keepdims=True)
    return (z - mu) / jnp.sqrt(var + LN_EPS) * g + b


def reference_forward(x, p, num_heads):
    B, S, E = x.shape
    Hd = E // num_heads
    L = p["w_qkv"].shape[0]
    x = x + fourier_pe(S, E)[None]
    for l in range(L):
        qkv = x @ p["w_qkv"][l] + p["b_qkv"][l]
        qkv = jnp.transpose(qkv.reshape(B, S, num_heads, 3 * Hd), (2, 0, 3, 1))
        q, k, v = jnp.split(qkv, 3, axis=2)
        s = jnp.einsum("hbdi,hbdj->hbij", q, k) / math.sqrt(Hd)
        w = jax.nn.softmax(s, axis=-1)
        a = jnp.einsum("hbij,hbdj->hbid", w, v)                      # (H,B,S,Hd)
        a = jnp.transpose(a, (1, 3, 0, 2)).reshape(B, S, E)
        attn_out = a @ p["w_out"][l] + p["b_out"][l]
        x = _layernorm_ref(x + attn_out, p["g1"][l], p["bt1"][l])
        h = jax.nn.relu(x @ p["w1"][l] + p["b1"][l])
        ff = h @ p["w2"][l] + p["b2"][l]
        x = _layernorm_ref(x + ff, p["g2"][l], p["bt2"][l])
    return x


# ----------------------------------------------------------------------------
# Deterministic parameter init (stacked over layers)
# ----------------------------------------------------------------------------

def init_params(key, embed_dim, forward_expansion, num_layers):
    E = embed_dim
    FE = forward_expansion * embed_dim
    L = num_layers
    ks = jax.random.split(key, 12)

    def rnd(k, shape, scale=0.05):
        return scale * jax.random.normal(k, shape, jnp.float32)

    return dict(
        w_qkv=rnd(ks[0], (L, E, 3 * E)),
        b_qkv=rnd(ks[1], (L, 1, 3 * E)),
        w_out=rnd(ks[2], (L, E, E)),
        b_out=rnd(ks[3], (L, 1, E)),
        w1=rnd(ks[4], (L, E, FE)),
        b1=rnd(ks[5], (L, 1, FE)),
        w2=rnd(ks[6], (L, FE, E)),
        b2=rnd(ks[7], (L, 1, E)),
        g1=1.0 + rnd(ks[8], (L, 1, E), 0.01),
        bt1=rnd(ks[9], (L, 1, E), 0.01),
        g2=1.0 + rnd(ks[10], (L, 1, E), 0.01),
        bt2=rnd(ks[11], (L, 1, E), 0.01),
    )


# ----------------------------------------------------------------------------
# Main
# ----------------------------------------------------------------------------

if __name__ == "__main__":
    EMBED_DIM = 32
    NUM_HEADS = 4
    FORWARD_EXPANSION = 4
    NUM_LAYERS = 2
    B, S = 2, 8

    key = jax.random.PRNGKey(0)
    k_x, k_p = jax.random.split(key)
    x = jax.random.normal(k_x, (B, S, EMBED_DIM), jnp.float32)
    params = init_params(k_p, EMBED_DIM, FORWARD_EXPANSION, NUM_LAYERS)

    fwd = jax.jit(lambda xx, pp: transformer_forward(xx, pp, NUM_HEADS))
    out = jax.block_until_ready(fwd(x, params))

    ref = reference_forward(x, params, NUM_HEADS)
    np.testing.assert_allclose(np.asarray(out), np.asarray(ref), rtol=1e-4, atol=1e-4)

    print("KERNEL_OK")
</pallas_src>

<mosaic_0001>
module attributes {stable_mosaic.version = 11 : i64} {
  func.func @fused_encoder_kernel(%arg0: memref<16x32xf32, #tpu.memory_space<vmem>>, %arg1: memref<8x32xf32, #tpu.memory_space<vmem>>, %arg2: memref<2x32x96xf32, #tpu.memory_space<vmem>>, %arg3: memref<2x1x96xf32, #tpu.memory_space<vmem>>, %arg4: memref<2x32x32xf32, #tpu.memory_space<vmem>>, %arg5: memref<2x1x32xf32, #tpu.memory_space<vmem>>, %arg6: memref<2x32x128xf32, #tpu.memory_space<vmem>>, %arg7: memref<2x1x128xf32, #tpu.memory_space<vmem>>, %arg8: memref<2x128x32xf32, #tpu.memory_space<vmem>>, %arg9: memref<2x1x32xf32, #tpu.memory_space<vmem>>, %arg10: memref<2x1x32xf32, #tpu.memory_space<vmem>>, %arg11: memref<2x1x32xf32, #tpu.memory_space<vmem>>, %arg12: memref<2x1x32xf32, #tpu.memory_space<vmem>>, %arg13: memref<2x1x32xf32, #tpu.memory_space<vmem>>, %arg14: memref<16x32xf32, #tpu.memory_space<vmem>>) attributes {dimension_semantics = [], scalar_prefetch = 0 : i64, scratch_operands = 0 : i64, tpu.core_type = #tpu.core_type<tc>} {
    %c0 = arith.constant 0 : index
    %c0_0 = arith.constant 0 : index
    %0 = vector.load %arg1[%c0, %c0_0] : memref<8x32xf32, #tpu.memory_space<vmem>>, vector<8x32xf32>
    %c0_1 = arith.constant 0 : index
    %c0_2 = arith.constant 0 : index
    %1 = vector.load %arg0[%c0_1, %c0_2] : memref<16x32xf32, #tpu.memory_space<vmem>>, vector<16x32xf32>
    %2 = tpu.concatenate %0, %0 in 0 : vector<8x32xf32>, vector<8x32xf32> -> vector<16x32xf32>
    %3 = arith.addf %1, %2 : vector<16x32xf32>
    %c0_3 = arith.constant 0 : index
    %c0_4 = arith.constant 0 : index
    %c0_5 = arith.constant 0 : index
    %4 = vector.load %arg2[%c0_3, %c0_4, %c0_5] : memref<2x32x96xf32, #tpu.memory_space<vmem>>, vector<1x32x96xf32>
    %5 = vector.shape_cast %4 : vector<1x32x96xf32> to vector<32x96xf32>
    %cst = arith.constant dense<0.000000e+00> : vector<16x96xf32>
    %6 = tpu.matmul %3, %5, %cst {dimension_numbers = #tpu.dot_dimension_numbers<[1], [0], [0], [1], [0, 0, 1, 1], [], []>} : vector<16x32xf32>, vector<32x96xf32>, vector<16x96xf32> -> vector<16x96xf32>
    %c0_6 = arith.constant 0 : index
    %c0_7 = arith.constant 0 : index
    %c0_8 = arith.constant 0 : index
    %7 = vector.load %arg3[%c0_6, %c0_7, %c0_8] : memref<2x1x96xf32, #tpu.memory_space<vmem>>, vector<1x1x96xf32>
    %8 = vector.shape_cast %7 : vector<1x1x96xf32> to vector<1x96xf32>
    %9 = vector.broadcast %8 : vector<1x96xf32> to vector<16x96xf32>
    %10 = arith.addf %6, %9 : vector<16x96xf32>
    %11 = vector.extract_strided_slice %10 {offsets = [0, 0], sizes = [8, 8], strides = [1, 1]} : vector<16x96xf32> to vector<8x8xf32>
    %12 = vector.extract_strided_slice %10 {offsets = [0, 8], sizes = [8, 8], strides = [1, 1]} : vector<16x96xf32> to vector<8x8xf32>
    %13 = vector.extract_strided_slice %10 {offsets = [0, 16], sizes = [8, 8], strides = [1, 1]} : vector<16x96xf32> to vector<8x8xf32>
    %cst_9 = arith.constant dense<0.000000e+00> : vector<8x8xf32>
    %14 = tpu.matmul %12, %11, %cst_9 {dimension_numbers = #tpu.dot_dimension_numbers<[1], [1], [0], [0], [0, 0, 1, 0], [], []>} : vector<8x8xf32>, vector<8x8xf32>, vector<8x8xf32> -> vector<8x8xf32>
    %cst_10 = arith.constant 0.353553385 : f32
    %15 = vector.broadcast %cst_10 : f32 to vector<8x8xf32>
    %16 = arith.mulf %14, %15 : vector<8x8xf32>
    %cst_11 = arith.constant dense<0xFF800000> : vector<8xf32>
    %17 = vector.multi_reduction <maximumf>, %16, %cst_11 [0] : vector<8x8xf32> to vector<8xf32>
    %18 = vector.shape_cast %17 : vector<8xf32> to vector<1x8xf32>
    %19 = vector.broadcast %18 : vector<1x8xf32> to vector<8x8xf32>
    %20 = arith.subf %16, %19 : vector<8x8xf32>
    %21 = math.exp %20 : vector<8x8xf32>
    %cst_12 = arith.constant dense<0.000000e+00> : vector<8xf32>
    %22 = vector.multi_reduction <add>, %21, %cst_12 [0] : vector<8x8xf32> to vector<8xf32>
    %23 = vector.shape_cast %22 : vector<8xf32> to vector<1x8xf32>
    %24 = tpu.reciprocal %23 : vector<1x8xf32> -> vector<1x8xf32>
    %25 = vector.broadcast %24 : vector<1x8xf32> to vector<8x8xf32>
    %26 = arith.mulf %21, %25 : vector<8x8xf32>
    %cst_13 = arith.constant dense<0.000000e+00> : vector<8x8xf32>
    %27 = tpu.matmul %13, %26, %cst_13 {dimension_numbers = #tpu.dot_dimension_numbers<[0], [0], [1], [1], [0, 1, 1, 1], [], []>} : vector<8x8xf32>, vector<8x8xf32>, vector<8x8xf32> -> vector<8x8xf32>
    %28 = vector.extract_strided_slice %10 {offsets = [0, 24], sizes = [8, 8], strides = [1, 1]} : vector<16x96xf32> to vector<8x8xf32>
    %29 = vector.extract_strided_slice %10 {offsets = [0, 32], sizes = [8, 8], strides = [1, 1]} : vector<16x96xf32> to vector<8x8xf32>
    %30 = vector.extract_strided_slice %10 {offsets = [0, 40], sizes = [8, 8], strides = [1, 1]} : vector<16x96xf32> to vector<8x8xf32>
    %cst_14 = arith.constant dense<0.000000e+00> : vector<8x8xf32>
    %31 = tpu.matmul %29, %28, %cst_14 {dimension_numbers = #tpu.dot_dimension_numbers<[1], [1], [0], [0], [0, 0, 1, 0], [], []>} : vector<8x8xf32>, vector<8x8xf32>, vector<8x8xf32> -> vector<8x8xf32>
    %cst_15 = arith.constant 0.353553385 : f32
    %32 = vector.broadcast %cst_15 : f32 to vector<8x8xf32>
    %33 = arith.mulf %31, %32 : vector<8x8xf32>
    %cst_16 = arith.constant dense<0xFF800000> : vector<8xf32>
    %34 = vector.multi_reduction <maximumf>, %33, %cst_16 [0] : vector<8x8xf32> to vector<8xf32>
    %35 = vector.shape_cast %34 : vector<8xf32> to vector<1x8xf32>
    %36 = vector.broadcast %35 : vector<1x8xf32> to vector<8x8xf32>
    %37 = arith.subf %33, %36 : vector<8x8xf32>
    %38 = math.exp %37 : vector<8x8xf32>
    %cst_17 = arith.constant dense<0.000000e+00> : vector<8xf32>
    %39 = vector.multi_reduction <add>, %38, %cst_17 [0] : vector<8x8xf32> to vector<8xf32>
    %40 = vector.shape_cast %39 : vector<8xf32> to vector<1x8xf32>
    %41 = tpu.reciprocal %40 : vector<1x8xf32> -> vector<1x8xf32>
    %42 = vector.broadcast %41 : vector<1x8xf32> to vector<8x8xf32>
    %43 = arith.mulf %38, %42 : vector<8x8xf32>
    %cst_18 = arith.constant dense<0.000000e+00> : vector<8x8xf32>
    %44 = tpu.matmul %30, %43, %cst_18 {dimension_numbers = #tpu.dot_dimension_numbers<[0], [0], [1], [1], [0, 1, 1, 1], [], []>} : vector<8x8xf32>, vector<8x8xf32>, vector<8x8xf32> -> vector<8x8xf32>
    %45 = vector.extract_strided_slice %10 {offsets = [0, 48], sizes = [8, 8], strides = [1, 1]} : vector<16x96xf32> to vector<8x8xf32>
    %46 = vector.extract_strided_slice %10 {offsets = [0, 56], sizes = [8, 8], strides = [1, 1]} : vector<16x96xf32> to vector<8x8xf32>
    %47 = vector.extract_strided_slice %10 {offsets = [0, 64], sizes = [8, 8], strides = [1, 1]} : vector<16x96xf32> to vector<8x8xf32>
    %cst_19 = arith.constant dense<0.000000e+00> : vector<8x8xf32>
    %48 = tpu.matmul %46, %45, %cst_19 {dimension_numbers = #tpu.dot_dimension_numbers<[1], [1], [0], [0], [0, 0, 1, 0], [], []>} : vector<8x8xf32>, vector<8x8xf32>, vector<8x8xf32> -> vector<8x8xf32>
    %cst_20 = arith.constant 0.353553385 : f32
    %49 = vector.broadcast %cst_20 : f32 to vector<8x8xf32>
    %50 = arith.mulf %48, %49 : vector<8x8xf32>
    %cst_21 = arith.constant dense<0xFF800000> : vector<8xf32>
    %51 = vector.multi_reduction <maximumf>, %50, %cst_21 [0] : vector<8x8xf32> to vector<8xf32>
    %52 = vector.shape_cast %51 : vector<8xf32> to vector<1x8xf32>
    %53 = vector.broadcast %52 : vector<1x8xf32> to vector<8x8xf32>
    %54 = arith.subf %50, %53 : vector<8x8xf32>
    %55 = math.exp %54 : vector<8x8xf32>
    %cst_22 = arith.constant dense<0.000000e+00> : vector<8xf32>
    %56 = vector.multi_reduction <add>, %55, %cst_22 [0] : vector<8x8xf32> to vector<8xf32>
    %57 = vector.shape_cast %56 : vector<8xf32> to vector<1x8xf32>
    %58 = tpu.reciprocal %57 : vector<1x8xf32> -> vector<1x8xf32>
    %59 = vector.broadcast %58 : vector<1x8xf32> to vector<8x8xf32>
    %60 = arith.mulf %55, %59 : vector<8x8xf32>
    %cst_23 = arith.constant dense<0.000000e+00> : vector<8x8xf32>
    %61 = tpu.matmul %47, %60, %cst_23 {dimension_numbers = #tpu.dot_dimension_numbers<[0], [0], [1], [1], [0, 1, 1, 1], [], []>} : vector<8x8xf32>, vector<8x8xf32>, vector<8x8xf32> -> vector<8x8xf32>
    %62 = vector.extract_strided_slice %10 {offsets = [0, 72], sizes = [8, 8], strides = [1, 1]} : vector<16x96xf32> to vector<8x8xf32>
    %63 = vector.extract_strided_slice %10 {offsets = [0, 80], sizes = [8, 8], strides = [1, 1]} : vector<16x96xf32> to vector<8x8xf32>
    %64 = vector.extract_strided_slice %10 {offsets = [0, 88], sizes = [8, 8], strides = [1, 1]} : vector<16x96xf32> to vector<8x8xf32>
    %cst_24 = arith.constant dense<0.000000e+00> : vector<8x8xf32>
    %65 = tpu.matmul %63, %62, %cst_24 {dimension_numbers = #tpu.dot_dimension_numbers<[1], [1], [0], [0], [0, 0, 1, 0], [], []>} : vector<8x8xf32>, vector<8x8xf32>, vector<8x8xf32> -> vector<8x8xf32>
    %cst_25 = arith.constant 0.353553385 : f32
    %66 = vector.broadcast %cst_25 : f32 to vector<8x8xf32>
    %67 = arith.mulf %65, %66 : vector<8x8xf32>
    %cst_26 = arith.constant dense<0xFF800000> : vector<8xf32>
    %68 = vector.multi_reduction <maximumf>, %67, %cst_26 [0] : vector<8x8xf32> to vector<8xf32>
    %69 = vector.shape_cast %68 : vector<8xf32> to vector<1x8xf32>
    %70 = vector.broadcast %69 : vector<1x8xf32> to vector<8x8xf32>
    %71 = arith.subf %67, %70 : vector<8x8xf32>
    %72 = math.exp %71 : vector<8x8xf32>
    %cst_27 = arith.constant dense<0.000000e+00> : vector<8xf32>
    %73 = vector.multi_reduction <add>, %72, %cst_27 [0] : vector<8x8xf32> to vector<8xf32>
    %74 = vector.shape_cast %73 : vector<8xf32> to vector<1x8xf32>
    %75 = tpu.reciprocal %74 : vector<1x8xf32> -> vector<1x8xf32>
    %76 = vector.broadcast %75 : vector<1x8xf32> to vector<8x8xf32>
    %77 = arith.mulf %72, %76 : vector<8x8xf32>
    %cst_28 = arith.constant dense<0.000000e+00> : vector<8x8xf32>
    %78 = tpu.matmul %64, %77, %cst_28 {dimension_numbers = #tpu.dot_dimension_numbers<[0], [0], [1], [1], [0, 1, 1, 1], [], []>} : vector<8x8xf32>, vector<8x8xf32>, vector<8x8xf32> -> vector<8x8xf32>
    %79 = tpu.concatenate %27, %44, %61, %78 in 1 : vector<8x8xf32>, vector<8x8xf32>, vector<8x8xf32>, vector<8x8xf32> -> vector<8x32xf32>
    %80 = vector.extract_strided_slice %10 {offsets = [8, 0], sizes = [8, 8], strides = [1, 1]} : vector<16x96xf32> to vector<8x8xf32>
    %81 = vector.extract_strided_slice %10 {offsets = [8, 8], sizes = [8, 8], strides = [1, 1]} : vector<16x96xf32> to vector<8x8xf32>
    %82 = vector.extract_strided_slice %10 {offsets = [8, 16], sizes = [8, 8], strides = [1, 1]} : vector<16x96xf32> to vector<8x8xf32>
    %cst_29 = arith.constant dense<0.000000e+00> : vector<8x8xf32>
    %83 = tpu.matmul %81, %80, %cst_29 {dimension_numbers = #tpu.dot_dimension_numbers<[1], [1], [0], [0], [0, 0, 1, 0], [], []>} : vector<8x8xf32>, vector<8x8xf32>, vector<8x8xf32> -> vector<8x8xf32>
    %cst_30 = arith.constant 0.353553385 : f32
    %84 = vector.broadcast %cst_30 : f32 to vector<8x8xf32>
    %85 = arith.mulf %83, %84 : vector<8x8xf32>
    %cst_31 = arith.constant dense<0xFF800000> : vector<8xf32>
    %86 = vector.multi_reduction <maximumf>, %85, %cst_31 [0] : vector<8x8xf32> to vector<8xf32>
    %87 = vector.shape_cast %86 : vector<8xf32> to vector<1x8xf32>
    %88 = vector.broadcast %87 : vector<1x8xf32> to vector<8x8xf32>
    %89 = arith.subf %85, %88 : vector<8x8xf32>
    %90 = math.exp %89 : vector<8x8xf32>
    %cst_32 = arith.constant dense<0.000000e+00> : vector<8xf32>
    %91 = vector.multi_reduction <add>, %90, %cst_32 [0] : vector<8x8xf32> to vector<8xf32>
    %92 = vector.shape_cast %91 : vector<8xf32> to vector<1x8xf32>
    %93 = tpu.reciprocal %92 : vector<1x8xf32> -> vector<1x8xf32>
    %94 = vector.broadcast %93 : vector<1x8xf32> to vector<8x8xf32>
    %95 = arith.mulf %90, %94 : vector<8x8xf32>
    %cst_33 = arith.constant dense<0.000000e+00> : vector<8x8xf32>
    %96 = tpu.matmul %82, %95, %cst_33 {dimension_numbers = #tpu.dot_dimension_numbers<[0], [0], [1], [1], [0, 1, 1, 1], [], []>} : vector<8x8xf32>, vector<8x8xf32>, vector<8x8xf32> -> vector<8x8xf32>
    %97 = vector.extract_strided_slice %10 {offsets = [8, 24], sizes = [8, 8], strides = [1, 1]} : vector<16x96xf32> to vector<8x8xf32>
    %98 = vector.extract_strided_slice %10 {offsets = [8, 32], sizes = [8, 8], strides = [1, 1]} : vector<16x96xf32> to vector<8x8xf32>
    %99 = vector.extract_strided_slice %10 {offsets = [8, 40], sizes = [8, 8], strides = [1, 1]} : vector<16x96xf32> to vector<8x8xf32>
    %cst_34 = arith.constant dense<0.000000e+00> : vector<8x8xf32>
    %100 = tpu.matmul %98, %97, %cst_34 {dimension_numbers = #tpu.dot_dimension_numbers<[1], [1], [0], [0], [0, 0, 1, 0], [], []>} : vector<8x8xf32>, vector<8x8xf32>, vector<8x8xf32> -> vector<8x8xf32>
    %cst_35 = arith.constant 0.353553385 : f32
    %101 = vector.broadcast %cst_35 : f32 to vector<8x8xf32>
    %102 = arith.mulf %100, %101 : vector<8x8xf32>
    %cst_36 = arith.constant dense<0xFF800000> : vector<8xf32>
    %103 = vector.multi_reduction <maximumf>, %102, %cst_36 [0] : vector<8x8xf32> to vector<8xf32>
    %104 = vector.shape_cast %103 : vector<8xf32> to vector<1x8xf32>
    %105 = vector.broadcast %104 : vector<1x8xf32> to vector<8x8xf32>
    %106 = arith.subf %102, %105 : vector<8x8xf32>
    %107 = math.exp %106 : vector<8x8xf32>
    %cst_37 = arith.constant dense<0.000000e+00> : vector<8xf32>
    %108 = vector.multi_reduction <add>, %107, %cst_37 [0] : vector<8x8xf32> to vector<8xf32>
    %109 = vector.shape_cast %108 : vector<8xf32> to vector<1x8xf32>
    %110 = tpu.reciprocal %109 : vector<1x8xf32> -> vector<1x8xf32>
    %111 = vector.broadcast %110 : vector<1x8xf32> to vector<8x8xf32>
    %112 = arith.mulf %107, %111 : vector<8x8xf32>
    %cst_38 = arith.constant dense<0.000000e+00> : vector<8x8xf32>
    %113 = tpu.matmul %99, %112, %cst_38 {dimension_numbers = #tpu.dot_dimension_numbers<[0], [0], [1], [1], [0, 1, 1, 1], [], []>} : vector<8x8xf32>, vector<8x8xf32>, vector<8x8xf32> -> vector<8x8xf32>
    %114 = vector.extract_strided_slice %10 {offsets = [8, 48], sizes = [8, 8], strides = [1, 1]} : vector<16x96xf32> to vector<8x8xf32>
    %115 = vector.extract_strided_slice %10 {offsets = [8, 56], sizes = [8, 8], strides = [1, 1]} : vector<16x96xf32> to vector<8x8xf32>
    %116 = vector.extract_strided_slice %10 {offsets = [8, 64], sizes = [8, 8], strides = [1, 1]} : vector<16x96xf32> to vector<8x8xf32>
    %cst_39 = arith.constant dense<0.000000e+00> : vector<8x8xf32>
    %117 = tpu.matmul %115, %114, %cst_39 {dimension_numbers = #tpu.dot_dimension_numbers<[1], [1], [0], [0], [0, 0, 1, 0], [], []>} : vector<8x8xf32>, vector<8x8xf32>, vector<8x8xf32> -> vector<8x8xf32>
    %cst_40 = arith.constant 0.353553385 : f32
    %118 = vector.broadcast %cst_40 : f32 to vector<8x8xf32>
    %119 = arith.mulf %117, %118 : vector<8x8xf32>
    %cst_41 = arith.constant dense<0xFF800000> : vector<8xf32>
    %120 = vector.multi_reduction <maximumf>, %119, %cst_41 [0] : vector<8x8xf32> to vector<8xf32>
    %121 = vector.shape_cast %120 : vector<8xf32> to vector<1x8xf32>
    %122 = vector.broadcast %121 : vector<1x8xf32> to vector<8x8xf32>
    %123 = arith.subf %119, %122 : vector<8x8xf32>
    %124 = math.exp %123 : vector<8x8xf32>
    %cst_42 = arith.constant dense<0.000000e+00> : vector<8xf32>
    %125 = vector.multi_reduction <add>, %124, %cst_42 [0] : vector<8x8xf32> to vector<8xf32>
    %126 = vector.shape_cast %125 : vector<8xf32> to vector<1x8xf32>
    %127 = tpu.reciprocal %126 : vector<1x8xf32> -> vector<1x8xf32>
    %128 = vector.broadcast %127 : vector<1x8xf32> to vector<8x8xf32>
    %129 = arith.mulf %124, %128 : vector<8x8xf32>
    %cst_43 = arith.constant dense<0.000000e+00> : vector<8x8xf32>
    %130 = tpu.matmul %116, %129, %cst_43 {dimension_numbers = #tpu.dot_dimension_numbers<[0], [0], [1], [1], [0, 1, 1, 1], [], []>} : vector<8x8xf32>, vector<8x8xf32>, vector<8x8xf32> -> vector<8x8xf32>
    %131 = vector.extract_strided_slice %10 {offsets = [8, 72], sizes = [8, 8], strides = [1, 1]} : vector<16x96xf32> to vector<8x8xf32>
    %132 = vector.extract_strided_slice %10 {offsets = [8, 80], sizes = [8, 8], strides = [1, 1]} : vector<16x96xf32> to vector<8x8xf32>
    %133 = vector.extract_strided_slice %10 {offsets = [8, 88], sizes = [8, 8], strides = [1, 1]} : vector<16x96xf32> to vector<8x8xf32>
    %cst_44 = arith.constant dense<0.000000e+00> : vector<8x8xf32>
    %134 = tpu.matmul %132, %131, %cst_44 {dimension_numbers = #tpu.dot_dimension_numbers<[1], [1], [0], [0], [0, 0, 1, 0], [], []>} : vector<8x8xf32>, vector<8x8xf32>, vector<8x8xf32> -> vector<8x8xf32>
    %cst_45 = arith.constant 0.353553385 : f32
    %135 = vector.broadcast %cst_45 : f32 to vector<8x8xf32>
    %136 = arith.mulf %134, %135 : vector<8x8xf32>
    %cst_46 = arith.constant dense<0xFF800000> : vector<8xf32>
    %137 = vector.multi_reduction <maximumf>, %136, %cst_46 [0] : vector<8x8xf32> to vector<8xf32>
    %138 = vector.shape_cast %137 : vector<8xf32> to vector<1x8xf32>
    %139 = vector.broadcast %138 : vector<1x8xf32> to vector<8x8xf32>
    %140 = arith.subf %136, %139 : vector<8x8xf32>
    %141 = math.exp %140 : vector<8x8xf32>
    %cst_47 = arith.constant dense<0.000000e+00> : vector<8xf32>
    %142 = vector.multi_reduction <add>, %141, %cst_47 [0] : vector<8x8xf32> to vector<8xf32>
    %143 = vector.shape_cast %142 : vector<8xf32> to vector<1x8xf32>
    %144 = tpu.reciprocal %143 : vector<1x8xf32> -> vector<1x8xf32>
    %145 = vector.broadcast %144 : vector<1x8xf32> to vector<8x8xf32>
    %146 = arith.mulf %141, %145 : vector<8x8xf32>
    %cst_48 = arith.constant dense<0.000000e+00> : vector<8x8xf32>
    %147 = tpu.matmul %133, %146, %cst_48 {dimension_numbers = #tpu.dot_dimension_numbers<[0], [0], [1], [1], [0, 1, 1, 1], [], []>} : vector<8x8xf32>, vector<8x8xf32>, vector<8x8xf32> -> vector<8x8xf32>
    %148 = tpu.concatenate %96, %113, %130, %147 in 1 : vector<8x8xf32>, vector<8x8xf32>, vector<8x8xf32>, vector<8x8xf32> -> vector<8x32xf32>
    %149 = tpu.concatenate %79, %148 in 0 : vector<8x32xf32>, vector<8x32xf32> -> vector<16x32xf32>
    %c0_49 = arith.constant 0 : index
    %c0_50 = arith.constant 0 : index
    %c0_51 = arith.constant 0 : index
    %150 = vector.load %arg4[%c0_49, %c0_50, %c0_51] : memref<2x32x32xf32, #tpu.memory_space<vmem>>, vector<1x32x32xf32>
    %151 = vector.shape_cast %150 : vector<1x32x32xf32> to vector<32x32xf32>
    %cst_52 = arith.constant dense<0.000000e+00> : vector<16x32xf32>
    %152 = tpu.matmul %149, %151, %cst_52 {dimension_numbers = #tpu.dot_dimension_numbers<[1], [0], [0], [1], [0, 0, 1, 1], [], []>} : vector<16x32xf32>, vector<32x32xf32>, vector<16x32xf32> -> vector<16x32xf32>
    %c0_53 = arith.constant 0 : index
    %c0_54 = arith.constant 0 : index
    %c0_55 = arith.constant 0 : index
    %153 = vector.load %arg5[%c0_53, %c0_54, %c0_55] : memref<2x1x32xf32, #tpu.memory_space<vmem>>, vector<1x1x32xf32>
    %154 = vector.shape_cast %153 : vector<1x1x32xf32> to vector<1x32xf32>
    %155 = vector.broadcast %154 : vector<1x32xf32> to vector<16x32xf32>
    %156 = arith.addf %152, %155 : vector<16x32xf32>
    %157 = arith.addf %3, %156 : vector<16x32xf32>
    %c0_56 = arith.constant 0 : index
    %c0_57 = arith.constant 0 : index
    %c0_58 = arith.constant 0 : index
    %158 = vector.load %arg10[%c0_56, %c0_57, %c0_58] : memref<2x1x32xf32, #tpu.memory_space<vmem>>, vector<1x1x32xf32>
    %159 = vector.shape_cast %158 : vector<1x1x32xf32> to vector<1x32xf32>
    %c0_59 = arith.constant 0 : index
    %c0_60 = arith.constant 0 : index
    %c0_61 = arith.constant 0 : index
    %160 = vector.load %arg11[%c0_59, %c0_60, %c0_61] : memref<2x1x32xf32, #tpu.memory_space<vmem>>, vector<1x1x32xf32>
    %161 = vector.shape_cast %160 : vector<1x1x32xf32> to vector<1x32xf32>
    %cst_62 = arith.constant dense<0.000000e+00> : vector<16xf32>
    %162 = vector.multi_reduction <add>, %157, %cst_62 [1] : vector<16x32xf32> to vector<16xf32>
    %163 = vector.shape_cast %162 : vector<16xf32> to vector<16x1xf32>
    %cst_63 = arith.constant 3.200000e+01 : f32
    %164 = vector.broadcast %cst_63 : f32 to vector<16x1xf32>
    %165 = arith.divf %163, %164 : vector<16x1xf32>
    %166 = vector.broadcast %165 : vector<16x1xf32> to vector<16x32xf32>
    %167 = arith.subf %157, %166 : vector<16x32xf32>
    %168 = arith.mulf %167, %167 : vector<16x32xf32>
    %cst_64 = arith.constant dense<0.000000e+00> : vector<16xf32>
    %169 = vector.multi_reduction <add>, %168, %cst_64 [1] : vector<16x32xf32> to vector<16xf32>
    %170 = vector.shape_cast %169 : vector<16xf32> to vector<16x1xf32>
    %cst_65 = arith.constant 3.200000e+01 : f32
    %171 = vector.broadcast %cst_65 : f32 to vector<16x1xf32>
    %172 = arith.divf %170, %171 : vector<16x1xf32>
    %173 = vector.broadcast %165 : vector<16x1xf32> to vector<16x32xf32>
    %174 = arith.subf %157, %173 : vector<16x32xf32>
    %cst_66 = arith.constant 9.99999974E-6 : f32
    %175 = vector.broadcast %cst_66 : f32 to vector<16x1xf32>
    %176 = arith.addf %172, %175 : vector<16x1xf32>
    %177 = math.rsqrt %176 : vector<16x1xf32>
    %178 = vector.broadcast %177 : vector<16x1xf32> to vector<16x32xf32>
    %179 = arith.mulf %174, %178 : vector<16x32xf32>
    %180 = vector.broadcast %159 : vector<1x32xf32> to vector<16x32xf32>
    %181 = arith.mulf %179, %180 : vector<16x32xf32>
    %182 = vector.broadcast %161 : vector<1x32xf32> to vector<16x32xf32>
    %183 = arith.addf %181, %182 : vector<16x32xf32>
    %c0_67 = arith.constant 0 : index
    %c0_68 = arith.constant 0 : index
    %c0_69 = arith.constant 0 : index
    %184 = vector.load %arg6[%c0_67, %c0_68, %c0_69] : memref<2x32x128xf32, #tpu.memory_space<vmem>>, vector<1x32x128xf32>
    %185 = vector.shape_cast %184 : vector<1x32x128xf32> to vector<32x128xf32>
    %cst_70 = arith.constant dense<0.000000e+00> : vector<16x128xf32>
    %186 = tpu.matmul %183, %185, %cst_70 {dimension_numbers = #tpu.dot_dimension_numbers<[1], [0], [0], [1], [0, 0, 1, 1], [], []>} : vector<16x32xf32>, vector<32x128xf32>, vector<16x128xf32> -> vector<16x128xf32>
    %c0_71 = arith.constant 0 : index
    %c0_72 = arith.constant 0 : index
    %c0_73 = arith.constant 0 : index
    %187 = vector.load %arg7[%c0_71, %c0_72, %c0_73] : memref<2x1x128xf32, #tpu.memory_space<vmem>>, vector<1x1x128xf32>
    %188 = vector.shape_cast %187 : vector<1x1x128xf32> to vector<1x128xf32>
    %189 = vector.broadcast %188 : vector<1x128xf32> to vector<16x128xf32>
    %190 = arith.addf %186, %189 : vector<16x128xf32>
    %cst_74 = arith.constant 0.000000e+00 : f32
    %191 = vector.broadcast %cst_74 : f32 to vector<16x128xf32>
    %192 = arith.maximumf %190, %191 : vector<16x128xf32>
    %c0_75 = arith.constant 0 : index
    %c0_76 = arith.constant 0 : index
    %c0_77 = arith.constant 0 : index
    %193 = vector.load %arg8[%c0_75, %c0_76, %c0_77] : memref<2x128x32xf32, #tpu.memory_space<vmem>>, vector<1x128x32xf32>
    %194 = vector.shape_cast %193 : vector<1x128x32xf32> to vector<128x32xf32>
    %cst_78 = arith.constant dense<0.000000e+00> : vector<16x32xf32>
    %195 = tpu.matmul %192, %194, %cst_78 {dimension_numbers = #tpu.dot_dimension_numbers<[1], [0], [0], [1], [0, 0, 1, 1], [], []>} : vector<16x128xf32>, vector<128x32xf32>, vector<16x32xf32> -> vector<16x32xf32>
    %c0_79 = arith.constant 0 : index
    %c0_80 = arith.constant 0 : index
    %c0_81 = arith.constant 0 : index
    %196 = vector.load %arg9[%c0_79, %c0_80, %c0_81] : memref<2x1x32xf32, #tpu.memory_space<vmem>>, vector<1x1x32xf32>
    %197 = vector.shape_cast %196 : vector<1x1x32xf32> to vector<1x32xf32>
    %198 = vector.broadcast %197 : vector<1x32xf32> to vector<16x32xf32>
    %199 = arith.addf %195, %198 : vector<16x32xf32>
    %200 = arith.addf %183, %199 : vector<16x32xf32>
    %c0_82 = arith.constant 0 : index
    %c0_83 = arith.constant 0 : index
    %c0_84 = arith.constant 0 : index
    %201 = vector.load %arg12[%c0_82, %c0_83, %c0_84] : memref<2x1x32xf32, #tpu.memory_space<vmem>>, vector<1x1x32xf32>
    %202 = vector.shape_cast %201 : vector<1x1x32xf32> to vector<1x32xf32>
    %c0_85 = arith.constant 0 : index
    %c0_86 = arith.constant 0 : index
    %c0_87 = arith.constant 0 : index
    %203 = vector.load %arg13[%c0_85, %c0_86, %c0_87] : memref<2x1x32xf32, #tpu.memory_space<vmem>>, vector<1x1x32xf32>
    %204 = vector.shape_cast %203 : vector<1x1x32xf32> to vector<1x32xf32>
    %cst_88 = arith.constant dense<0.000000e+00> : vector<16xf32>
    %205 = vector.multi_reduction <add>, %200, %cst_88 [1] : vector<16x32xf32> to vector<16xf32>
    %206 = vector.shape_cast %205 : vector<16xf32> to vector<16x1xf32>
    %cst_89 = arith.constant 3.200000e+01 : f32
    %207 = vector.broadcast %cst_89 : f32 to vector<16x1xf32>
    %208 = arith.divf %206, %207 : vector<16x1xf32>
    %209 = vector.broadcast %208 : vector<16x1xf32> to vector<16x32xf32>
    %210 = arith.subf %200, %209 : vector<16x32xf32>
    %211 = arith.mulf %210, %210 : vector<16x32xf32>
    %cst_90 = arith.constant dense<0.000000e+00> : vector<16xf32>
    %212 = vector.multi_reduction <add>, %211, %cst_90 [1] : vector<16x32xf32> to vector<16xf32>
    %213 = vector.shape_cast %212 : vector<16xf32> to vector<16x1xf32>
    %cst_91 = arith.constant 3.200000e+01 : f32
    %214 = vector.broadcast %cst_91 : f32 to vector<16x1xf32>
    %215 = arith.divf %213, %214 : vector<16x1xf32>
    %216 = vector.broadcast %208 : vector<16x1xf32> to vector<16x32xf32>
    %217 = arith.subf %200, %216 : vector<16x32xf32>
    %cst_92 = arith.constant 9.99999974E-6 : f32
    %218 = vector.broadcast %cst_92 : f32 to vector<16x1xf32>
    %219 = arith.addf %215, %218 : vector<16x1xf32>
    %220 = math.rsqrt %219 : vector<16x1xf32>
    %221 = vector.broadcast %220 : vector<16x1xf32> to vector<16x32xf32>
    %222 = arith.mulf %217, %221 : vector<16x32xf32>
    %223 = vector.broadcast %202 : vector<1x32xf32> to vector<16x32xf32>
    %224 = arith.mulf %222, %223 : vector<16x32xf32>
    %225 = vector.broadcast %204 : vector<1x32xf32> to vector<16x32xf32>
    %226 = arith.addf %224, %225 : vector<16x32xf32>
    %c1 = arith.constant 1 : index
    %c0_93 = arith.constant 0 : index
    %c0_94 = arith.constant 0 : index
    %227 = vector.load %arg2[%c1, %c0_93, %c0_94] : memref<2x32x96xf32, #tpu.memory_space<vmem>>, vector<1x32x96xf32>
    %228 = vector.shape_cast %227 : vector<1x32x96xf32> to vector<32x96xf32>
    %cst_95 = arith.constant dense<0.000000e+00> : vector<16x96xf32>
    %229 = tpu.matmul %226, %228, %cst_95 {dimension_numbers = #tpu.dot_dimension_numbers<[1], [0], [0], [1], [0, 0, 1, 1], [], []>} : vector<16x32xf32>, vector<32x96xf32>, vector<16x96xf32> -> vector<16x96xf32>
    %c1_96 = arith.constant 1 : index
    %c0_97 = arith.constant 0 : index
    %c0_98 = arith.constant 0 : index
    %230 = vector.load %arg3[%c1_96, %c0_97, %c0_98] : memref<2x1x96xf32, #tpu.memory_space<vmem>>, vector<1x1x96xf32>
    %231 = vector.shape_cast %230 : vector<1x1x96xf32> to vector<1x96xf32>
    %232 = vector.broadcast %231 : vector<1x96xf32> to vector<16x96xf32>
    %233 = arith.addf %229, %232 : vector<16x96xf32>
    %234 = vector.extract_strided_slice %233 {offsets = [0, 0], sizes = [8, 8], strides = [1, 1]} : vector<16x96xf32> to vector<8x8xf32>
    %235 = vector.extract_strided_slice %233 {offsets = [0, 8], sizes = [8, 8], strides = [1, 1]} : vector<16x96xf32> to vector<8x8xf32>
    %236 = vector.extract_strided_slice %233 {offsets = [0, 16], sizes = [8, 8], strides = [1, 1]} : vector<16x96xf32> to vector<8x8xf32>
    %cst_99 = arith.constant dense<0.000000e+00> : vector<8x8xf32>
    %237 = tpu.matmul %235, %234, %cst_99 {dimension_numbers = #tpu.dot_dimension_numbers<[1], [1], [0], [0], [0, 0, 1, 0], [], []>} : vector<8x8xf32>, vector<8x8xf32>, vector<8x8xf32> -> vector<8x8xf32>
    %cst_100 = arith.constant 0.353553385 : f32
    %238 = vector.broadcast %cst_100 : f32 to vector<8x8xf32>
    %239 = arith.mulf %237, %238 : vector<8x8xf32>
    %cst_101 = arith.constant dense<0xFF800000> : vector<8xf32>
    %240 = vector.multi_reduction <maximumf>, %239, %cst_101 [0] : vector<8x8xf32> to vector<8xf32>
    %241 = vector.shape_cast %240 : vector<8xf32> to vector<1x8xf32>
    %242 = vector.broadcast %241 : vector<1x8xf32> to vector<8x8xf32>
    %243 = arith.subf %239, %242 : vector<8x8xf32>
    %244 = math.exp %243 : vector<8x8xf32>
    %cst_102 = arith.constant dense<0.000000e+00> : vector<8xf32>
    %245 = vector.multi_reduction <add>, %244, %cst_102 [0] : vector<8x8xf32> to vector<8xf32>
    %246 = vector.shape_cast %245 : vector<8xf32> to vector<1x8xf32>
    %247 = tpu.reciprocal %246 : vector<1x8xf32> -> vector<1x8xf32>
    %248 = vector.broadcast %247 : vector<1x8xf32> to vector<8x8xf32>
    %249 = arith.mulf %244, %248 : vector<8x8xf32>
    %cst_103 = arith.constant dense<0.000000e+00> : vector<8x8xf32>
    %250 = tpu.matmul %236, %249, %cst_103 {dimension_numbers = #tpu.dot_dimension_numbers<[0], [0], [1], [1], [0, 1, 1, 1], [], []>} : vector<8x8xf32>, vector<8x8xf32>, vector<8x8xf32> -> vector<8x8xf32>
    %251 = vector.extract_strided_slice %233 {offsets = [0, 24], sizes = [8, 8], strides = [1, 1]} : vector<16x96xf32> to vector<8x8xf32>
    %252 = vector.extract_strided_slice %233 {offsets = [0, 32], sizes = [8, 8], strides = [1, 1]} : vector<16x96xf32> to vector<8x8xf32>
    %253 = vector.extract_strided_slice %233 {offsets = [0, 40], sizes = [8, 8], strides = [1, 1]} : vector<16x96xf32> to vector<8x8xf32>
    %cst_104 = arith.constant dense<0.000000e+00> : vector<8x8xf32>
    %254 = tpu.matmul %252, %251, %cst_104 {dimension_numbers = #tpu.dot_dimension_numbers<[1], [1], [0], [0], [0, 0, 1, 0], [], []>} : vector<8x8xf32>, vector<8x8xf32>, vector<8x8xf32> -> vector<8x8xf32>
    %cst_105 = arith.constant 0.353553385 : f32
    %255 = vector.broadcast %cst_105 : f32 to vector<8x8xf32>
    %256 = arith.mulf %254, %255 : vector<8x8xf32>
    %cst_106 = arith.constant dense<0xFF800000> : vector<8xf32>
    %257 = vector.multi_reduction <maximumf>, %256, %cst_106 [0] : vector<8x8xf32> to vector<8xf32>
    %258 = vector.shape_cast %257 : vector<8xf32> to vector<1x8xf32>
    %259 = vector.broadcast %258 : vector<1x8xf32> to vector<8x8xf32>
    %260 = arith.subf %256, %259 : vector<8x8xf32>
    %261 = math.exp %260 : vector<8x8xf32>
    %cst_107 = arith.constant dense<0.000000e+00> : vector<8xf32>
    %262 = vector.multi_reduction <add>, %261, %cst_107 [0] : vector<8x8xf32> to vector<8xf32>
    %263 = vector.shape_cast %262 : vector<8xf32> to vector<1x8xf32>
    %264 = tpu.reciprocal %263 : vector<1x8xf32> -> vector<1x8xf32>
    %265 = vector.broadcast %264 : vector<1x8xf32> to vector<8x8xf32>
    %266 = arith.mulf %261, %265 : vector<8x8xf32>
    %cst_108 = arith.constant dense<0.000000e+00> : vector<8x8xf32>
    %267 = tpu.matmul %253, %266, %cst_108 {dimension_numbers = #tpu.dot_dimension_numbers<[0], [0], [1], [1], [0, 1, 1, 1], [], []>} : vector<8x8xf32>, vector<8x8xf32>, vector<8x8xf32> -> vector<8x8xf32>
    %268 = vector.extract_strided_slice %233 {offsets = [0, 48], sizes = [8, 8], strides = [1, 1]} : vector<16x96xf32> to vector<8x8xf32>
    %269 = vector.extract_strided_slice %233 {offsets = [0, 56], sizes = [8, 8], strides = [1, 1]} : vector<16x96xf32> to vector<8x8xf32>
    %270 = vector.extract_strided_slice %233 {offsets = [0, 64], sizes = [8, 8], strides = [1, 1]} : vector<16x96xf32> to vector<8x8xf32>
    %cst_109 = arith.constant dense<0.000000e+00> : vector<8x8xf32>
    %271 = tpu.matmul %269, %268, %cst_109 {dimension_numbers = #tpu.dot_dimension_numbers<[1], [1], [0], [0], [0, 0, 1, 0], [], []>} : vector<8x8xf32>, vector<8x8xf32>, vector<8x8xf32> -> vector<8x8xf32>
    %cst_110 = arith.constant 0.353553385 : f32
    %272 = vector.broadcast %cst_110 : f32 to vector<8x8xf32>
    %273 = arith.mulf %271, %272 : vector<8x8xf32>
    %cst_111 = arith.constant dense<0xFF800000> : vector<8xf32>
    %274 = vector.multi_reduction <maximumf>, %273, %cst_111 [0] : vector<8x8xf32> to vector<8xf32>
    %275 = vector.shape_cast %274 : vector<8xf32> to vector<1x8xf32>
    %276 = vector.broadcast %275 : vector<1x8xf32> to vector<8x8xf32>
    %277 = arith.subf %273, %276 : vector<8x8xf32>
    %278 = math.exp %277 : vector<8x8xf32>
    %cst_112 = arith.constant dense<0.000000e+00> : vector<8xf32>
    %279 = vector.multi_reduction <add>, %278, %cst_112 [0] : vector<8x8xf32> to vector<8xf32>
    %280 = vector.shape_cast %279 : vector<8xf32> to vector<1x8xf32>
    %281 = tpu.reciprocal %280 : vector<1x8xf32> -> vector<1x8xf32>
    %282 = vector.broadcast %281 : vector<1x8xf32> to vector<8x8xf32>
    %283 = arith.mulf %278, %282 : vector<8x8xf32>
    %cst_113 = arith.constant dense<0.000000e+00> : vector<8x8xf32>
    %284 = tpu.matmul %270, %283, %cst_113 {dimension_numbers = #tpu.dot_dimension_numbers<[0], [0], [1], [1], [0, 1, 1, 1], [], []>} : vector<8x8xf32>, vector<8x8xf32>, vector<8x8xf32> -> vector<8x8xf32>
    %285 = vector.extract_strided_slice %233 {offsets = [0, 72], sizes = [8, 8], strides = [1, 1]} : vector<16x96xf32> to vector<8x8xf32>
    %286 = vector.extract_strided_slice %233 {offsets = [0, 80], sizes = [8, 8], strides = [1, 1]} : vector<16x96xf32> to vector<8x8xf32>
    %287 = vector.extract_strided_slice %233 {offsets = [0, 88], sizes = [8, 8], strides = [1, 1]} : vector<16x96xf32> to vector<8x8xf32>
    %cst_114 = arith.constant dense<0.000000e+00> : vector<8x8xf32>
    %288 = tpu.matmul %286, %285, %cst_114 {dimension_numbers = #tpu.dot_dimension_numbers<[1], [1], [0], [0], [0, 0, 1, 0], [], []>} : vector<8x8xf32>, vector<8x8xf32>, vector<8x8xf32> -> vector<8x8xf32>
    %cst_115 = arith.constant 0.353553385 : f32
    %289 = vector.broadcast %cst_115 : f32 to vector<8x8xf32>
    %290 = arith.mulf %288, %289 : vector<8x8xf32>
    %cst_116 = arith.constant dense<0xFF800000> : vector<8xf32>
    %291 = vector.multi_reduction <maximumf>, %290, %cst_116 [0] : vector<8x8xf32> to vector<8xf32>
    %292 = vector.shape_cast %291 : vector<8xf32> to vector<1x8xf32>
    %293 = vector.broadcast %292 : vector<1x8xf32> to vector<8x8xf32>
    %294 = arith.subf %290, %293 : vector<8x8xf32>
    %295 = math.exp %294 : vector<8x8xf32>
    %cst_117 = arith.constant dense<0.000000e+00> : vector<8xf32>
    %296 = vector.multi_reduction <add>, %295, %cst_117 [0] : vector<8x8xf32> to vector<8xf32>
    %297 = vector.shape_cast %296 : vector<8xf32> to vector<1x8xf32>
    %298 = tpu.reciprocal %297 : vector<1x8xf32> -> vector<1x8xf32>
    %299 = vector.broadcast %298 : vector<1x8xf32> to vector<8x8xf32>
    %300 = arith.mulf %295, %299 : vector<8x8xf32>
    %cst_118 = arith.constant dense<0.000000e+00> : vector<8x8xf32>
    %301 = tpu.matmul %287, %300, %cst_118 {dimension_numbers = #tpu.dot_dimension_numbers<[0], [0], [1], [1], [0, 1, 1, 1], [], []>} : vector<8x8xf32>, vector<8x8xf32>, vector<8x8xf32> -> vector<8x8xf32>
    %302 = tpu.concatenate %250, %267, %284, %301 in 1 : vector<8x8xf32>, vector<8x8xf32>, vector<8x8xf32>, vector<8x8xf32> -> vector<8x32xf32>
    %303 = vector.extract_strided_slice %233 {offsets = [8, 0], sizes = [8, 8], strides = [1, 1]} : vector<16x96xf32> to vector<8x8xf32>
    %304 = vector.extract_strided_slice %233 {offsets = [8, 8], sizes = [8, 8], strides = [1, 1]} : vector<16x96xf32> to vector<8x8xf32>
    %305 = vector.extract_strided_slice %233 {offsets = [8, 16], sizes = [8, 8], strides = [1, 1]} : vector<16x96xf32> to vector<8x8xf32>
    %cst_119 = arith.constant dense<0.000000e+00> : vector<8x8xf32>
    %306 = tpu.matmul %304, %303, %cst_119 {dimension_numbers = #tpu.dot_dimension_numbers<[1], [1], [0], [0], [0, 0, 1, 0], [], []>} : vector<8x8xf32>, vector<8x8xf32>, vector<8x8xf32> -> vector<8x8xf32>
    %cst_120 = arith.constant 0.353553385 : f32
    %307 = vector.broadcast %cst_120 : f32 to vector<8x8xf32>
    %308 = arith.mulf %306, %307 : vector<8x8xf32>
    %cst_121 = arith.constant dense<0xFF800000> : vector<8xf32>
    %309 = vector.multi_reduction <maximumf>, %308, %cst_121 [0] : vector<8x8xf32> to vector<8xf32>
    %310 = vector.shape_cast %309 : vector<8xf32> to vector<1x8xf32>
    %311 = vector.broadcast %310 : vector<1x8xf32> to vector<8x8xf32>
    %312 = arith.subf %308, %311 : vector<8x8xf32>
    %313 = math.exp %312 : vector<8x8xf32>
    %cst_122 = arith.constant dense<0.000000e+00> : vector<8xf32>
    %314 = vector.multi_reduction <add>, %313, %cst_122 [0] : vector<8x8xf32> to vector<8xf32>
    %315 = vector.shape_cast %314 : vector<8xf32> to vector<1x8xf32>
    %316 = tpu.reciprocal %315 : vector<1x8xf32> -> vector<1x8xf32>
    %317 = vector.broadcast %316 : vector<1x8xf32> to vector<8x8xf32>
    %318 = arith.mulf %313, %317 : vector<8x8xf32>
    %cst_123 = arith.constant dense<0.000000e+00> : vector<8x8xf32>
    %319 = tpu.matmul %305, %318, %cst_123 {dimension_numbers = #tpu.dot_dimension_numbers<[0], [0], [1], [1], [0, 1, 1, 1], [], []>} : vector<8x8xf32>, vector<8x8xf32>, vector<8x8xf32> -> vector<8x8xf32>
    %320 = vector.extract_strided_slice %233 {offsets = [8, 24], sizes = [8, 8], strides = [1, 1]} : vector<16x96xf32> to vector<8x8xf32>
    %321 = vector.extract_strided_slice %233 {offsets = [8, 32], sizes = [8, 8], strides = [1, 1]} : vector<16x96xf32> to vector<8x8xf32>
    %322 = vector.extract_strided_slice %233 {offsets = [8, 40], sizes = [8, 8], strides = [1, 1]} : vector<16x96xf32> to vector<8x8xf32>
    %cst_124 = arith.constant dense<0.000000e+00> : vector<8x8xf32>
    %323 = tpu.matmul %321, %320, %cst_124 {dimension_numbers = #tpu.dot_dimension_numbers<[1], [1], [0], [0], [0, 0, 1, 0], [], []>} : vector<8x8xf32>, vector<8x8xf32>, vector<8x8xf32> -> vector<8x8xf32>
    %cst_125 = arith.constant 0.353553385 : f32
    %324 = vector.broadcast %cst_125 : f32 to vector<8x8xf32>
    %325 = arith.mulf %323, %324 : vector<8x8xf32>
    %cst_126 = arith.constant dense<0xFF800000> : vector<8xf32>
    %326 = vector.multi_reduction <maximumf>, %325, %cst_126 [0] : vector<8x8xf32> to vector<8xf32>
    %327 = vector.shape_cast %326 : vector<8xf32> to vector<1x8xf32>
    %328 = vector.broadcast %327 : vector<1x8xf32> to vector<8x8xf32>
    %329 = arith.subf %325, %328 : vector<8x8xf32>
    %330 = math.exp %329 : vector<8x8xf32>
    %cst_127 = arith.constant dense<0.000000e+00> : vector<8xf32>
    %331 = vector.multi_reduction <add>, %330, %cst_127 [0] : vector<8x8xf32> to vector<8xf32>
    %332 = vector.shape_cast %331 : vector<8xf32> to vector<1x8xf32>
    %333 = tpu.reciprocal %332 : vector<1x8xf32> -> vector<1x8xf32>
    %334 = vector.broadcast %333 : vector<1x8xf32> to vector<8x8xf32>
    %335 = arith.mulf %330, %334 : vector<8x8xf32>
    %cst_128 = arith.constant dense<0.000000e+00> : vector<8x8xf32>
    %336 = tpu.matmul %322, %335, %cst_128 {dimension_numbers = #tpu.dot_dimension_numbers<[0], [0], [1], [1], [0, 1, 1, 1], [], []>} : vector<8x8xf32>, vector<8x8xf32>, vector<8x8xf32> -> vector<8x8xf32>
    %337 = vector.extract_strided_slice %233 {offsets = [8, 48], sizes = [8, 8], strides = [1, 1]} : vector<16x96xf32> to vector<8x8xf32>
    %338 = vector.extract_strided_slice %233 {offsets = [8, 56], sizes = [8, 8], strides = [1, 1]} : vector<16x96xf32> to vector<8x8xf32>
    %339 = vector.extract_strided_slice %233 {offsets = [8, 64], sizes = [8, 8], strides = [1, 1]} : vector<16x96xf32> to vector<8x8xf32>
    %cst_129 = arith.constant dense<0.000000e+00> : vector<8x8xf32>
    %340 = tpu.matmul %338, %337, %cst_129 {dimension_numbers = #tpu.dot_dimension_numbers<[1], [1], [0], [0], [0, 0, 1, 0], [], []>} : vector<8x8xf32>, vector<8x8xf32>, vector<8x8xf32> -> vector<8x8xf32>
    %cst_130 = arith.constant 0.353553385 : f32
    %341 = vector.broadcast %cst_130 : f32 to vector<8x8xf32>
    %342 = arith.mulf %340, %341 : vector<8x8xf32>
    %cst_131 = arith.constant dense<0xFF800000> : vector<8xf32>
    %343 = vector.multi_reduction <maximumf>, %342, %cst_131 [0] : vector<8x8xf32> to vector<8xf32>
    %344 = vector.shape_cast %343 : vector<8xf32> to vector<1x8xf32>
    %345 = vector.broadcast %344 : vector<1x8xf32> to vector<8x8xf32>
    %346 = arith.subf %342, %345 : vector<8x8xf32>
    %347 = math.exp %346 : vector<8x8xf32>
    %cst_132 = arith.constant dense<0.000000e+00> : vector<8xf32>
    %348 = vector.multi_reduction <add>, %347, %cst_132 [0] : vector<8x8xf32> to vector<8xf32>
    %349 = vector.shape_cast %348 : vector<8xf32> to vector<1x8xf32>
    %350 = tpu.reciprocal %349 : vector<1x8xf32> -> vector<1x8xf32>
    %351 = vector.broadcast %350 : vector<1x8xf32> to vector<8x8xf32>
    %352 = arith.mulf %347, %351 : vector<8x8xf32>
    %cst_133 = arith.constant dense<0.000000e+00> : vector<8x8xf32>
    %353 = tpu.matmul %339, %352, %cst_133 {dimension_numbers = #tpu.dot_dimension_numbers<[0], [0], [1], [1], [0, 1, 1, 1], [], []>} : vector<8x8xf32>, vector<8x8xf32>, vector<8x8xf32> -> vector<8x8xf32>
    %354 = vector.extract_strided_slice %233 {offsets = [8, 72], sizes = [8, 8], strides = [1, 1]} : vector<16x96xf32> to vector<8x8xf32>
    %355 = vector.extract_strided_slice %233 {offsets = [8, 80], sizes = [8, 8], strides = [1, 1]} : vector<16x96xf32> to vector<8x8xf32>
    %356 = vector.extract_strided_slice %233 {offsets = [8, 88], sizes = [8, 8], strides = [1, 1]} : vector<16x96xf32> to vector<8x8xf32>
    %cst_134 = arith.constant dense<0.000000e+00> : vector<8x8xf32>
    %357 = tpu.matmul %355, %354, %cst_134 {dimension_numbers = #tpu.dot_dimension_numbers<[1], [1], [0], [0], [0, 0, 1, 0], [], []>} : vector<8x8xf32>, vector<8x8xf32>, vector<8x8xf32> -> vector<8x8xf32>
    %cst_135 = arith.constant 0.353553385 : f32
    %358 = vector.broadcast %cst_135 : f32 to vector<8x8xf32>
    %359 = arith.mulf %357, %358 : vector<8x8xf32>
    %cst_136 = arith.constant dense<0xFF800000> : vector<8xf32>
    %360 = vector.multi_reduction <maximumf>, %359, %cst_136 [0] : vector<8x8xf32> to vector<8xf32>
    %361 = vector.shape_cast %360 : vector<8xf32> to vector<1x8xf32>
    %362 = vector.broadcast %361 : vector<1x8xf32> to vector<8x8xf32>
    %363 = arith.subf %359, %362 : vector<8x8xf32>
    %364 = math.exp %363 : vector<8x8xf32>
    %cst_137 = arith.constant dense<0.000000e+00> : vector<8xf32>
    %365 = vector.multi_reduction <add>, %364, %cst_137 [0] : vector<8x8xf32> to vector<8xf32>
    %366 = vector.shape_cast %365 : vector<8xf32> to vector<1x8xf32>
    %367 = tpu.reciprocal %366 : vector<1x8xf32> -> vector<1x8xf32>
    %368 = vector.broadcast %367 : vector<1x8xf32> to vector<8x8xf32>
    %369 = arith.mulf %364, %368 : vector<8x8xf32>
    %cst_138 = arith.constant dense<0.000000e+00> : vector<8x8xf32>
    %370 = tpu.matmul %356, %369, %cst_138 {dimension_numbers = #tpu.dot_dimension_numbers<[0], [0], [1], [1], [0, 1, 1, 1], [], []>} : vector<8x8xf32>, vector<8x8xf32>, vector<8x8xf32> -> vector<8x8xf32>
    %371 = tpu.concatenate %319, %336, %353, %370 in 1 : vector<8x8xf32>, vector<8x8xf32>, vector<8x8xf32>, vector<8x8xf32> -> vector<8x32xf32>
    %372 = tpu.concatenate %302, %371 in 0 : vector<8x32xf32>, vector<8x32xf32> -> vector<16x32xf32>
    %c1_139 = arith.constant 1 : index
    %c0_140 = arith.constant 0 : index
    %c0_141 = arith.constant 0 : index
    %373 = vector.load %arg4[%c1_139, %c0_140, %c0_141] : memref<2x32x32xf32, #tpu.memory_space<vmem>>, vector<1x32x32xf32>
    %374 = vector.shape_cast %373 : vector<1x32x32xf32> to vector<32x32xf32>
    %cst_142 = arith.constant dense<0.000000e+00> : vector<16x32xf32>
    %375 = tpu.matmul %372, %374, %cst_142 {dimension_numbers = #tpu.dot_dimension_numbers<[1], [0], [0], [1], [0, 0, 1, 1], [], []>} : vector<16x32xf32>, vector<32x32xf32>, vector<16x32xf32> -> vector<16x32xf32>
    %c1_143 = arith.constant 1 : index
    %c0_144 = arith.constant 0 : index
    %c0_145 = arith.constant 0 : index
    %376 = vector.load %arg5[%c1_143, %c0_144, %c0_145] : memref<2x1x32xf32, #tpu.memory_space<vmem>>, vector<1x1x32xf32>
    %377 = vector.shape_cast %376 : vector<1x1x32xf32> to vector<1x32xf32>
    %378 = vector.broadcast %377 : vector<1x32xf32> to vector<16x32xf32>
    %379 = arith.addf %375, %378 : vector<16x32xf32>
    %380 = arith.addf %226, %379 : vector<16x32xf32>
    %c1_146 = arith.constant 1 : index
    %c0_147 = arith.constant 0 : index
    %c0_148 = arith.constant 0 : index
    %381 = vector.load %arg10[%c1_146, %c0_147, %c0_148] : memref<2x1x32xf32, #tpu.memory_space<vmem>>, vector<1x1x32xf32>
    %382 = vector.shape_cast %381 : vector<1x1x32xf32> to vector<1x32xf32>
    %c1_149 = arith.constant 1 : index
    %c0_150 = arith.constant 0 : index
    %c0_151 = arith.constant 0 : index
    %383 = vector.load %arg11[%c1_149, %c0_150, %c0_151] : memref<2x1x32xf32, #tpu.memory_space<vmem>>, vector<1x1x32xf32>
    %384 = vector.shape_cast %383 : vector<1x1x32xf32> to vector<1x32xf32>
    %cst_152 = arith.constant dense<0.000000e+00> : vector<16xf32>
    %385 = vector.multi_reduction <add>, %380, %cst_152 [1] : vector<16x32xf32> to vector<16xf32>
    %386 = vector.shape_cast %385 : vector<16xf32> to vector<16x1xf32>
    %cst_153 = arith.constant 3.200000e+01 : f32
    %387 = vector.broadcast %cst_153 : f32 to vector<16x1xf32>
    %388 = arith.divf %386, %387 : vector<16x1xf32>
    %389 = vector.broadcast %388 : vector<16x1xf32> to vector<16x32xf32>
    %390 = arith.subf %380, %389 : vector<16x32xf32>
    %391 = arith.mulf %390, %390 : vector<16x32xf32>
    %cst_154 = arith.constant dense<0.000000e+00> : vector<16xf32>
    %392 = vector.multi_reduction <add>, %391, %cst_154 [1] : vector<16x32xf32> to vector<16xf32>
    %393 = vector.shape_cast %392 : vector<16xf32> to vector<16x1xf32>
    %cst_155 = arith.constant 3.200000e+01 : f32
    %394 = vector.broadcast %cst_155 : f32 to vector<16x1xf32>
    %395 = arith.divf %393, %394 : vector<16x1xf32>
    %396 = vector.broadcast %388 : vector<16x1xf32> to vector<16x32xf32>
    %397 = arith.subf %380, %396 : vector<16x32xf32>
    %cst_156 = arith.constant 9.99999974E-6 : f32
    %398 = vector.broadcast %cst_156 : f32 to vector<16x1xf32>
    %399 = arith.addf %395, %398 : vector<16x1xf32>
    %400 = math.rsqrt %399 : vector<16x1xf32>
    %401 = vector.broadcast %400 : vector<16x1xf32> to vector<16x32xf32>
    %402 = arith.mulf %397, %401 : vector<16x32xf32>
    %403 = vector.broadcast %382 : vector<1x32xf32> to vector<16x32xf32>
    %404 = arith.mulf %402, %403 : vector<16x32xf32>
    %405 = vector.broadcast %384 : vector<1x32xf32> to vector<16x32xf32>
    %406 = arith.addf %404, %405 : vector<16x32xf32>
    %c1_157 = arith.constant 1 : index
    %c0_158 = arith.constant 0 : index
    %c0_159 = arith.constant 0 : index
    %407 = vector.load %arg6[%c1_157, %c0_158, %c0_159] : memref<2x32x128xf32, #tpu.memory_space<vmem>>, vector<1x32x128xf32>
    %408 = vector.shape_cast %407 : vector<1x32x128xf32> to vector<32x128xf32>
    %cst_160 = arith.constant dense<0.000000e+00> : vector<16x128xf32>
    %409 = tpu.matmul %406, %408, %cst_160 {dimension_numbers = #tpu.dot_dimension_numbers<[1], [0], [0], [1], [0, 0, 1, 1], [], []>} : vector<16x32xf32>, vector<32x128xf32>, vector<16x128xf32> -> vector<16x128xf32>
    %c1_161 = arith.constant 1 : index
    %c0_162 = arith.constant 0 : index
    %c0_163 = arith.constant 0 : index
    %410 = vector.load %arg7[%c1_161, %c0_162, %c0_163] : memref<2x1x128xf32, #tpu.memory_space<vmem>>, vector<1x1x128xf32>
    %411 = vector.shape_cast %410 : vector<1x1x128xf32> to vector<1x128xf32>
    %412 = vector.broadcast %411 : vector<1x128xf32> to vector<16x128xf32>
    %413 = arith.addf %409, %412 : vector<16x128xf32>
    %cst_164 = arith.constant 0.000000e+00 : f32
    %414 = vector.broadcast %cst_164 : f32 to vector<16x128xf32>
    %415 = arith.maximumf %413, %414 : vector<16x128xf32>
    %c1_165 = arith.constant 1 : index
    %c0_166 = arith.constant 0 : index
    %c0_167 = arith.constant 0 : index
    %416 = vector.load %arg8[%c1_165, %c0_166, %c0_167] : memref<2x128x32xf32, #tpu.memory_space<vmem>>, vector<1x128x32xf32>
    %417 = vector.shape_cast %416 : vector<1x128x32xf32> to vector<128x32xf32>
    %cst_168 = arith.constant dense<0.000000e+00> : vector<16x32xf32>
    %418 = tpu.matmul %415, %417, %cst_168 {dimension_numbers = #tpu.dot_dimension_numbers<[1], [0], [0], [1], [0, 0, 1, 1], [], []>} : vector<16x128xf32>, vector<128x32xf32>, vector<16x32xf32> -> vector<16x32xf32>
    %c1_169 = arith.constant 1 : index
    %c0_170 = arith.constant 0 : index
    %c0_171 = arith.constant 0 : index
    %419 = vector.load %arg9[%c1_169, %c0_170, %c0_171] : memref<2x1x32xf32, #tpu.memory_space<vmem>>, vector<1x1x32xf32>
    %420 = vector.shape_cast %419 : vector<1x1x32xf32> to vector<1x32xf32>
    %421 = vector.broadcast %420 : vector<1x32xf32> to vector<16x32xf32>
    %422 = arith.addf %418, %421 : vector<16x32xf32>
    %423 = arith.addf %406, %422 : vector<16x32xf32>
    %c1_172 = arith.constant 1 : index
    %c0_173 = arith.constant 0 : index
    %c0_174 = arith.constant 0 : index
    %424 = vector.load %arg12[%c1_172, %c0_173, %c0_174] : memref<2x1x32xf32, #tpu.memory_space<vmem>>, vector<1x1x32xf32>
    %425 = vector.shape_cast %424 : vector<1x1x32xf32> to vector<1x32xf32>
    %c1_175 = arith.constant 1 : index
    %c0_176 = arith.constant 0 : index
    %c0_177 = arith.constant 0 : index
    %426 = vector.load %arg13[%c1_175, %c0_176, %c0_177] : memref<2x1x32xf32, #tpu.memory_space<vmem>>, vector<1x1x32xf32>
    %427 = vector.shape_cast %426 : vector<1x1x32xf32> to vector<1x32xf32>
    %cst_178 = arith.constant dense<0.000000e+00> : vector<16xf32>
    %428 = vector.multi_reduction <add>, %423, %cst_178 [1] : vector<16x32xf32> to vector<16xf32>
    %429 = vector.shape_cast %428 : vector<16xf32> to vector<16x1xf32>
    %cst_179 = arith.constant 3.200000e+01 : f32
    %430 = vector.broadcast %cst_179 : f32 to vector<16x1xf32>
    %431 = arith.divf %429, %430 : vector<16x1xf32>
    %432 = vector.broadcast %431 : vector<16x1xf32> to vector<16x32xf32>
    %433 = arith.subf %423, %432 : vector<16x32xf32>
    %434 = arith.mulf %433, %433 : vector<16x32xf32>
    %cst_180 = arith.constant dense<0.000000e+00> : vector<16xf32>
    %435 = vector.multi_reduction <add>, %434, %cst_180 [1] : vector<16x32xf32> to vector<16xf32>
    %436 = vector.shape_cast %435 : vector<16xf32> to vector<16x1xf32>
    %cst_181 = arith.constant 3.200000e+01 : f32
    %437 = vector.broadcast %cst_181 : f32 to vector<16x1xf32>
    %438 = arith.divf %436, %437 : vector<16x1xf32>
    %439 = vector.broadcast %431 : vector<16x1xf32> to vector<16x32xf32>
    %440 = arith.subf %423, %439 : vector<16x32xf32>
    %cst_182 = arith.constant 9.99999974E-6 : f32
    %441 = vector.broadcast %cst_182 : f32 to vector<16x1xf32>
    %442 = arith.addf %438, %441 : vector<16x1xf32>
    %443 = math.rsqrt %442 : vector<16x1xf32>
    %444 = vector.broadcast %443 : vector<16x1xf32> to vector<16x32xf32>
    %445 = arith.mulf %440, %444 : vector<16x32xf32>
    %446 = vector.broadcast %425 : vector<1x32xf32> to vector<16x32xf32>
    %447 = arith.mulf %445, %446 : vector<16x32xf32>
    %448 = vector.broadcast %427 : vector<1x32xf32> to vector<16x32xf32>
    %449 = arith.addf %447, %448 : vector<16x32xf32>
    %c0_183 = arith.constant 0 : index
    %c0_184 = arith.constant 0 : index
    %450 = vector.load %arg14[%c0_183, %c0_184] : memref<16x32xf32, #tpu.memory_space<vmem>>, vector<16x32xf32>
    tpu.vector_store %arg14[%c0_183, %c0_184], %449 {strides = array<i32>} : memref<16x32xf32, #tpu.memory_space<vmem>>, vector<16x32xf32>,
    return
  }
}

</mosaic_0001>

<llo_original>
// kernel: _lambda_.1
$region0: #{_lambda_.1}
  #allocation0 [shape = 'u32[]', space=smem, size = 0x4, offset = 0x4, fixed_abs, tag = 'smem constant byte address 0x4 - core index']
  #allocation1 [shape = 'u32[72,128]{1,0:T(1,128)}', space=vmem, size = 0x9000, scoped, tag = 'internal scratch']
  %s0 = inlined_call_operand.vmem [shape: f32[16,32], index: 0, kind: input, shape index: {}]
  %s1 = inlined_call_operand.vmem [shape: f32[8,32], index: 1, kind: input, shape index: {}]
  %s2 = inlined_call_operand.vmem [shape: f32[2,32,96], index: 2, kind: input, shape index: {}]
  %s3 = inlined_call_operand.vmem [shape: f32[2,1,96], index: 3, kind: input, shape index: {}]
  %s4 = inlined_call_operand.vmem [shape: f32[2,32,32], index: 4, kind: input, shape index: {}]
  %s5 = inlined_call_operand.vmem [shape: f32[2,1,32], index: 5, kind: input, shape index: {}]
  %s6 = inlined_call_operand.vmem [shape: f32[2,32,128], index: 6, kind: input, shape index: {}]
  %s7 = inlined_call_operand.vmem [shape: f32[2,1,128], index: 7, kind: input, shape index: {}]
  %s8 = inlined_call_operand.vmem [shape: f32[2,128,32], index: 8, kind: input, shape index: {}]
  %s9 = inlined_call_operand.vmem [shape: f32[2,1,32], index: 9, kind: input, shape index: {}]
  %s10 = inlined_call_operand.vmem [shape: f32[2,1,32], index: 10, kind: input, shape index: {}]
  %s11 = inlined_call_operand.vmem [shape: f32[2,1,32], index: 11, kind: input, shape index: {}]
  %s12 = inlined_call_operand.vmem [shape: f32[2,1,32], index: 12, kind: input, shape index: {}]
  %s13 = inlined_call_operand.vmem [shape: f32[2,1,32], index: 13, kind: input, shape index: {}]
  %s14 = inlined_call_operand.hbm [shape: f32[16,32], index: 14, kind: output, shape index: {}]
  %s15 = sld [smem:[#allocation0]]
  $region66: #{_lambda_.1} parent=0
    _
  %s17 = ssub.s32 1, %s15
  %s18 = scalar_select 0, %s17, %s15
  $region1: #{_lambda_.1} parent=0
    #allocation2 [shape = 'u8[8192]{0}', space=vmem, size = 0x2000, scoped, tag = 'output window, operand 0, single buffered']
    #allocation3 [shape = 's32[1]{0}', space=sflag, size = 0x4, scoped, tag = 'scoped memory for _lambda_.1']
    %19 = vsyncpa [#allocation3], 0
    // Predicated region
    $region2: #{_lambda_.1} parent=1 // pred_check
      _
    $region3: #{_lambda_.1} parent=1 // pred_check_branch
      %21 = sbr.rel (0) target = $region5
    $region4: #{_lambda_.1} parent=1 // pred_region
      _
    $region5: #{_lambda_.1} parent=1 // pred_fallthru
      _
    // Predicated region
    $region6: #{_lambda_.1} parent=1 // pred_check
      _
    $region7: #{_lambda_.1} parent=1 // pred_check_branch
      %23 = sbr.rel (0) target = $region9
    $region8: #{_lambda_.1} parent=1 // pred_region
      _
    $region9: #{_lambda_.1} parent=1 // pred_fallthru
      _
    // Predicated region
    $region10: #{_lambda_.1} parent=1 // pred_check
      _
    $region11: #{_lambda_.1} parent=1 // pred_check_branch
      %25 = sbr.rel (0) target = $region13
    $region12: #{_lambda_.1} parent=1 // pred_region
      _
    $region13: #{_lambda_.1} parent=1 // pred_fallthru
      _
    // Predicated region
    $region14: #{_lambda_.1} parent=1 // pred_check
      _
    $region15: #{_lambda_.1} parent=1 // pred_check_branch
      %27 = sbr.rel (0) target = $region17
    $region16: #{_lambda_.1} parent=1 // pred_region
      _
    $region17: #{_lambda_.1} parent=1 // pred_fallthru
      _
    // Predicated region
    $region18: #{_lambda_.1} parent=1 // pred_check
      _
    $region19: #{_lambda_.1} parent=1 // pred_check_branch
      %29 = sbr.rel (0) target = $region21
    $region20: #{_lambda_.1} parent=1 // pred_region
      _
    $region21: #{_lambda_.1} parent=1 // pred_fallthru
      _
    // Predicated region
    $region22: #{_lambda_.1} parent=1 // pred_check
      _
    $region23: #{_lambda_.1} parent=1 // pred_check_branch
      %31 = sbr.rel (0) target = $region25
    $region24: #{_lambda_.1} parent=1 // pred_region
      _
    $region25: #{_lambda_.1} parent=1 // pred_fallthru
      _
    // Predicated region
    $region26: #{_lambda_.1} parent=1 // pred_check
      _
    $region27: #{_lambda_.1} parent=1 // pred_check_branch
      %33 = sbr.rel (0) target = $region29
    $region28: #{_lambda_.1} parent=1 // pred_region
      _
    $region29: #{_lambda_.1} parent=1 // pred_fallthru
      _
    // Predicated region
    $region30: #{_lambda_.1} parent=1 // pred_check
      _
    $region31: #{_lambda_.1} parent=1 // pred_check_branch
      %35 = sbr.rel (0) target = $region33
    $region32: #{_lambda_.1} parent=1 // pred_region
      _
    $region33: #{_lambda_.1} parent=1 // pred_fallthru
      _
    // Predicated region
    $region34: #{_lambda_.1} parent=1 // pred_check
      _
    $region35: #{_lambda_.1} parent=1 // pred_check_branch
      %37 = sbr.rel (0) target = $region37
    $region36: #{_lambda_.1} parent=1 // pred_region
      _
    $region37: #{_lambda_.1} parent=1 // pred_fallthru
      _
    // Predicated region
    $region38: #{_lambda_.1} parent=1 // pred_check
      _
    $region39: #{_lambda_.1} parent=1 // pred_check_branch
      %39 = sbr.rel (0) target = $region41
    $region40: #{_lambda_.1} parent=1 // pred_region
      _
    $region41: #{_lambda_.1} parent=1 // pred_fallthru
      _
    // Predicated region
    $region42: #{_lambda_.1} parent=1 // pred_check
      _
    $region43: #{_lambda_.1} parent=1 // pred_check_branch
      %41 = sbr.rel (0) target = $region45
    $region44: #{_lambda_.1} parent=1 // pred_region
      _
    $region45: #{_lambda_.1} parent=1 // pred_fallthru
      _
    // Predicated region
    $region46: #{_lambda_.1} parent=1 // pred_check
      _
    $region47: #{_lambda_.1} parent=1 // pred_check_branch
      %43 = sbr.rel (0) target = $region49
    $region48: #{_lambda_.1} parent=1 // pred_region
      _
    $region49: #{_lambda_.1} parent=1 // pred_fallthru
      _
    // Predicated region
    $region50: #{_lambda_.1} parent=1 // pred_check
      _
    $region51: #{_lambda_.1} parent=1 // pred_check_branch
      %45 = sbr.rel (0) target = $region53
    $region52: #{_lambda_.1} parent=1 // pred_region
      _
    $region53: #{_lambda_.1} parent=1 // pred_fallthru
      _
    // Predicated region
    $region54: #{_lambda_.1} parent=1 // pred_check
      _
    $region55: #{_lambda_.1} parent=1 // pred_check_branch
      %47 = sbr.rel (0) target = $region57
    $region56: #{_lambda_.1} parent=1 // pred_region
      _
    $region57: #{_lambda_.1} parent=1 // pred_fallthru
      _
    %v48 = vld [vmem:[%s1] sm:$0xff]
    %v49 = vld [vmem:[%s0] sm:$0xff]
    %v50 = vld [vmem:[%s0 + $0x8] sm:$0xff]
    %v51 = vadd.f32 %v49, %v48
    %v52 = vadd.f32 %v50, %v48
    %v53 = vld [vmem:[%s2] sm:$0xff]
    %v54 = vld [vmem:[%s2 + $0x8] sm:$0xff]
    %v55 = vld [vmem:[%s2 + $0x10] sm:$0xff]
    %v56 = vld [vmem:[%s2 + $0x18] sm:$0xff]
    %v57 = vld [vmem:[%s3] sm:$0x1]
    %v59 = vperm.slane %v57, 0
    %vm61 = vcmask 261120
    %v63 = vsel %vm61, %v51, 0
    %v66 = vsel %vm61, %v52, 0
    %68 = vmatpush.msra.mxu0 0.0
    %69 = vmatpush.msra.mxu0 0.0
    %70 = vmatpush.msra.mxu0 0.0
    %71 = vmatpush.msra.mxu0 0.0
    %72 = vmatpush.msra.mxu0 0.0
    %73 = vmatpush.msra.mxu0 0.0
    %74 = vmatpush.msra.mxu0 0.0
    %75 = vmatpush.msra.mxu0 0.0
    %76 = vmatpush.msra.mxu0 0.0
    %77 = vmatpush.msra.mxu0 0.0
    %78 = vmatpush.msra.mxu0 0.0
    %79 = vmatpush.msra.mxu0 0.0
    %80 = vmatpush.msra.mxu0 %v56
    %81 = vmatpush.msra.mxu0 %v55
    %82 = vmatpush.msra.mxu0 %v54
    %83 = vmatpush.msra.mxu0 %v53
    %84 = vmatmul.f32.gmra.mxu0 %v63
    %v85 = vpop.f32.mrf.mxu0
    %v86 = vadd.f32 %v59, %v85
    %87 = vmatmul.f32.gmra.mxu0 %v66
    %v88 = vpop.f32.mrf.mxu0
    %v89 = vadd.f32 %v59, %v88
    %90 = vdwg.mxu0
    %92 = vrot.lane.b32.xlu0 %v86, 120
    %v93 = vpop.permute.xlu0 %92
    %vm94 = vcmask 64512
    %v95 = vsel %vm94, %v93, 0
    %v97 = vsel %vm94, %v86, 0
    %99 = vmatpush.xpose.msra.mxu0 0.0
    %100 = vmatpush.xpose.msra.mxu0 0.0
    %101 = vmatpush.xpose.msra.mxu0 0.0
    %102 = vmatpush.xpose.msra.mxu0 0.0
    %103 = vmatpush.xpose.msra.mxu0 0.0
    %104 = vmatpush.xpose.msra.mxu0 0.0
    %105 = vmatpush.xpose.msra.mxu0 0.0
    %106 = vmatpush.xpose.msra.mxu0 0.0
    %107 = vmatpush.xpose.msra.mxu0 0.0
    %108 = vmatpush.xpose.msra.mxu0 0.0
    %109 = vmatpush.xpose.msra.mxu0 0.0
    %110 = vmatpush.xpose.msra.mxu0 0.0
    %111 = vmatpush.xpose.msra.mxu0 0.0
    %112 = vmatpush.xpose.msra.mxu0 0.0
    %113 = vmatpush.xpose.msra.mxu0 0.0
    %114 = vmatpush.xpose.msra.mxu0 %v97
    %115 = vmatmul.f32.gmra.mxu0 %v95
    %v116 = vpop.f32.mrf.mxu0
    %v117 = vadd.f32 0.0, %v116
    %118 = vdwg.mxu0
    %v119 = vmul.f32 %v117, 0.35355338
    %v120 = vsel %vm94, %v119, -inf
    %v121 = vrot.slane %v120, 4
    %v122 = vmax.f32 %v120, %v121
    %v123 = vrot.slane %v122, 2
    %v124 = vmax.f32 %v122, %v123
    %v125 = vrot.slane %v124, 1
    %v126 = vmax.f32 %v124, %v125
    %v127 = vsub.f32 %v119, %v126
    %v128 = vmul.f32 %v127, 1.442695
    %v129 = vpow.pop %v128
    %v130 = vsel %vm94, %v129, 0.0
    %v131 = vrot.slane %v130, 4
    %v132 = vadd.f32 %v130, %v131
    %v133 = vrot.slane %v132, 2
    %v134 = vadd.f32 %v132, %v133
    %v135 = vrot.slane %v134, 1
    %v136 = vadd.f32 %v134, %v135
    %v137 = vrcp.pop %v136
    %v138 = vmul.f32 %v136, %v137
    %v139 = vsub.f32 1.0, %v138
    %v140 = vmul.f32 %v137, %v139
    %v141 = vadd.f32 %v137, %v140
    %vm142 = vweird.f32 %v136
    %vm143 = vweird.f32 %v137
    %vm144 = vmor %vm142, %vm143
    %v145 = vsel %vm144, %v137, %v141
    %v146 = vand.u32 2147483647, %v136
    %vm147 = vcmp.eq.f32.partialorder %v146, 8.507059e+37
    %v148 = vand.u32 %v136, 2147483648
    %v149 = vor.u32 1.1754944e-38, %v148
    %v150 = vsel %vm147, %v149, %v145
    %v151 = vmul.f32 %v129, %v150
    %152 = vrot.lane.b32.xlu0 %v86, 112
    %v153 = vpop.permute.xlu0 %152
    %155 = vxpose.xlu0.b32.start [1/16] %v153, 128
    %156 = vxpose.xlu0.b32.cont [2/16] 0.0, 128
    %157 = vxpose.xlu0.b32.cont [3/16] 0.0, 128
    %158 = vxpose.xlu0.b32.cont [4/16] 0.0, 128
    %159 = vxpose.xlu0.b32.cont [5/16] 0.0, 128
    %160 = vxpose.xlu0.b32.cont [6/16] 0.0, 128
    %161 = vxpose.xlu0.b32.cont [7/16] 0.0, 128
    %162 = vxpose.xlu0.b32.cont [8/16] 0.0, 128
    %163 = vxpose.xlu0.b32.cont [9/16] 0.0, 128
    %164 = vxpose.xlu0.b32.cont [10/16] 0.0, 128
    %165 = vxpose.xlu0.b32.cont [11/16] 0.0, 128
    %166 = vxpose.xlu0.b32.cont [12/16] 0.0, 128
    %167 = vxpose.xlu0.b32.cont [13/16] 0.0, 128
    %168 = vxpose.xlu0.b32.cont [14/16] 0.0, 128
    %169 = vxpose.xlu0.b32.cont [15/16] 0.0, 128
    %170 = vxpose.xlu0.b32.end [16/16] 0.0, 128
    %v171 = vpop.trf.xlu0
    %v172 = vpop.trf.xlu0
    %v173 = vpop.trf.xlu0
    %v174 = vpop.trf.xlu0
    %v175 = vpop.trf.xlu0
    %v176 = vpop.trf.xlu0
    %v177 = vpop.trf.xlu0
    %v178 = vpop.trf.xlu0
    %v179 = vpop.trf.xlu0
    %v180 = vpop.trf.xlu0
    %v181 = vpop.trf.xlu0
    %v182 = vpop.trf.xlu0
    %v183 = vpop.trf.xlu0
    %v184 = vpop.trf.xlu0
    %v185 = vpop.trf.xlu0
    %v186 = vpop.trf.xlu0
    %v188 = vsel %vm94, %v171, 0
    %190 = vmatpush.msra.mxu0 0.0
    %191 = vmatpush.msra.mxu0 0.0
    %192 = vmatpush.msra.mxu0 0.0
    %193 = vmatpush.msra.mxu0 0.0
    %194 = vmatpush.msra.mxu0 0.0
    %195 = vmatpush.msra.mxu0 0.0
    %196 = vmatpush.msra.mxu0 0.0
    %197 = vmatpush.msra.mxu0 0.0
    %198 = vmatpush.msra.mxu0 0.0
    %199 = vmatpush.msra.mxu0 0.0
    %200 = vmatpush.msra.mxu0 0.0
    %201 = vmatpush.msra.mxu0 0.0
    %202 = vmatpush.msra.mxu0 0.0
    %203 = vmatpush.msra.mxu0 0.0
    %204 = vmatpush.msra.mxu0 0.0
    %205 = vmatpush.msra.mxu0 %v151
    %206 = vmatmul.f32.gmra.mxu0 %v188
    %v207 = vpop.f32.mrf.mxu0
    %v208 = vadd.f32 0.0, %v207
    %209 = vdwg.mxu0
    %210 = vrot.lane.b32.xlu0 %v86, 96
    %v211 = vpop.permute.xlu0 %210
    %212 = vrot.lane.b32.xlu0 %v86, 104
    %v213 = vpop.permute.xlu0 %212
    %v214 = vsel %vm94, %v211, 0
    %v216 = vsel %vm94, %v213, 0
    %218 = vmatpush.xpose.msra.mxu0 0.0
    %219 = vmatpush.xpose.msra.mxu0 0.0
    %220 = vmatpush.xpose.msra.mxu0 0.0
    %221 = vmatpush.xpose.msra.mxu0 0.0
    %222 = vmatpush.xpose.msra.mxu0 0.0
    %223 = vmatpush.xpose.msra.mxu0 0.0
    %224 = vmatpush.xpose.msra.mxu0 0.0
    %225 = vmatpush.xpose.msra.mxu0 0.0
    %226 = vmatpush.xpose.msra.mxu0 0.0
    %227 = vmatpush.xpose.msra.mxu0 0.0
    %228 = vmatpush.xpose.msra.mxu0 0.0
    %229 = vmatpush.xpose.msra.mxu0 0.0
    %230 = vmatpush.xpose.msra.mxu0 0.0
    %231 = vmatpush.xpose.msra.mxu0 0.0
    %232 = vmatpush.xpose.msra.mxu0 0.0
    %233 = vmatpush.xpose.msra.mxu0 %v216
    %234 = vmatmul.f32.gmra.mxu0 %v214
    %v235 = vpop.f32.mrf.mxu0
    %v236 = vadd.f32 0.0, %v235
    %237 = vdwg.mxu0
    %v238 = vmul.f32 %v236, 0.35355338
    %v239 = vsel %vm94, %v238, -inf
    %v240 = vrot.slane %v239, 4
    %v241 = vmax.f32 %v239, %v240
    %v242 = vrot.slane %v241, 2
    %v243 = vmax.f32 %v241, %v242
    %v244 = vrot.slane %v243, 1
    %v245 = vmax.f32 %v243, %v244
    %v246 = vsub.f32 %v238, %v245
    %v247 = vmul.f32 %v246, 1.442695
    %v248 = vpow.pop %v247
    %v249 = vsel %vm94, %v248, 0.0
    %v250 = vrot.slane %v249, 4
    %v251 = vadd.f32 %v249, %v250
    %v252 = vrot.slane %v251, 2
    %v253 = vadd.f32 %v251, %v252
    %v254 = vrot.slane %v253, 1
    %v255 = vadd.f32 %v253, %v254
    %v256 = vrcp.pop %v255
    %v257 = vmul.f32 %v255, %v256
    %v258 = vsub.f32 1.0, %v257
    %v259 = vmul.f32 %v256, %v258
    %v260 = vadd.f32 %v256, %v259
    %vm261 = vweird.f32 %v255
    %vm262 = vweird.f32 %v256
    %vm263 = vmor %vm261, %vm262
    %v264 = vsel %vm263, %v256, %v260
    %v265 = vand.u32 2147483647, %v255
    %vm266 = vcmp.eq.f32.partialorder %v265, 8.507059e+37
    %v267 = vand.u32 %v255, 2147483648
    %v268 = vor.u32 1.1754944e-38, %v267
    %v269 = vsel %vm266, %v268, %v264
    %v270 = vmul.f32 %v248, %v269
    %271 = vrot.lane.b32.xlu0 %v86, 88
    %v272 = vpop.permute.xlu0 %271
    %274 = vxpose.xlu0.b32.start [1/16] %v272, 128
    %275 = vxpose.xlu0.b32.cont [2/16] 0.0, 128
    %276 = vxpose.xlu0.b32.cont [3/16] 0.0, 128
    %277 = vxpose.xlu0.b32.cont [4/16] 0.0, 128
    %278 = vxpose.xlu0.b32.cont [5/16] 0.0, 128
    %279 = vxpose.xlu0.b32.cont [6/16] 0.0, 128
    %280 = vxpose.xlu0.b32.cont [7/16] 0.0, 128
    %281 = vxpose.xlu0.b32.cont [8/16] 0.0, 128
    %282 = vxpose.xlu0.b32.cont [9/16] 0.0, 128
    %283 = vxpose.xlu0.b32.cont [10/16] 0.0, 128
    %284 = vxpose.xlu0.b32.cont [11/16] 0.0, 128
    %285 = vxpose.xlu0.b32.cont [12/16] 0.0, 128
    %286 = vxpose.xlu0.b32.cont [13/16] 0.0, 128
    %287 = vxpose.xlu0.b32.cont [14/16] 0.0, 128
    %288 = vxpose.xlu0.b32.cont [15/16] 0.0, 128
    %289 = vxpose.xlu0.b32.end [16/16] 0.0, 128
    %v290 = vpop.trf.xlu0
    %v291 = vpop.trf.xlu0
    %v292 = vpop.trf.xlu0
    %v293 = vpop.trf.xlu0
    %v294 = vpop.trf.xlu0
    %v295 = vpop.trf.xlu0
    %v296 = vpop.trf.xlu0
    %v297 = vpop.trf.xlu0
    %v298 = vpop.trf.xlu0
    %v299 = vpop.trf.xlu0
    %v300 = vpop.trf.xlu0
    %v301 = vpop.trf.xlu0
    %v302 = vpop.trf.xlu0
    %v303 = vpop.trf.xlu0
    %v304 = vpop.trf.xlu0
    %v305 = vpop.trf.xlu0
    %v307 = vsel %vm94, %v290, 0
    %309 = vmatpush.msra.mxu0 0.0
    %310 = vmatpush.msra.mxu0 0.0
    %311 = vmatpush.msra.mxu0 0.0
    %312 = vmatpush.msra.mxu0 0.0
    %313 = vmatpush.msra.mxu0 0.0
    %314 = vmatpush.msra.mxu0 0.0
    %315 = vmatpush.msra.mxu0 0.0
    %316 = vmatpush.msra.mxu0 0.0
    %317 = vmatpush.msra.mxu0 0.0
    %318 = vmatpush.msra.mxu0 0.0
    %319 = vmatpush.msra.mxu0 0.0
    %320 = vmatpush.msra.mxu0 0.0
    %321 = vmatpush.msra.mxu0 0.0
    %322 = vmatpush.msra.mxu0 0.0
    %323 = vmatpush.msra.mxu0 0.0
    %324 = vmatpush.msra.mxu0 %v270
    %325 = vmatmul.f32.gmra.mxu0 %v307
    %v326 = vpop.f32.mrf.mxu0
    %v327 = vadd.f32 0.0, %v326
    %328 = vdwg.mxu0
    %329 = vrot.lane.b32.xlu0 %v86, 72
    %v330 = vpop.permute.xlu0 %329
    %331 = vrot.lane.b32.xlu0 %v86, 80
    %v332 = vpop.permute.xlu0 %331
    %v333 = vsel %vm94, %v330, 0
    %v335 = vsel %vm94, %v332, 0
    %337 = vmatpush.xpose.msra.mxu0 0.0
    %338 = vmatpush.xpose.msra.mxu0 0.0
    %339 = vmatpush.xpose.msra.mxu0 0.0
    %340 = vmatpush.xpose.msra.mxu0 0.0
    %341 = vmatpush.xpose.msra.mxu0 0.0
    %342 = vmatpush.xpose.msra.mxu0 0.0
    %343 = vmatpush.xpose.msra.mxu0 0.0
    %344 = vmatpush.xpose.msra.mxu0 0.0
    %345 = vmatpush.xpose.msra.mxu0 0.0
    %346 = vmatpush.xpose.msra.mxu0 0.0
    %347 = vmatpush.xpose.msra.mxu0 0.0
    %348 = vmatpush.xpose.msra.mxu0 0.0
    %349 = vmatpush.xpose.msra.mxu0 0.0
    %350 = vmatpush.xpose.msra.mxu0 0.0
    %351 = vmatpush.xpose.msra.mxu0 0.0
    %352 = vmatpush.xpose.msra.mxu0 %v335
    %353 = vmatmul.f32.gmra.mxu0 %v333
    %v354 = vpop.f32.mrf.mxu0
    %v355 = vadd.f32 0.0, %v354
    %356 = vdwg.mxu0
    %v357 = vmul.f32 %v355, 0.35355338
    %v358 = vsel %vm94, %v357, -inf
    %v359 = vrot.slane %v358, 4
    %v360 = vmax.f32 %v358, %v359
    %v361 = vrot.slane %v360, 2
    %v362 = vmax.f32 %v360, %v361
    %v363 = vrot.slane %v362, 1
    %v364 = vmax.f32 %v362, %v363
    %v365 = vsub.f32 %v357, %v364
    %v366 = vmul.f32 %v365, 1.442695
    %v367 = vpow.pop %v366
    %v368 = vsel %vm94, %v367, 0.0
    %v369 = vrot.slane %v368, 4
    %v370 = vadd.f32 %v368, %v369
    %v371 = vrot.slane %v370, 2
    %v372 = vadd.f32 %v370, %v371
    %v373 = vrot.slane %v372, 1
    %v374 = vadd.f32 %v372, %v373
    %v375 = vrcp.pop %v374
    %v376 = vmul.f32 %v374, %v375
    %v377 = vsub.f32 1.0, %v376
    %v378 = vmul.f32 %v375, %v377
    %v379 = vadd.f32 %v375, %v378
    %vm380 = vweird.f32 %v374
    %vm381 = vweird.f32 %v375
    %vm382 = vmor %vm380, %vm381
    %v383 = vsel %vm382, %v375, %v379
    %v384 = vand.u32 2147483647, %v374
    %vm385 = vcmp.eq.f32.partialorder %v384, 8.507059e+37
    %v386 = vand.u32 %v374, 2147483648
    %v387 = vor.u32 1.1754944e-38, %v386
    %v388 = vsel %vm385, %v387, %v383
    %v389 = vmul.f32 %v367, %v388
    %390 = vrot.lane.b32.xlu0 %v86, 64
    %v391 = vpop.permute.xlu0 %390
    %393 = vxpose.xlu0.b32.start [1/16] %v391, 128
    %394 = vxpose.xlu0.b32.cont [2/16] 0.0, 128
    %395 = vxpose.xlu0.b32.cont [3/16] 0.0, 128
    %396 = vxpose.xlu0.b32.cont [4/16] 0.0, 128
    %397 = vxpose.xlu0.b32.cont [5/16] 0.0, 128
    %398 = vxpose.xlu0.b32.cont [6/16] 0.0, 128
    %399 = vxpose.xlu0.b32.cont [7/16] 0.0, 128
    %400 = vxpose.xlu0.b32.cont [8/16] 0.0, 128
    %401 = vxpose.xlu0.b32.cont [9/16] 0.0, 128
    %402 = vxpose.xlu0.b32.cont [10/16] 0.0, 128
    %403 = vxpose.xlu0.b32.cont [11/16] 0.0, 128
    %404 = vxpose.xlu0.b32.cont [12/16] 0.0, 128
    %405 = vxpose.xlu0.b32.cont [13/16] 0.0, 128
    %406 = vxpose.xlu0.b32.cont [14/16] 0.0, 128
    %407 = vxpose.xlu0.b32.cont [15/16] 0.0, 128
    %408 = vxpose.xlu0.b32.end [16/16] 0.0, 128
    %v409 = vpop.trf.xlu0
    %v410 = vpop.trf.xlu0
    %v411 = vpop.trf.xlu0
    %v412 = vpop.trf.xlu0
    %v413 = vpop.trf.xlu0
    %v414 = vpop.trf.xlu0
    %v415 = vpop.trf.xlu0
    %v416 = vpop.trf.xlu0
    %v417 = vpop.trf.xlu0
    %v418 = vpop.trf.xlu0
    %v419 = vpop.trf.xlu0
    %v420 = vpop.trf.xlu0
    %v421 = vpop.trf.xlu0
    %v422 = vpop.trf.xlu0
    %v423 = vpop.trf.xlu0
    %v424 = vpop.trf.xlu0
    %v426 = vsel %vm94, %v409, 0
    %428 = vmatpush.msra.mxu0 0.0
    %429 = vmatpush.msra.mxu0 0.0
    %430 = vmatpush.msra.mxu0 0.0
    %431 = vmatpush.msra.mxu0 0.0
    %432 = vmatpush.msra.mxu0 0.0
    %433 = vmatpush.msra.mxu0 0.0
    %434 = vmatpush.msra.mxu0 0.0
    %435 = vmatpush.msra.mxu0 0.0
    %436 = vmatpush.msra.mxu0 0.0
    %437 = vmatpush.msra.mxu0 0.0
    %438 = vmatpush.msra.mxu0 0.0
    %439 = vmatpush.msra.mxu0 0.0
    %440 = vmatpush.msra.mxu0 0.0
    %441 = vmatpush.msra.mxu0 0.0
    %442 = vmatpush.msra.mxu0 0.0
    %443 = vmatpush.msra.mxu0 %v389
    %444 = vmatmul.f32.gmra.mxu0 %v426
    %v445 = vpop.f32.mrf.mxu0
    %v446 = vadd.f32 0.0, %v445
    %447 = vdwg.mxu0
    %448 = vrot.lane.b32.xlu0 %v86, 48
    %v449 = vpop.permute.xlu0 %448
    %450 = vrot.lane.b32.xlu0 %v86, 56
    %v451 = vpop.permute.xlu0 %450
    %v452 = vsel %vm94, %v449, 0
    %v454 = vsel %vm94, %v451, 0
    %456 = vmatpush.xpose.msra.mxu0 0.0
    %457 = vmatpush.xpose.msra.mxu0 0.0
    %458 = vmatpush.xpose.msra.mxu0 0.0
    %459 = vmatpush.xpose.msra.mxu0 0.0
    %460 = vmatpush.xpose.msra.mxu0 0.0
    %461 = vmatpush.xpose.msra.mxu0 0.0
    %462 = vmatpush.xpose.msra.mxu0 0.0
    %463 = vmatpush.xpose.msra.mxu0 0.0
    %464 = vmatpush.xpose.msra.mxu0 0.0
    %465 = vmatpush.xpose.msra.mxu0 0.0
    %466 = vmatpush.xpose.msra.mxu0 0.0
    %467 = vmatpush.xpose.msra.mxu0 0.0
    %468 = vmatpush.xpose.msra.mxu0 0.0
    %469 = vmatpush.xpose.msra.mxu0 0.0
    %470 = vmatpush.xpose.msra.mxu0 0.0
    %471 = vmatpush.xpose.msra.mxu0 %v454
    %472 = vmatmul.f32.gmra.mxu0 %v452
    %v473 = vpop.f32.mrf.mxu0
    %v474 = vadd.f32 0.0, %v473
    %475 = vdwg.mxu0
    %v476 = vmul.f32 %v474, 0.35355338
    %v477 = vsel %vm94, %v476, -inf
    %v478 = vrot.slane %v477, 4
    %v479 = vmax.f32 %v477, %v478
    %v480 = vrot.slane %v479, 2
    %v481 = vmax.f32 %v479, %v480
    %v482 = vrot.slane %v481, 1
    %v483 = vmax.f32 %v481, %v482
    %v484 = vsub.f32 %v476, %v483
    %v485 = vmul.f32 %v484, 1.442695
    %v486 = vpow.pop %v485
    %v487 = vsel %vm94, %v486, 0.0
    %v488 = vrot.slane %v487, 4
    %v489 = vadd.f32 %v487, %v488
    %v490 = vrot.slane %v489, 2
    %v491 = vadd.f32 %v489, %v490
    %v492 = vrot.slane %v491, 1
    %v493 = vadd.f32 %v491, %v492
    %v494 = vrcp.pop %v493
    %v495 = vmul.f32 %v493, %v494
    %v496 = vsub.f32 1.0, %v495
    %v497 = vmul.f32 %v494, %v496
    %v498 = vadd.f32 %v494, %v497
    %vm499 = vweird.f32 %v493
    %vm500 = vweird.f32 %v494
    %vm501 = vmor %vm499, %vm500
    %v502 = vsel %vm501, %v494, %v498
    %v503 = vand.u32 2147483647, %v493
    %vm504 = vcmp.eq.f32.partialorder %v503, 8.507059e+37
    %v505 = vand.u32 %v493, 2147483648
    %v506 = vor.u32 1.1754944e-38, %v505
    %v507 = vsel %vm504, %v506, %v502
    %v508 = vmul.f32 %v486, %v507
    %509 = vrot.lane.b32.xlu0 %v86, 40
    %v510 = vpop.permute.xlu0 %509
    %512 = vxpose.xlu0.b32.start [1/16] %v510, 128
    %513 = vxpose.xlu0.b32.cont [2/16] 0.0, 128
    %514 = vxpose.xlu0.b32.cont [3/16] 0.0, 128
    %515 = vxpose.xlu0.b32.cont [4/16] 0.0, 128
    %516 = vxpose.xlu0.b32.cont [5/16] 0.0, 128
    %517 = vxpose.xlu0.b32.cont [6/16] 0.0, 128
    %518 = vxpose.xlu0.b32.cont [7/16] 0.0, 128
    %519 = vxpose.xlu0.b32.cont [8/16] 0.0, 128
    %520 = vxpose.xlu0.b32.cont [9/16] 0.0, 128
    %521 = vxpose.xlu0.b32.cont [10/16] 0.0, 128
    %522 = vxpose.xlu0.b32.cont [11/16] 0.0, 128
    %523 = vxpose.xlu0.b32.cont [12/16] 0.0, 128
    %524 = vxpose.xlu0.b32.cont [13/16] 0.0, 128
    %525 = vxpose.xlu0.b32.cont [14/16] 0.0, 128
    %526 = vxpose.xlu0.b32.cont [15/16] 0.0, 128
    %527 = vxpose.xlu0.b32.end [16/16] 0.0, 128
    %v528 = vpop.trf.xlu0
    %v529 = vpop.trf.xlu0
    %v530 = vpop.trf.xlu0
    %v531 = vpop.trf.xlu0
    %v532 = vpop.trf.xlu0
    %v533 = vpop.trf.xlu0
    %v534 = vpop.trf.xlu0
    %v535 = vpop.trf.xlu0
    %v536 = vpop.trf.xlu0
    %v537 = vpop.trf.xlu0
    %v538 = vpop.trf.xlu0
    %v539 = vpop.trf.xlu0
    %v540 = vpop.trf.xlu0
    %v541 = vpop.trf.xlu0
    %v542 = vpop.trf.xlu0
    %v543 = vpop.trf.xlu0
    %v545 = vsel %vm94, %v528, 0
    %547 = vmatpush.msra.mxu0 0.0
    %548 = vmatpush.msra.mxu0 0.0
    %549 = vmatpush.msra.mxu0 0.0
    %550 = vmatpush.msra.mxu0 0.0
    %551 = vmatpush.msra.mxu0 0.0
    %552 = vmatpush.msra.mxu0 0.0
    %553 = vmatpush.msra.mxu0 0.0
    %554 = vmatpush.msra.mxu0 0.0
    %555 = vmatpush.msra.mxu0 0.0
    %556 = vmatpush.msra.mxu0 0.0
    %557 = vmatpush.msra.mxu0 0.0
    %558 = vmatpush.msra.mxu0 0.0
    %559 = vmatpush.msra.mxu0 0.0
    %560 = vmatpush.msra.mxu0 0.0
    %561 = vmatpush.msra.mxu0 0.0
    %562 = vmatpush.msra.mxu0 %v508
    %563 = vmatmul.f32.gmra.mxu0 %v545
    %v564 = vpop.f32.mrf.mxu0
    %v565 = vadd.f32 0.0, %v564
    %566 = vdwg.mxu0
    %568 = vrot.lane.b32.xlu0 %v327, 8
    %v569 = vpop.permute.xlu0 %568
    %572 = vrot.lane.b32.xlu0 %v446, 16
    %v573 = vpop.permute.xlu0 %572
    %576 = vrot.lane.b32.xlu0 %v565, 24
    %v577 = vpop.permute.xlu0 %576
    %v579 = vsel %vm94, %v208, %v569
    %vm580 = vcmask 130048
    %v581 = vsel %vm580, %v579, %v573
    %vm582 = vcmask 195584
    %v583 = vsel %vm582, %v581, %v577
    %585 = vrot.lane.b32.xlu0 %v89, 120
    %v586 = vpop.permute.xlu0 %585
    %v587 = vsel %vm94, %v586, 0
    %v589 = vsel %vm94, %v89, 0
    %591 = vmatpush.xpose.msra.mxu0 0.0
    %592 = vmatpush.xpose.msra.mxu0 0.0
    %593 = vmatpush.xpose.msra.mxu0 0.0
    %594 = vmatpush.xpose.msra.mxu0 0.0
    %595 = vmatpush.xpose.msra.mxu0 0.0
    %596 = vmatpush.xpose.msra.mxu0 0.0
    %597 = vmatpush.xpose.msra.mxu0 0.0
    %598 = vmatpush.xpose.msra.mxu0 0.0
    %599 = vmatpush.xpose.msra.mxu0 0.0
    %600 = vmatpush.xpose.msra.mxu0 0.0
    %601 = vmatpush.xpose.msra.mxu0 0.0
    %602 = vmatpush.xpose.msra.mxu0 0.0
    %603 = vmatpush.xpose.msra.mxu0 0.0
    %604 = vmatpush.xpose.msra.mxu0 0.0
    %605 = vmatpush.xpose.msra.mxu0 0.0
    %606 = vmatpush.xpose.msra.mxu0 %v589
    %607 = vmatmul.f32.gmra.mxu0 %v587
    %v608 = vpop.f32.mrf.mxu0
    %v609 = vadd.f32 0.0, %v608
    %610 = vdwg.mxu0
    %v611 = vmul.f32 %v609, 0.35355338
    %v612 = vsel %vm94, %v611, -inf
    %v613 = vrot.slane %v612, 4
    %v614 = vmax.f32 %v612, %v613
    %v615 = vrot.slane %v614, 2
    %v616 = vmax.f32 %v614, %v615
    %v617 = vrot.slane %v616, 1
    %v618 = vmax.f32 %v616, %v617
    %v619 = vsub.f32 %v611, %v618
    %v620 = vmul.f32 %v619, 1.442695
    %v621 = vpow.pop %v620
    %v622 = vsel %vm94, %v621, 0.0
    %v623 = vrot.slane %v622, 4
    %v624 = vadd.f32 %v622, %v623
    %v625 = vrot.slane %v624, 2
    %v626 = vadd.f32 %v624, %v625
    %v627 = vrot.slane %v626, 1
    %v628 = vadd.f32 %v626, %v627
    %v629 = vrcp.pop %v628
    %v630 = vmul.f32 %v628, %v629
    %v631 = vsub.f32 1.0, %v630
    %v632 = vmul.f32 %v629, %v631
    %v633 = vadd.f32 %v629, %v632
    %vm634 = vweird.f32 %v628
    %vm635 = vweird.f32 %v629
    %vm636 = vmor %vm634, %vm635
    %v637 = vsel %vm636, %v629, %v633
    %v638 = vand.u32 2147483647, %v628
    %vm639 = vcmp.eq.f32.partialorder %v638, 8.507059e+37
    %v640 = vand.u32 %v628, 2147483648
    %v641 = vor.u32 1.1754944e-38, %v640
    %v642 = vsel %vm639, %v641, %v637
    %v643 = vmul.f32 %v621, %v642
    %644 = vrot.lane.b32.xlu0 %v89, 112
    %v645 = vpop.permute.xlu0 %644
    %647 = vxpose.xlu0.b32.start [1/16] %v645, 128
    %648 = vxpose.xlu0.b32.cont [2/16] 0.0, 128
    %649 = vxpose.xlu0.b32.cont [3/16] 0.0, 128
    %650 = vxpose.xlu0.b32.cont [4/16] 0.0, 128
    %651 = vxpose.xlu0.b32.cont [5/16] 0.0, 128
    %652 = vxpose.xlu0.b32.cont [6/16] 0.0, 128
    %653 = vxpose.xlu0.b32.cont [7/16] 0.0, 128
    %654 = vxpose.xlu0.b32.cont [8/16] 0.0, 128
    %655 = vxpose.xlu0.b32.cont [9/16] 0.0, 128
    %656 = vxpose.xlu0.b32.cont [10/16] 0.0, 128
    %657 = vxpose.xlu0.b32.cont [11/16] 0.0, 128
    %658 = vxpose.xlu0.b32.cont [12/16] 0.0, 128
    %659 = vxpose.xlu0.b32.cont [13/16] 0.0, 128
    %660 = vxpose.xlu0.b32.cont [14/16] 0.0, 128
    %661 = vxpose.xlu0.b32.cont [15/16] 0.0, 128
    %662 = vxpose.xlu0.b32.end [16/16] 0.0, 128
    %v663 = vpop.trf.xlu0
    %v664 = vpop.trf.xlu0
    %v665 = vpop.trf.xlu0
    %v666 = vpop.trf.xlu0
    %v667 = vpop.trf.xlu0
    %v668 = vpop.trf.xlu0
    %v669 = vpop.trf.xlu0
    %v670 = vpop.trf.xlu0
    %v671 = vpop.trf.xlu0
    %v672 = vpop.trf.xlu0
    %v673 = vpop.trf.xlu0
    %v674 = vpop.trf.xlu0
    %v675 = vpop.trf.xlu0
    %v676 = vpop.trf.xlu0
    %v677 = vpop.trf.xlu0
    %v678 = vpop.trf.xlu0
    %v680 = vsel %vm94, %v663, 0
    %682 = vmatpush.msra.mxu0 0.0
    %683 = vmatpush.msra.mxu0 0.0
    %684 = vmatpush.msra.mxu0 0.0
    %685 = vmatpush.msra.mxu0 0.0
    %686 = vmatpush.msra.mxu0 0.0
    %687 = vmatpush.msra.mxu0 0.0
    %688 = vmatpush.msra.mxu0 0.0
    %689 = vmatpush.msra.mxu0 0.0
    %690 = vmatpush.msra.mxu0 0.0
    %691 = vmatpush.msra.mxu0 0.0
    %692 = vmatpush.msra.mxu0 0.0
    %693 = vmatpush.msra.mxu0 0.0
    %694 = vmatpush.msra.mxu0 0.0
    %695 = vmatpush.msra.mxu0 0.0
    %696 = vmatpush.msra.mxu0 0.0
    %697 = vmatpush.msra.mxu0 %v643
    %698 = vmatmul.f32.gmra.mxu0 %v680
    %v699 = vpop.f32.mrf.mxu0
    %v700 = vadd.f32 0.0, %v699
    %701 = vdwg.mxu0
    %702 = vrot.lane.b32.xlu0 %v89, 96
    %v703 = vpop.permute.xlu0 %702
    %704 = vrot.lane.b32.xlu0 %v89, 104
    %v705 = vpop.permute.xlu0 %704
    %v706 = vsel %vm94, %v703, 0
    %v708 = vsel %vm94, %v705, 0
    %710 = vmatpush.xpose.msra.mxu0 0.0
    %711 = vmatpush.xpose.msra.mxu0 0.0
    %712 = vmatpush.xpose.msra.mxu0 0.0
    %713 = vmatpush.xpose.msra.mxu0 0.0
    %714 = vmatpush.xpose.msra.mxu0 0.0
    %715 = vmatpush.xpose.msra.mxu0 0.0
    %716 = vmatpush.xpose.msra.mxu0 0.0
    %717 = vmatpush.xpose.msra.mxu0 0.0
    %718 = vmatpush.xpose.msra.mxu0 0.0
    %719 = vmatpush.xpose.msra.mxu0 0.0
    %720 = vmatpush.xpose.msra.mxu0 0.0
    %721 = vmatpush.xpose.msra.mxu0 0.0
    %722 = vmatpush.xpose.msra.mxu0 0.0
    %723 = vmatpush.xpose.msra.mxu0 0.0
    %724 = vmatpush.xpose.msra.mxu0 0.0
    %725 = vmatpush.xpose.msra.mxu0 %v708
    %726 = vmatmul.f32.gmra.mxu0 %v706
    %v727 = vpop.f32.mrf.mxu0
    %v728 = vadd.f32 0.0, %v727
    %729 = vdwg.mxu0
    %v730 = vmul.f32 %v728, 0.35355338
    %v731 = vsel %vm94, %v730, -inf
    %v732 = vrot.slane %v731, 4
    %v733 = vmax.f32 %v731, %v732
    %v734 = vrot.slane %v733, 2
    %v735 = vmax.f32 %v733, %v734
    %v736 = vrot.slane %v735, 1
    %v737 = vmax.f32 %v735, %v736
    %v738 = vsub.f32 %v730, %v737
    %v739 = vmul.f32 %v738, 1.442695
    %v740 = vpow.pop %v739
    %v741 = vsel %vm94, %v740, 0.0
    %v742 = vrot.slane %v741, 4
    %v743 = vadd.f32 %v741, %v742
    %v744 = vrot.slane %v743, 2
    %v745 = vadd.f32 %v743, %v744
    %v746 = vrot.slane %v745, 1
    %v747 = vadd.f32 %v745, %v746
    %v748 = vrcp.pop %v747
    %v749 = vmul.f32 %v747, %v748
    %v750 = vsub.f32 1.0, %v749
    %v751 = vmul.f32 %v748, %v750
    %v752 = vadd.f32 %v748, %v751
    %vm753 = vweird.f32 %v747
    %vm754 = vweird.f32 %v748
    %vm755 = vmor %vm753, %vm754
    %v756 = vsel %vm755, %v748, %v752
    %v757 = vand.u32 2147483647, %v747
    %vm758 = vcmp.eq.f32.partialorder %v757, 8.507059e+37
    %v759 = vand.u32 %v747, 2147483648
    %v760 = vor.u32 1.1754944e-38, %v759
    %v761 = vsel %vm758, %v760, %v756
    %v762 = vmul.f32 %v740, %v761
    %763 = vrot.lane.b32.xlu0 %v89, 88
    %v764 = vpop.permute.xlu0 %763
    %766 = vxpose.xlu0.b32.start [1/16] %v764, 128
    %767 = vxpose.xlu0.b32.cont [2/16] 0.0, 128
    %768 = vxpose.xlu0.b32.cont [3/16] 0.0, 128
    %769 = vxpose.xlu0.b32.cont [4/16] 0.0, 128
    %770 = vxpose.xlu0.b32.cont [5/16] 0.0, 128
    %771 = vxpose.xlu0.b32.cont [6/16] 0.0, 128
    %772 = vxpose.xlu0.b32.cont [7/16] 0.0, 128
    %773 = vxpose.xlu0.b32.cont [8/16] 0.0, 128
    %774 = vxpose.xlu0.b32.cont [9/16] 0.0, 128
    %775 = vxpose.xlu0.b32.cont [10/16] 0.0, 128
    %776 = vxpose.xlu0.b32.cont [11/16] 0.0, 128
    %777 = vxpose.xlu0.b32.cont [12/16] 0.0, 128
    %778 = vxpose.xlu0.b32.cont [13/16] 0.0, 128
    %779 = vxpose.xlu0.b32.cont [14/16] 0.0, 128
    %780 = vxpose.xlu0.b32.cont [15/16] 0.0, 128
    %781 = vxpose.xlu0.b32.end [16/16] 0.0, 128
    %v782 = vpop.trf.xlu0
    %v783 = vpop.trf.xlu0
    %v784 = vpop.trf.xlu0
    %v785 = vpop.trf.xlu0
    %v786 = vpop.trf.xlu0
    %v787 = vpop.trf.xlu0
    %v788 = vpop.trf.xlu0
    %v789 = vpop.trf.xlu0
    %v790 = vpop.trf.xlu0
    %v791 = vpop.trf.xlu0
    %v792 = vpop.trf.xlu0
    %v793 = vpop.trf.xlu0
    %v794 = vpop.trf.xlu0
    %v795 = vpop.trf.xlu0
    %v796 = vpop.trf.xlu0
    %v797 = vpop.trf.xlu0
    %v799 = vsel %vm94, %v782, 0
    %801 = vmatpush.msra.mxu0 0.0
    %802 = vmatpush.msra.mxu0 0.0
    %803 = vmatpush.msra.mxu0 0.0
    %804 = vmatpush.msra.mxu0 0.0
    %805 = vmatpush.msra.mxu0 0.0
    %806 = vmatpush.msra.mxu0 0.0
    %807 = vmatpush.msra.mxu0 0.0
    %808 = vmatpush.msra.mxu0 0.0
    %809 = vmatpush.msra.mxu0 0.0
    %810 = vmatpush.msra.mxu0 0.0
    %811 = vmatpush.msra.mxu0 0.0
    %812 = vmatpush.msra.mxu0 0.0
    %813 = vmatpush.msra.mxu0 0.0
    %814 = vmatpush.msra.mxu0 0.0
    %815 = vmatpush.msra.mxu0 0.0
    %816 = vmatpush.msra.mxu0 %v762
    %817 = vmatmul.f32.gmra.mxu0 %v799
    %v818 = vpop.f32.mrf.mxu0
    %v819 = vadd.f32 0.0, %v818
    %820 = vdwg.mxu0
    %821 = vrot.lane.b32.xlu0 %v89, 72
    %v822 = vpop.permute.xlu0 %821
    %823 = vrot.lane.b32.xlu0 %v89, 80
    %v824 = vpop.permute.xlu0 %823
    %v825 = vsel %vm94, %v822, 0
    %v827 = vsel %vm94, %v824, 0
    %829 = vmatpush.xpose.msra.mxu0 0.0
    %830 = vmatpush.xpose.msra.mxu0 0.0
    %831 = vmatpush.xpose.msra.mxu0 0.0
    %832 = vmatpush.xpose.msra.mxu0 0.0
    %833 = vmatpush.xpose.msra.mxu0 0.0
    %834 = vmatpush.xpose.msra.mxu0 0.0
    %835 = vmatpush.xpose.msra.mxu0 0.0
    %836 = vmatpush.xpose.msra.mxu0 0.0
    %837 = vmatpush.xpose.msra.mxu0 0.0
    %838 = vmatpush.xpose.msra.mxu0 0.0
    %839 = vmatpush.xpose.msra.mxu0 0.0
    %840 = vmatpush.xpose.msra.mxu0 0.0
    %841 = vmatpush.xpose.msra.mxu0 0.0
    %842 = vmatpush.xpose.msra.mxu0 0.0
    %843 = vmatpush.xpose.msra.mxu0 0.0
    %844 = vmatpush.xpose.msra.mxu0 %v827
    %845 = vmatmul.f32.gmra.mxu0 %v825
    %v846 = vpop.f32.mrf.mxu0
    %v847 = vadd.f32 0.0, %v846
    %848 = vdwg.mxu0
    %v849 = vmul.f32 %v847, 0.35355338
    %v850 = vsel %vm94, %v849, -inf
    %v851 = vrot.slane %v850, 4
    %v852 = vmax.f32 %v850, %v851
    %v853 = vrot.slane %v852, 2
    %v854 = vmax.f32 %v852, %v853
    %v855 = vrot.slane %v854, 1
    %v856 = vmax.f32 %v854, %v855
    %v857 = vsub.f32 %v849, %v856
    %v858 = vmul.f32 %v857, 1.442695
    %v859 = vpow.pop %v858
    %v860 = vsel %vm94, %v859, 0.0
    %v861 = vrot.slane %v860, 4
    %v862 = vadd.f32 %v860, %v861
    %v863 = vrot.slane %v862, 2
    %v864 = vadd.f32 %v862, %v863
    %v865 = vrot.slane %v864, 1
    %v866 = vadd.f32 %v864, %v865
    %v867 = vrcp.pop %v866
    %v868 = vmul.f32 %v866, %v867
    %v869 = vsub.f32 1.0, %v868
    %v870 = vmul.f32 %v867, %v869
    %v871 = vadd.f32 %v867, %v870
    %vm872 = vweird.f32 %v866
    %vm873 = vweird.f32 %v867
    %vm874 = vmor %vm872, %vm873
    %v875 = vsel %vm874, %v867, %v871
    %v876 = vand.u32 2147483647, %v866
    %vm877 = vcmp.eq.f32.partialorder %v876, 8.507059e+37
    %v878 = vand.u32 %v866, 2147483648
    %v879 = vor.u32 1.1754944e-38, %v878
    %v880 = vsel %vm877, %v879, %v875
    %v881 = vmul.f32 %v859, %v880
    %882 = vrot.lane.b32.xlu0 %v89, 64
    %v883 = vpop.permute.xlu0 %882
    %885 = vxpose.xlu0.b32.start [1/16] %v883, 128
    %886 = vxpose.xlu0.b32.cont [2/16] 0.0, 128
    %887 = vxpose.xlu0.b32.cont [3/16] 0.0, 128
    %888 = vxpose.xlu0.b32.cont [4/16] 0.0, 128
    %889 = vxpose.xlu0.b32.cont [5/16] 0.0, 128
    %890 = vxpose.xlu0.b32.cont [6/16] 0.0, 128
    %891 = vxpose.xlu0.b32.cont [7/16] 0.0, 128
    %892 = vxpose.xlu0.b32.cont [8/16] 0.0, 128
    %893 = vxpose.xlu0.b32.cont [9/16] 0.0, 128
    %894 = vxpose.xlu0.b32.cont [10/16] 0.0, 128
    %895 = vxpose.xlu0.b32.cont [11/16] 0.0, 128
    %896 = vxpose.xlu0.b32.cont [12/16] 0.0, 128
    %897 = vxpose.xlu0.b32.cont [13/16] 0.0, 128
    %898 = vxpose.xlu0.b32.cont [14/16] 0.0, 128
    %899 = vxpose.xlu0.b32.cont [15/16] 0.0, 128
    %900 = vxpose.xlu0.b32.end [16/16] 0.0, 128
    %v901 = vpop.trf.xlu0
    %v902 = vpop.trf.xlu0
    %v903 = vpop.trf.xlu0
    %v904 = vpop.trf.xlu0
    %v905 = vpop.trf.xlu0
    %v906 = vpop.trf.xlu0
    %v907 = vpop.trf.xlu0
    %v908 = vpop.trf.xlu0
    %v909 = vpop.trf.xlu0
    %v910 = vpop.trf.xlu0
    %v911 = vpop.trf.xlu0
    %v912 = vpop.trf.xlu0
    %v913 = vpop.trf.xlu0
    %v914 = vpop.trf.xlu0
    %v915 = vpop.trf.xlu0
    %v916 = vpop.trf.xlu0
    %v918 = vsel %vm94, %v901, 0
    %920 = vmatpush.msra.mxu0 0.0
    %921 = vmatpush.msra.mxu0 0.0
    %922 = vmatpush.msra.mxu0 0.0
    %923 = vmatpush.msra.mxu0 0.0
    %924 = vmatpush.msra.mxu0 0.0
    %925 = vmatpush.msra.mxu0 0.0
    %926 = vmatpush.msra.mxu0 0.0
    %927 = vmatpush.msra.mxu0 0.0
    %928 = vmatpush.msra.mxu0 0.0
    %929 = vmatpush.msra.mxu0 0.0
    %930 = vmatpush.msra.mxu0 0.0
    %931 = vmatpush.msra.mxu0 0.0
    %932 = vmatpush.msra.mxu0 0.0
    %933 = vmatpush.msra.mxu0 0.0
    %934 = vmatpush.msra.mxu0 0.0
    %935 = vmatpush.msra.mxu0 %v881
    %936 = vmatmul.f32.gmra.mxu0 %v918
    %v937 = vpop.f32.mrf.mxu0
    %v938 = vadd.f32 0.0, %v937
    %939 = vdwg.mxu0
    %940 = vrot.lane.b32.xlu0 %v89, 48
    %v941 = vpop.permute.xlu0 %940
    %942 = vrot.lane.b32.xlu0 %v89, 56
    %v943 = vpop.permute.xlu0 %942
    %v944 = vsel %vm94, %v941, 0
    %v946 = vsel %vm94, %v943, 0
    %948 = vmatpush.xpose.msra.mxu0 0.0
    %949 = vmatpush.xpose.msra.mxu0 0.0
    %950 = vmatpush.xpose.msra.mxu0 0.0
    %951 = vmatpush.xpose.msra.mxu0 0.0
    %952 = vmatpush.xpose.msra.mxu0 0.0
    %953 = vmatpush.xpose.msra.mxu0 0.0
    %954 = vmatpush.xpose.msra.mxu0 0.0
    %955 = vmatpush.xpose.msra.mxu0 0.0
    %956 = vmatpush.xpose.msra.mxu0 0.0
    %957 = vmatpush.xpose.msra.mxu0 0.0
    %958 = vmatpush.xpose.msra.mxu0 0.0
    %959 = vmatpush.xpose.msra.mxu0 0.0
    %960 = vmatpush.xpose.msra.mxu0 0.0
    %961 = vmatpush.xpose.msra.mxu0 0.0
    %962 = vmatpush.xpose.msra.mxu0 0.0
    %963 = vmatpush.xpose.msra.mxu0 %v946
    %964 = vmatmul.f32.gmra.mxu0 %v944
    %v965 = vpop.f32.mrf.mxu0
    %v966 = vadd.f32 0.0, %v965
    %967 = vdwg.mxu0
    %v968 = vmul.f32 %v966, 0.35355338
    %v969 = vsel %vm94, %v968, -inf
    %v970 = vrot.slane %v969, 4
    %v971 = vmax.f32 %v969, %v970
    %v972 = vrot.slane %v971, 2
    %v973 = vmax.f32 %v971, %v972
    %v974 = vrot.slane %v973, 1
    %v975 = vmax.f32 %v973, %v974
    %v976 = vsub.f32 %v968, %v975
    %v977 = vmul.f32 %v976, 1.442695
    %v978 = vpow.pop %v977
    %v979 = vsel %vm94, %v978, 0.0
    %v980 = vrot.slane %v979, 4
    %v981 = vadd.f32 %v979, %v980
    %v982 = vrot.slane %v981, 2
    %v983 = vadd.f32 %v981, %v982
    %v984 = vrot.slane %v983, 1
    %v985 = vadd.f32 %v983, %v984
    %v986 = vrcp.pop %v985
    %v987 = vmul.f32 %v985, %v986
    %v988 = vsub.f32 1.0, %v987
    %v989 = vmul.f32 %v986, %v988
    %v990 = vadd.f32 %v986, %v989
    %vm991 = vweird.f32 %v985
    %vm992 = vweird.f32 %v986
    %vm993 = vmor %vm991, %vm992
    %v994 = vsel %vm993, %v986, %v990
    %v995 = vand.u32 2147483647, %v985
    %vm996 = vcmp.eq.f32.partialorder %v995, 8.507059e+37
    %v997 = vand.u32 %v985, 2147483648
    %v998 = vor.u32 1.1754944e-38, %v997
    %v999 = vsel %vm996, %v998, %v994
    %v1000 = vmul.f32 %v978, %v999
    %1001 = vrot.lane.b32.xlu0 %v89, 40
    %v1002 = vpop.permute.xlu0 %1001
    %1004 = vxpose.xlu0.b32.start [1/16] %v1002, 128
    %1005 = vxpose.xlu0.b32.cont [2/16] 0.0, 128
    %1006 = vxpose.xlu0.b32.cont [3/16] 0.0, 128
    %1007 = vxpose.xlu0.b32.cont [4/16] 0.0, 128
    %1008 = vxpose.xlu0.b32.cont [5/16] 0.0, 128
    %1009 = vxpose.xlu0.b32.cont [6/16] 0.0, 128
    %1010 = vxpose.xlu0.b32.cont [7/16] 0.0, 128
    %1011 = vxpose.xlu0.b32.cont [8/16] 0.0, 128
    %1012 = vxpose.xlu0.b32.cont [9/16] 0.0, 128
    %1013 = vxpose.xlu0.b32.cont [10/16] 0.0, 128
    %1014 = vxpose.xlu0.b32.cont [11/16] 0.0, 128
    %1015 = vxpose.xlu0.b32.cont [12/16] 0.0, 128
    %1016 = vxpose.xlu0.b32.cont [13/16] 0.0, 128
    %1017 = vxpose.xlu0.b32.cont [14/16] 0.0, 128
    %1018 = vxpose.xlu0.b32.cont [15/16] 0.0, 128
    %1019 = vxpose.xlu0.b32.end [16/16] 0.0, 128
    %v1020 = vpop.trf.xlu0
    %v1021 = vpop.trf.xlu0
    %v1022 = vpop.trf.xlu0
    %v1023 = vpop.trf.xlu0
    %v1024 = vpop.trf.xlu0
    %v1025 = vpop.trf.xlu0
    %v1026 = vpop.trf.xlu0
    %v1027 = vpop.trf.xlu0
    %v1028 = vpop.trf.xlu0
    %v1029 = vpop.trf.xlu0
    %v1030 = vpop.trf.xlu0
    %v1031 = vpop.trf.xlu0
    %v1032 = vpop.trf.xlu0
    %v1033 = vpop.trf.xlu0
    %v1034 = vpop.trf.xlu0
    %v1035 = vpop.trf.xlu0
    %v1037 = vsel %vm94, %v1020, 0
    %1039 = vmatpush.msra.mxu0 0.0
    %1040 = vmatpush.msra.mxu0 0.0
    %1041 = vmatpush.msra.mxu0 0.0
    %1042 = vmatpush.msra.mxu0 0.0
    %1043 = vmatpush.msra.mxu0 0.0
    %1044 = vmatpush.msra.mxu0 0.0
    %1045 = vmatpush.msra.mxu0 0.0
    %1046 = vmatpush.msra.mxu0 0.0
    %1047 = vmatpush.msra.mxu0 0.0
    %1048 = vmatpush.msra.mxu0 0.0
    %1049 = vmatpush.msra.mxu0 0.0
    %1050 = vmatpush.msra.mxu0 0.0
    %1051 = vmatpush.msra.mxu0 0.0
    %1052 = vmatpush.msra.mxu0 0.0
    %1053 = vmatpush.msra.mxu0 0.0
    %1054 = vmatpush.msra.mxu0 %v1000
    %1055 = vmatmul.f32.gmra.mxu0 %v1037
    %v1056 = vpop.f32.mrf.mxu0
    %v1057 = vadd.f32 0.0, %v1056
    %1058 = vdwg.mxu0
    %1060 = vrot.lane.b32.xlu0 %v819, 8
    %v1061 = vpop.permute.xlu0 %1060
    %1064 = vrot.lane.b32.xlu0 %v938, 16
    %v1065 = vpop.permute.xlu0 %1064
    %1068 = vrot.lane.b32.xlu0 %v1057, 24
    %v1069 = vpop.permute.xlu0 %1068
    %v1071 = vsel %vm94, %v700, %v1061
    %v1072 = vsel %vm580, %v1071, %v1065
    %v1073 = vsel %vm582, %v1072, %v1069
    %v1074 = vld [vmem:[%s4] sm:$0xff]
    %v1075 = vld [vmem:[%s4 + $0x8] sm:$0xff]
    %v1076 = vld [vmem:[%s4 + $0x10] sm:$0xff]
    %v1077 = vld [vmem:[%s4 + $0x18] sm:$0xff]
    %v1078 = vld [vmem:[%s5] sm:$0x1]
    %v1080 = vperm.slane %v1078, 0
    %v1083 = vsel %vm61, %v583, 0
    %v1086 = vsel %vm61, %v1073, 0
    %1088 = vmatpush.msra.mxu0 0.0
    %1089 = vmatpush.msra.mxu0 0.0
    %1090 = vmatpush.msra.mxu0 0.0
    %1091 = vmatpush.msra.mxu0 0.0
    %1092 = vmatpush.msra.mxu0 0.0
    %1093 = vmatpush.msra.mxu0 0.0
    %1094 = vmatpush.msra.mxu0 0.0
    %1095 = vmatpush.msra.mxu0 0.0
    %1096 = vmatpush.msra.mxu0 0.0
    %1097 = vmatpush.msra.mxu0 0.0
    %1098 = vmatpush.msra.mxu0 0.0
    %1099 = vmatpush.msra.mxu0 0.0
    %1100 = vmatpush.msra.mxu0 %v1077
    %1101 = vmatpush.msra.mxu0 %v1076
    %1102 = vmatpush.msra.mxu0 %v1075
    %1103 = vmatpush.msra.mxu0 %v1074
    %1104 = vmatmul.f32.gmra.mxu0 %v1083
    %v1105 = vpop.f32.mrf.mxu0
    %v1106 = vadd.f32 %v1080, %v1105
    %1107 = vmatmul.f32.gmra.mxu0 %v1086
    %v1108 = vpop.f32.mrf.mxu0
    %v1109 = vadd.f32 %v1080, %v1108
    %1110 = vdwg.mxu0
    %v1111 = vadd.f32 %v51, %v1106
    %v1112 = vadd.f32 %v52, %v1109
    %v1113 = vld [vmem:[%s10] sm:$0x1]
    %v1114 = vld [vmem:[%s11] sm:$0x1]
    %v1115 = vsel %vm61, %v1111, 0.0
    %1116 = vadd.xlane.f32.xlu0 %v1115
    %v1117 = vpop.xlane.xlu0 %1116
    %v1118 = vsel %vm61, %v1112, 0.0
    %1119 = vadd.xlane.f32.xlu0 %v1118
    %v1120 = vpop.xlane.xlu0 %1119
    %v1121 = vrcp.pop 32.0
    %v1122 = vmul.f32 32.0, %v1121
    %v1123 = vsub.f32 1.0, %v1122
    %v1124 = vmul.f32 %v1121, %v1123
    %v1125 = vadd.f32 %v1121, %v1124
    %vm1126 = vweird.f32 %v1121
    %v1127 = vsel %vm1126, %v1121, %v1125
    %v1128 = vmul.f32 %v1117, %v1127
    %v1129 = vmul.f32 %v1120, %v1127
    %v1130 = vsub.f32 %v1111, %v1128
    %v1131 = vsub.f32 %v1112, %v1129
    %v1132 = vmul.f32 %v1130, %v1130
    %v1133 = vmul.f32 %v1131, %v1131
    %v1134 = vsel %vm61, %v1132, 0.0
    %1135 = vadd.xlane.f32.xlu0 %v1134
    %v1136 = vpop.xlane.xlu0 %1135
    %v1137 = vsel %vm61, %v1133, 0.0
    %1138 = vadd.xlane.f32.xlu0 %v1137
    %v1139 = vpop.xlane.xlu0 %1138
    %v1140 = vmul.f32 %v1136, %v1127
    %v1141 = vmul.f32 %v1139, %v1127
    %v1142 = vadd.f32 %v1140, 1e-05
    %v1143 = vadd.f32 %v1141, 1e-05
    %v1144 = vrsqrt.pop %v1142
    %v1145 = vmul.f32 %v1144, %v1142
    %v1146 = vmul.f32 %v1145, %v1144
    %v1147 = vmul.f32 0.5, %v1146
    %v1148 = vsub.f32 1.5, %v1147
    %v1149 = vmul.f32 %v1144, %v1148
    %vm1150 = vweird.f32 %v1142
    %vm1151 = vweird.f32 %v1144
    %vm1152 = vmor %vm1150, %vm1151
    %v1153 = vsel %vm1152, %v1144, %v1149
    %v1154 = vrsqrt.pop %v1143
    %v1155 = vmul.f32 %v1154, %v1143
    %v1156 = vmul.f32 %v1155, %v1154
    %v1157 = vmul.f32 0.5, %v1156
    %v1158 = vsub.f32 1.5, %v1157
    %v1159 = vmul.f32 %v1154, %v1158
    %vm1160 = vweird.f32 %v1143
    %vm1161 = vweird.f32 %v1154
    %vm1162 = vmor %vm1160, %vm1161
    %v1163 = vsel %vm1162, %v1154, %v1159
    %v1164 = vmul.f32 %v1130, %v1153
    %v1165 = vmul.f32 %v1131, %v1163
    %v1167 = vperm.slane %v1113, 0
    %v1169 = vmul.f32 %v1164, %v1167
    %v1170 = vmul.f32 %v1165, %v1167
    %v1172 = vperm.slane %v1114, 0
    %v1174 = vadd.f32 %v1169, %v1172
    %v1175 = vadd.f32 %v1170, %v1172
    %v1176 = vld [vmem:[%s6] sm:$0xff]
    %v1177 = vld [vmem:[%s6 + $0x8] sm:$0xff]
    %v1178 = vld [vmem:[%s6 + $0x10] sm:$0xff]
    %v1179 = vld [vmem:[%s6 + $0x18] sm:$0xff]
    %v1180 = vld [vmem:[%s7] sm:$0x1]
    %v1182 = vperm.slane %v1180, 0
    %v1185 = vsel %vm61, %v1174, 0
    %v1188 = vsel %vm61, %v1175, 0
    %1190 = vmatpush.msra.mxu0 0.0
    %1191 = vmatpush.msra.mxu0 0.0
    %1192 = vmatpush.msra.mxu0 0.0
    %1193 = vmatpush.msra.mxu0 0.0
    %1194 = vmatpush.msra.mxu0 0.0
    %1195 = vmatpush.msra.mxu0 0.0
    %1196 = vmatpush.msra.mxu0 0.0
    %1197 = vmatpush.msra.mxu0 0.0
    %1198 = vmatpush.msra.mxu0 0.0
    %1199 = vmatpush.msra.mxu0 0.0
    %1200 = vmatpush.msra.mxu0 0.0
    %1201 = vmatpush.msra.mxu0 0.0
    %1202 = vmatpush.msra.mxu0 %v1179
    %1203 = vmatpush.msra.mxu0 %v1178
    %1204 = vmatpush.msra.mxu0 %v1177
    %1205 = vmatpush.msra.mxu0 %v1176
    %1206 = vmatmul.f32.gmra.mxu0 %v1185
    %v1207 = vpop.f32.mrf.mxu0
    %v1208 = vadd.f32 %v1182, %v1207
    %1209 = vmatmul.f32.gmra.mxu0 %v1188
    %v1210 = vpop.f32.mrf.mxu0
    %v1211 = vadd.f32 %v1182, %v1210
    %1212 = vdwg.mxu0
    %v1213 = vmax.f32 %v1208, 0.0
    %v1214 = vmax.f32 %v1211, 0.0
    %v1215 = vld [vmem:[%s8] sm:$0xff]
    %v1216 = vld [vmem:[%s8 + $0x8] sm:$0xff]
    %v1217 = vld [vmem:[%s8 + $0x10] sm:$0xff]
    %v1218 = vld [vmem:[%s8 + $0x18] sm:$0xff]
    %v1219 = vld [vmem:[%s8 + $0x20] sm:$0xff]
    %v1220 = vld [vmem:[%s8 + $0x28] sm:$0xff]
    %v1221 = vld [vmem:[%s8 + $0x30] sm:$0xff]
    %v1222 = vld [vmem:[%s8 + $0x38] sm:$0xff]
    %v1223 = vld [vmem:[%s8 + $0x40] sm:$0xff]
    %v1224 = vld [vmem:[%s8 + $0x48] sm:$0xff]
    %v1225 = vld [vmem:[%s8 + $0x50] sm:$0xff]
    %v1226 = vld [vmem:[%s8 + $0x58] sm:$0xff]
    %v1227 = vld [vmem:[%s8 + $0x60] sm:$0xff]
    %v1228 = vld [vmem:[%s8 + $0x68] sm:$0xff]
    %v1229 = vld [vmem:[%s8 + $0x70] sm:$0xff]
    %v1230 = vld [vmem:[%s8 + $0x78] sm:$0xff]
    %v1231 = vld [vmem:[%s9] sm:$0x1]
    %v1233 = vperm.slane %v1231, 0
    %1235 = vmatpush.msra.mxu0 %v1230
    %1236 = vmatpush.msra.mxu0 %v1229
    %1237 = vmatpush.msra.mxu0 %v1228
    %1238 = vmatpush.msra.mxu0 %v1227
    %1239 = vmatpush.msra.mxu0 %v1226
    %1240 = vmatpush.msra.mxu0 %v1225
    %1241 = vmatpush.msra.mxu0 %v1224
    %1242 = vmatpush.msra.mxu0 %v1223
    %1243 = vmatpush.msra.mxu0 %v1222
    %1244 = vmatpush.msra.mxu0 %v1221
    %1245 = vmatpush.msra.mxu0 %v1220
    %1246 = vmatpush.msra.mxu0 %v1219
    %1247 = vmatpush.msra.mxu0 %v1218
    %1248 = vmatpush.msra.mxu0 %v1217
    %1249 = vmatpush.msra.mxu0 %v1216
    %1250 = vmatpush.msra.mxu0 %v1215
    %1251 = vmatmul.f32.gmra.mxu0 %v1213
    %v1252 = vpop.f32.mrf.mxu0
    %v1253 = vadd.f32 %v1233, %v1252
    %1254 = vmatmul.f32.gmra.mxu0 %v1214
    %v1255 = vpop.f32.mrf.mxu0
    %v1256 = vadd.f32 %v1233, %v1255
    %1257 = vdwg.mxu0
    %v1258 = vadd.f32 %v1174, %v1253
    %v1259 = vadd.f32 %v1175, %v1256
    %v1260 = vld [vmem:[%s12] sm:$0x1]
    %v1261 = vld [vmem:[%s13] sm:$0x1]
    %v1262 = vsel %vm61, %v1258, 0.0
    %1263 = vadd.xlane.f32.xlu0 %v1262
    %v1264 = vpop.xlane.xlu0 %1263
    %v1265 = vsel %vm61, %v1259, 0.0
    %1266 = vadd.xlane.f32.xlu0 %v1265
    %v1267 = vpop.xlane.xlu0 %1266
    %v1268 = vmul.f32 %v1264, %v1127
    %v1269 = vmul.f32 %v1267, %v1127
    %v1270 = vsub.f32 %v1258, %v1268
    %v1271 = vsub.f32 %v1259, %v1269
    %v1272 = vmul.f32 %v1270, %v1270
    %v1273 = vmul.f32 %v1271, %v1271
    %v1274 = vsel %vm61, %v1272, 0.0
    %1275 = vadd.xlane.f32.xlu0 %v1274
    %v1276 = vpop.xlane.xlu0 %1275
    %v1277 = vsel %vm61, %v1273, 0.0
    %1278 = vadd.xlane.f32.xlu0 %v1277
    %v1279 = vpop.xlane.xlu0 %1278
    %v1280 = vmul.f32 %v1276, %v1127
    %v1281 = vmul.f32 %v1279, %v1127
    %v1282 = vadd.f32 %v1280, 1e-05
    %v1283 = vadd.f32 %v1281, 1e-05
    %v1284 = vrsqrt.pop %v1282
    %v1285 = vmul.f32 %v1284, %v1282
    %v1286 = vmul.f32 %v1285, %v1284
    %v1287 = vmul.f32 0.5, %v1286
    %v1288 = vsub.f32 1.5, %v1287
    %v1289 = vmul.f32 %v1284, %v1288
    %vm1290 = vweird.f32 %v1282
    %vm1291 = vweird.f32 %v1284
    %vm1292 = vmor %vm1290, %vm1291
    %v1293 = vsel %vm1292, %v1284, %v1289
    %v1294 = vrsqrt.pop %v1283
    %v1295 = vmul.f32 %v1294, %v1283
    %v1296 = vmul.f32 %v1295, %v1294
    %v1297 = vmul.f32 0.5, %v1296
    %v1298 = vsub.f32 1.5, %v1297
    %v1299 = vmul.f32 %v1294, %v1298
    %vm1300 = vweird.f32 %v1283
    %vm1301 = vweird.f32 %v1294
    %vm1302 = vmor %vm1300, %vm1301
    %v1303 = vsel %vm1302, %v1294, %v1299
    %v1304 = vmul.f32 %v1270, %v1293
    %v1305 = vmul.f32 %v1271, %v1303
    %v1307 = vperm.slane %v1260, 0
    %v1309 = vmul.f32 %v1304, %v1307
    %v1310 = vmul.f32 %v1305, %v1307
    %v1312 = vperm.slane %v1261, 0
    %v1314 = vadd.f32 %v1309, %v1312
    %v1315 = vadd.f32 %v1310, %v1312
    %s1316 = scalar_lea.vmem %s2, 32
    %v1317 = vld [vmem:[%s1316] sm:$0xff]
    %v1318 = vld [vmem:[%s1316 + $0x8] sm:$0xff]
    %v1319 = vld [vmem:[%s1316 + $0x10] sm:$0xff]
    %v1320 = vld [vmem:[%s1316 + $0x18] sm:$0xff]
    %s1321 = scalar_lea.vmem %s3, 1
    %v1322 = vld [vmem:[%s1321] sm:$0x1]
    %v1324 = vperm.slane %v1322, 0
    %v1327 = vsel %vm61, %v1314, 0
    %v1330 = vsel %vm61, %v1315, 0
    %1332 = vmatpush.msra.mxu0 0.0
    %1333 = vmatpush.msra.mxu0 0.0
    %1334 = vmatpush.msra.mxu0 0.0
    %1335 = vmatpush.msra.mxu0 0.0
    %1336 = vmatpush.msra.mxu0 0.0
    %1337 = vmatpush.msra.mxu0 0.0
    %1338 = vmatpush.msra.mxu0 0.0
    %1339 = vmatpush.msra.mxu0 0.0
    %1340 = vmatpush.msra.mxu0 0.0
    %1341 = vmatpush.msra.mxu0 0.0
    %1342 = vmatpush.msra.mxu0 0.0
    %1343 = vmatpush.msra.mxu0 0.0
    %1344 = vmatpush.msra.mxu0 %v1320
    %1345 = vmatpush.msra.mxu0 %v1319
    %1346 = vmatpush.msra.mxu0 %v1318
    %1347 = vmatpush.msra.mxu0 %v1317
    %1348 = vmatmul.f32.gmra.mxu0 %v1327
    %v1349 = vpop.f32.mrf.mxu0
    %v1350 = vadd.f32 %v1324, %v1349
    %1351 = vmatmul.f32.gmra.mxu0 %v1330
    %v1352 = vpop.f32.mrf.mxu0
    %v1353 = vadd.f32 %v1324, %v1352
    %1354 = vdwg.mxu0
    %1356 = vrot.lane.b32.xlu0 %v1350, 120
    %v1357 = vpop.permute.xlu0 %1356
    %v1358 = vsel %vm94, %v1357, 0
    %v1360 = vsel %vm94, %v1350, 0
    %1362 = vmatpush.xpose.msra.mxu0 0.0
    %1363 = vmatpush.xpose.msra.mxu0 0.0
    %1364 = vmatpush.xpose.msra.mxu0 0.0
    %1365 = vmatpush.xpose.msra.mxu0 0.0
    %1366 = vmatpush.xpose.msra.mxu0 0.0
    %1367 = vmatpush.xpose.msra.mxu0 0.0
    %1368 = vmatpush.xpose.msra.mxu0 0.0
    %1369 = vmatpush.xpose.msra.mxu0 0.0
    %1370 = vmatpush.xpose.msra.mxu0 0.0
    %1371 = vmatpush.xpose.msra.mxu0 0.0
    %1372 = vmatpush.xpose.msra.mxu0 0.0
    %1373 = vmatpush.xpose.msra.mxu0 0.0
    %1374 = vmatpush.xpose.msra.mxu0 0.0
    %1375 = vmatpush.xpose.msra.mxu0 0.0
    %1376 = vmatpush.xpose.msra.mxu0 0.0
    %1377 = vmatpush.xpose.msra.mxu0 %v1360
    %1378 = vmatmul.f32.gmra.mxu0 %v1358
    %v1379 = vpop.f32.mrf.mxu0
    %v1380 = vadd.f32 0.0, %v1379
    %1381 = vdwg.mxu0
    %v1382 = vmul.f32 %v1380, 0.35355338
    %v1383 = vsel %vm94, %v1382, -inf
    %v1384 = vrot.slane %v1383, 4
    %v1385 = vmax.f32 %v1383, %v1384
    %v1386 = vrot.slane %v1385, 2
    %v1387 = vmax.f32 %v1385, %v1386
    %v1388 = vrot.slane %v1387, 1
    %v1389 = vmax.f32 %v1387, %v1388
    %v1390 = vsub.f32 %v1382, %v1389
    %v1391 = vmul.f32 %v1390, 1.442695
    %v1392 = vpow.pop %v1391
    %v1393 = vsel %vm94, %v1392, 0.0
    %v1394 = vrot.slane %v1393, 4
    %v1395 = vadd.f32 %v1393, %v1394
    %v1396 = vrot.slane %v1395, 2
    %v1397 = vadd.f32 %v1395, %v1396
    %v1398 = vrot.slane %v1397, 1
    %v1399 = vadd.f32 %v1397, %v1398
    %v1400 = vrcp.pop %v1399
    %v1401 = vmul.f32 %v1399, %v1400
    %v1402 = vsub.f32 1.0, %v1401
    %v1403 = vmul.f32 %v1400, %v1402
    %v1404 = vadd.f32 %v1400, %v1403
    %vm1405 = vweird.f32 %v1399
    %vm1406 = vweird.f32 %v1400
    %vm1407 = vmor %vm1405, %vm1406
    %v1408 = vsel %vm1407, %v1400, %v1404
    %v1409 = vand.u32 2147483647, %v1399
    %vm1410 = vcmp.eq.f32.partialorder %v1409, 8.507059e+37
    %v1411 = vand.u32 %v1399, 2147483648
    %v1412 = vor.u32 1.1754944e-38, %v1411
    %v1413 = vsel %vm1410, %v1412, %v1408
    %v1414 = vmul.f32 %v1392, %v1413
    %1415 = vrot.lane.b32.xlu0 %v1350, 112
    %v1416 = vpop.permute.xlu0 %1415
    %1418 = vxpose.xlu0.b32.start [1/16] %v1416, 128
    %1419 = vxpose.xlu0.b32.cont [2/16] 0.0, 128
    %1420 = vxpose.xlu0.b32.cont [3/16] 0.0, 128
    %1421 = vxpose.xlu0.b32.cont [4/16] 0.0, 128
    %1422 = vxpose.xlu0.b32.cont [5/16] 0.0, 128
    %1423 = vxpose.xlu0.b32.cont [6/16] 0.0, 128
    %1424 = vxpose.xlu0.b32.cont [7/16] 0.0, 128
    %1425 = vxpose.xlu0.b32.cont [8/16] 0.0, 128
    %1426 = vxpose.xlu0.b32.cont [9/16] 0.0, 128
    %1427 = vxpose.xlu0.b32.cont [10/16] 0.0, 128
    %1428 = vxpose.xlu0.b32.cont [11/16] 0.0, 128
    %1429 = vxpose.xlu0.b32.cont [12/16] 0.0, 128
    %1430 = vxpose.xlu0.b32.cont [13/16] 0.0, 128
    %1431 = vxpose.xlu0.b32.cont [14/16] 0.0, 128
    %1432 = vxpose.xlu0.b32.cont [15/16] 0.0, 128
    %1433 = vxpose.xlu0.b32.end [16/16] 0.0, 128
    %v1434 = vpop.trf.xlu0
    %v1435 = vpop.trf.xlu0
    %v1436 = vpop.trf.xlu0
    %v1437 = vpop.trf.xlu0
    %v1438 = vpop.trf.xlu0
    %v1439 = vpop.trf.xlu0
    %v1440 = vpop.trf.xlu0
    %v1441 = vpop.trf.xlu0
    %v1442 = vpop.trf.xlu0
    %v1443 = vpop.trf.xlu0
    %v1444 = vpop.trf.xlu0
    %v1445 = vpop.trf.xlu0
    %v1446 = vpop.trf.xlu0
    %v1447 = vpop.trf.xlu0
    %v1448 = vpop.trf.xlu0
    %v1449 = vpop.trf.xlu0
    %v1451 = vsel %vm94, %v1434, 0
    %1453 = vmatpush.msra.mxu0 0.0
    %1454 = vmatpush.msra.mxu0 0.0
    %1455 = vmatpush.msra.mxu0 0.0
    %1456 = vmatpush.msra.mxu0 0.0
    %1457 = vmatpush.msra.mxu0 0.0
    %1458 = vmatpush.msra.mxu0 0.0
    %1459 = vmatpush.msra.mxu0 0.0
    %1460 = vmatpush.msra.mxu0 0.0
    %1461 = vmatpush.msra.mxu0 0.0
    %1462 = vmatpush.msra.mxu0 0.0
    %1463 = vmatpush.msra.mxu0 0.0
    %1464 = vmatpush.msra.mxu0 0.0
    %1465 = vmatpush.msra.mxu0 0.0
    %1466 = vmatpush.msra.mxu0 0.0
    %1467 = vmatpush.msra.mxu0 0.0
    %1468 = vmatpush.msra.mxu0 %v1414
    %1469 = vmatmul.f32.gmra.mxu0 %v1451
    %v1470 = vpop.f32.mrf.mxu0
    %v1471 = vadd.f32 0.0, %v1470
    %1472 = vdwg.mxu0
    %1473 = vrot.lane.b32.xlu0 %v1350, 96
    %v1474 = vpop.permute.xlu0 %1473
    %1475 = vrot.lane.b32.xlu0 %v1350, 104
    %v1476 = vpop.permute.xlu0 %1475
    %v1477 = vsel %vm94, %v1474, 0
    %v1479 = vsel %vm94, %v1476, 0
    %1481 = vmatpush.xpose.msra.mxu0 0.0
    %1482 = vmatpush.xpose.msra.mxu0 0.0
    %1483 = vmatpush.xpose.msra.mxu0 0.0
    %1484 = vmatpush.xpose.msra.mxu0 0.0
    %1485 = vmatpush.xpose.msra.mxu0 0.0
    %1486 = vmatpush.xpose.msra.mxu0 0.0
    %1487 = vmatpush.xpose.msra.mxu0 0.0
    %1488 = vmatpush.xpose.msra.mxu0 0.0
    %1489 = vmatpush.xpose.msra.mxu0 0.0
    %1490 = vmatpush.xpose.msra.mxu0 0.0
    %1491 = vmatpush.xpose.msra.mxu0 0.0
    %1492 = vmatpush.xpose.msra.mxu0 0.0
    %1493 = vmatpush.xpose.msra.mxu0 0.0
    %1494 = vmatpush.xpose.msra.mxu0 0.0
    %1495 = vmatpush.xpose.msra.mxu0 0.0
    %1496 = vmatpush.xpose.msra.mxu0 %v1479
    %1497 = vmatmul.f32.gmra.mxu0 %v1477
    %v1498 = vpop.f32.mrf.mxu0
    %v1499 = vadd.f32 0.0, %v1498
    %1500 = vdwg.mxu0
    %v1501 = vmul.f32 %v1499, 0.35355338
    %v1502 = vsel %vm94, %v1501, -inf
    %v1503 = vrot.slane %v1502, 4
    %v1504 = vmax.f32 %v1502, %v1503
    %v1505 = vrot.slane %v1504, 2
    %v1506 = vmax.f32 %v1504, %v1505
    %v1507 = vrot.slane %v1506, 1
    %v1508 = vmax.f32 %v1506, %v1507
    %v1509 = vsub.f32 %v1501, %v1508
    %v1510 = vmul.f32 %v1509, 1.442695
    %v1511 = vpow.pop %v1510
    %v1512 = vsel %vm94, %v1511, 0.0
    %v1513 = vrot.slane %v1512, 4
    %v1514 = vadd.f32 %v1512, %v1513
    %v1515 = vrot.slane %v1514, 2
    %v1516 = vadd.f32 %v1514, %v1515
    %v1517 = vrot.slane %v1516, 1
    %v1518 = vadd.f32 %v1516, %v1517
    %v1519 = vrcp.pop %v1518
    %v1520 = vmul.f32 %v1518, %v1519
    %v1521 = vsub.f32 1.0, %v1520
    %v1522 = vmul.f32 %v1519, %v1521
    %v1523 = vadd.f32 %v1519, %v1522
    %vm1524 = vweird.f32 %v1518
    %vm1525 = vweird.f32 %v1519
    %vm1526 = vmor %vm1524, %vm1525
    %v1527 = vsel %vm1526, %v1519, %v1523
    %v1528 = vand.u32 2147483647, %v1518
    %vm1529 = vcmp.eq.f32.partialorder %v1528, 8.507059e+37
    %v1530 = vand.u32 %v1518, 2147483648
    %v1531 = vor.u32 1.1754944e-38, %v1530
    %v1532 = vsel %vm1529, %v1531, %v1527
    %v1533 = vmul.f32 %v1511, %v1532
    %1534 = vrot.lane.b32.xlu0 %v1350, 88
    %v1535 = vpop.permute.xlu0 %1534
    %1537 = vxpose.xlu0.b32.start [1/16] %v1535, 128
    %1538 = vxpose.xlu0.b32.cont [2/16] 0.0, 128
    %1539 = vxpose.xlu0.b32.cont [3/16] 0.0, 128
    %1540 = vxpose.xlu0.b32.cont [4/16] 0.0, 128
    %1541 = vxpose.xlu0.b32.cont [5/16] 0.0, 128
    %1542 = vxpose.xlu0.b32.cont [6/16] 0.0, 128
    %1543 = vxpose.xlu0.b32.cont [7/16] 0.0, 128
    %1544 = vxpose.xlu0.b32.cont [8/16] 0.0, 128
    %1545 = vxpose.xlu0.b32.cont [9/16] 0.0, 128
    %1546 = vxpose.xlu0.b32.cont [10/16] 0.0, 128
    %1547 = vxpose.xlu0.b32.cont [11/16] 0.0, 128
    %1548 = vxpose.xlu0.b32.cont [12/16] 0.0, 128
    %1549 = vxpose.xlu0.b32.cont [13/16] 0.0, 128
    %1550 = vxpose.xlu0.b32.cont [14/16] 0.0, 128
    %1551 = vxpose.xlu0.b32.cont [15/16] 0.0, 128
    %1552 = vxpose.xlu0.b32.end [16/16] 0.0, 128
    %v1553 = vpop.trf.xlu0
    %v1554 = vpop.trf.xlu0
    %v1555 = vpop.trf.xlu0
    %v1556 = vpop.trf.xlu0
    %v1557 = vpop.trf.xlu0
    %v1558 = vpop.trf.xlu0
    %v1559 = vpop.trf.xlu0
    %v1560 = vpop.trf.xlu0
    %v1561 = vpop.trf.xlu0
    %v1562 = vpop.trf.xlu0
    %v1563 = vpop.trf.xlu0
    %v1564 = vpop.trf.xlu0
    %v1565 = vpop.trf.xlu0
    %v1566 = vpop.trf.xlu0
    %v1567 = vpop.trf.xlu0
    %v1568 = vpop.trf.xlu0
    %v1570 = vsel %vm94, %v1553, 0
    %1572 = vmatpush.msra.mxu0 0.0
    %1573 = vmatpush.msra.mxu0 0.0
    %1574 = vmatpush.msra.mxu0 0.0
    %1575 = vmatpush.msra.mxu0 0.0
    %1576 = vmatpush.msra.mxu0 0.0
    %1577 = vmatpush.msra.mxu0 0.0
    %1578 = vmatpush.msra.mxu0 0.0
    %1579 = vmatpush.msra.mxu0 0.0
    %1580 = vmatpush.msra.mxu0 0.0
    %1581 = vmatpush.msra.mxu0 0.0
    %1582 = vmatpush.msra.mxu0 0.0
    %1583 = vmatpush.msra.mxu0 0.0
    %1584 = vmatpush.msra.mxu0 0.0
    %1585 = vmatpush.msra.mxu0 0.0
    %1586 = vmatpush.msra.mxu0 0.0
    %1587 = vmatpush.msra.mxu0 %v1533
    %1588 = vmatmul.f32.gmra.mxu0 %v1570
    %v1589 = vpop.f32.mrf.mxu0
    %v1590 = vadd.f32 0.0, %v1589
    %1591 = vdwg.mxu0
    %1592 = vrot.lane.b32.xlu0 %v1350, 72
    %v1593 = vpop.permute.xlu0 %1592
    %1594 = vrot.lane.b32.xlu0 %v1350, 80
    %v1595 = vpop.permute.xlu0 %1594
    %v1596 = vsel %vm94, %v1593, 0
    %v1598 = vsel %vm94, %v1595, 0
    %1600 = vmatpush.xpose.msra.mxu0 0.0
    %1601 = vmatpush.xpose.msra.mxu0 0.0
    %1602 = vmatpush.xpose.msra.mxu0 0.0
    %1603 = vmatpush.xpose.msra.mxu0 0.0
    %1604 = vmatpush.xpose.msra.mxu0 0.0
    %1605 = vmatpush.xpose.msra.mxu0 0.0
    %1606 = vmatpush.xpose.msra.mxu0 0.0
    %1607 = vmatpush.xpose.msra.mxu0 0.0
    %1608 = vmatpush.xpose.msra.mxu0 0.0
    %1609 = vmatpush.xpose.msra.mxu0 0.0
    %1610 = vmatpush.xpose.msra.mxu0 0.0
    %1611 = vmatpush.xpose.msra.mxu0 0.0
    %1612 = vmatpush.xpose.msra.mxu0 0.0
    %1613 = vmatpush.xpose.msra.mxu0 0.0
    %1614 = vmatpush.xpose.msra.mxu0 0.0
    %1615 = vmatpush.xpose.msra.mxu0 %v1598
    %1616 = vmatmul.f32.gmra.mxu0 %v1596
    %v1617 = vpop.f32.mrf.mxu0
    %v1618 = vadd.f32 0.0, %v1617
    %1619 = vdwg.mxu0
    %v1620 = vmul.f32 %v1618, 0.35355338
    %v1621 = vsel %vm94, %v1620, -inf
    %v1622 = vrot.slane %v1621, 4
    %v1623 = vmax.f32 %v1621, %v1622
    %v1624 = vrot.slane %v1623, 2
    %v1625 = vmax.f32 %v1623, %v1624
    %v1626 = vrot.slane %v1625, 1
    %v1627 = vmax.f32 %v1625, %v1626
    %v1628 = vsub.f32 %v1620, %v1627
    %v1629 = vmul.f32 %v1628, 1.442695
    %v1630 = vpow.pop %v1629
    %v1631 = vsel %vm94, %v1630, 0.0
    %v1632 = vrot.slane %v1631, 4
    %v1633 = vadd.f32 %v1631, %v1632
    %v1634 = vrot.slane %v1633, 2
    %v1635 = vadd.f32 %v1633, %v1634
    %v1636 = vrot.slane %v1635, 1
    %v1637 = vadd.f32 %v1635, %v1636
    %v1638 = vrcp.pop %v1637
    %v1639 = vmul.f32 %v1637, %v1638
    %v1640 = vsub.f32 1.0, %v1639
    %v1641 = vmul.f32 %v1638, %v1640
    %v1642 = vadd.f32 %v1638, %v1641
    %vm1643 = vweird.f32 %v1637
    %vm1644 = vweird.f32 %v1638
    %vm1645 = vmor %vm1643, %vm1644
    %v1646 = vsel %vm1645, %v1638, %v1642
    %v1647 = vand.u32 2147483647, %v1637
    %vm1648 = vcmp.eq.f32.partialorder %v1647, 8.507059e+37
    %v1649 = vand.u32 %v1637, 2147483648
    %v1650 = vor.u32 1.1754944e-38, %v1649
    %v1651 = vsel %vm1648, %v1650, %v1646
    %v1652 = vmul.f32 %v1630, %v1651
    %1653 = vrot.lane.b32.xlu0 %v1350, 64
    %v1654 = vpop.permute.xlu0 %1653
    %1656 = vxpose.xlu0.b32.start [1/16] %v1654, 128
    %1657 = vxpose.xlu0.b32.cont [2/16] 0.0, 128
    %1658 = vxpose.xlu0.b32.cont [3/16] 0.0, 128
    %1659 = vxpose.xlu0.b32.cont [4/16] 0.0, 128
    %1660 = vxpose.xlu0.b32.cont [5/16] 0.0, 128
    %1661 = vxpose.xlu0.b32.cont [6/16] 0.0, 128
    %1662 = vxpose.xlu0.b32.cont [7/16] 0.0, 128
    %1663 = vxpose.xlu0.b32.cont [8/16] 0.0, 128
    %1664 = vxpose.xlu0.b32.cont [9/16] 0.0, 128
    %1665 = vxpose.xlu0.b32.cont [10/16] 0.0, 128
    %1666 = vxpose.xlu0.b32.cont [11/16] 0.0, 128
    %1667 = vxpose.xlu0.b32.cont [12/16] 0.0, 128
    %1668 = vxpose.xlu0.b32.cont [13/16] 0.0, 128
    %1669 = vxpose.xlu0.b32.cont [14/16] 0.0, 128
    %1670 = vxpose.xlu0.b32.cont [15/16] 0.0, 128
    %1671 = vxpose.xlu0.b32.end [16/16] 0.0, 128
    %v1672 = vpop.trf.xlu0
    %v1673 = vpop.trf.xlu0
    %v1674 = vpop.trf.xlu0
    %v1675 = vpop.trf.xlu0
    %v1676 = vpop.trf.xlu0
    %v1677 = vpop.trf.xlu0
    %v1678 = vpop.trf.xlu0
    %v1679 = vpop.trf.xlu0
    %v1680 = vpop.trf.xlu0
    %v1681 = vpop.trf.xlu0
    %v1682 = vpop.trf.xlu0
    %v1683 = vpop.trf.xlu0
    %v1684 = vpop.trf.xlu0
    %v1685 = vpop.trf.xlu0
    %v1686 = vpop.trf.xlu0
    %v1687 = vpop.trf.xlu0
    %v1689 = vsel %vm94, %v1672, 0
    %1691 = vmatpush.msra.mxu0 0.0
    %1692 = vmatpush.msra.mxu0 0.0
    %1693 = vmatpush.msra.mxu0 0.0
    %1694 = vmatpush.msra.mxu0 0.0
    %1695 = vmatpush.msra.mxu0 0.0
    %1696 = vmatpush.msra.mxu0 0.0
    %1697 = vmatpush.msra.mxu0 0.0
    %1698 = vmatpush.msra.mxu0 0.0
    %1699 = vmatpush.msra.mxu0 0.0
    %1700 = vmatpush.msra.mxu0 0.0
    %1701 = vmatpush.msra.mxu0 0.0
    %1702 = vmatpush.msra.mxu0 0.0
    %1703 = vmatpush.msra.mxu0 0.0
    %1704 = vmatpush.msra.mxu0 0.0
    %1705 = vmatpush.msra.mxu0 0.0
    %1706 = vmatpush.msra.mxu0 %v1652
    %1707 = vmatmul.f32.gmra.mxu0 %v1689
    %v1708 = vpop.f32.mrf.mxu0
    %v1709 = vadd.f32 0.0, %v1708
    %1710 = vdwg.mxu0
    %1711 = vrot.lane.b32.xlu0 %v1350, 48
    %v1712 = vpop.permute.xlu0 %1711
    %1713 = vrot.lane.b32.xlu0 %v1350, 56
    %v1714 = vpop.permute.xlu0 %1713
    %v1715 = vsel %vm94, %v1712, 0
    %v1717 = vsel %vm94, %v1714, 0
    %1719 = vmatpush.xpose.msra.mxu0 0.0
    %1720 = vmatpush.xpose.msra.mxu0 0.0
    %1721 = vmatpush.xpose.msra.mxu0 0.0
    %1722 = vmatpush.xpose.msra.mxu0 0.0
    %1723 = vmatpush.xpose.msra.mxu0 0.0
    %1724 = vmatpush.xpose.msra.mxu0 0.0
    %1725 = vmatpush.xpose.msra.mxu0 0.0
    %1726 = vmatpush.xpose.msra.mxu0 0.0
    %1727 = vmatpush.xpose.msra.mxu0 0.0
    %1728 = vmatpush.xpose.msra.mxu0 0.0
    %1729 = vmatpush.xpose.msra.mxu0 0.0
    %1730 = vmatpush.xpose.msra.mxu0 0.0
    %1731 = vmatpush.xpose.msra.mxu0 0.0
    %1732 = vmatpush.xpose.msra.mxu0 0.0
    %1733 = vmatpush.xpose.msra.mxu0 0.0
    %1734 = vmatpush.xpose.msra.mxu0 %v1717
    %1735 = vmatmul.f32.gmra.mxu0 %v1715
    %v1736 = vpop.f32.mrf.mxu0
    %v1737 = vadd.f32 0.0, %v1736
    %1738 = vdwg.mxu0
    %v1739 = vmul.f32 %v1737, 0.35355338
    %v1740 = vsel %vm94, %v1739, -inf
    %v1741 = vrot.slane %v1740, 4
    %v1742 = vmax.f32 %v1740, %v1741
    %v1743 = vrot.slane %v1742, 2
    %v1744 = vmax.f32 %v1742, %v1743
    %v1745 = vrot.slane %v1744, 1
    %v1746 = vmax.f32 %v1744, %v1745
    %v1747 = vsub.f32 %v1739, %v1746
    %v1748 = vmul.f32 %v1747, 1.442695
    %v1749 = vpow.pop %v1748
    %v1750 = vsel %vm94, %v1749, 0.0
    %v1751 = vrot.slane %v1750, 4
    %v1752 = vadd.f32 %v1750, %v1751
    %v1753 = vrot.slane %v1752, 2
    %v1754 = vadd.f32 %v1752, %v1753
    %v1755 = vrot.slane %v1754, 1
    %v1756 = vadd.f32 %v1754, %v1755
    %v1757 = vrcp.pop %v1756
    %v1758 = vmul.f32 %v1756, %v1757
    %v1759 = vsub.f32 1.0, %v1758
    %v1760 = vmul.f32 %v1757, %v1759
    %v1761 = vadd.f32 %v1757, %v1760
    %vm1762 = vweird.f32 %v1756
    %vm1763 = vweird.f32 %v1757
    %vm1764 = vmor %vm1762, %vm1763
    %v1765 = vsel %vm1764, %v1757, %v1761
    %v1766 = vand.u32 2147483647, %v1756
    %vm1767 = vcmp.eq.f32.partialorder %v1766, 8.507059e+37
    %v1768 = vand.u32 %v1756, 2147483648
    %v1769 = vor.u32 1.1754944e-38, %v1768
    %v1770 = vsel %vm1767, %v1769, %v1765
    %v1771 = vmul.f32 %v1749, %v1770
    %1772 = vrot.lane.b32.xlu0 %v1350, 40
    %v1773 = vpop.permute.xlu0 %1772
    %1775 = vxpose.xlu0.b32.start [1/16] %v1773, 128
    %1776 = vxpose.xlu0.b32.cont [2/16] 0.0, 128
    %1777 = vxpose.xlu0.b32.cont [3/16] 0.0, 128
    %1778 = vxpose.xlu0.b32.cont [4/16] 0.0, 128
    %1779 = vxpose.xlu0.b32.cont [5/16] 0.0, 128
    %1780 = vxpose.xlu0.b32.cont [6/16] 0.0, 128
    %1781 = vxpose.xlu0.b32.cont [7/16] 0.0, 128
    %1782 = vxpose.xlu0.b32.cont [8/16] 0.0, 128
    %1783 = vxpose.xlu0.b32.cont [9/16] 0.0, 128
    %1784 = vxpose.xlu0.b32.cont [10/16] 0.0, 128
    %1785 = vxpose.xlu0.b32.cont [11/16] 0.0, 128
    %1786 = vxpose.xlu0.b32.cont [12/16] 0.0, 128
    %1787 = vxpose.xlu0.b32.cont [13/16] 0.0, 128
    %1788 = vxpose.xlu0.b32.cont [14/16] 0.0, 128
    %1789 = vxpose.xlu0.b32.cont [15/16] 0.0, 128
    %1790 = vxpose.xlu0.b32.end [16/16] 0.0, 128
    %v1791 = vpop.trf.xlu0
    %v1792 = vpop.trf.xlu0
    %v1793 = vpop.trf.xlu0
    %v1794 = vpop.trf.xlu0
    %v1795 = vpop.trf.xlu0
    %v1796 = vpop.trf.xlu0
    %v1797 = vpop.trf.xlu0
    %v1798 = vpop.trf.xlu0
    %v1799 = vpop.trf.xlu0
    %v1800 = vpop.trf.xlu0
    %v1801 = vpop.trf.xlu0
    %v1802 = vpop.trf.xlu0
    %v1803 = vpop.trf.xlu0
    %v1804 = vpop.trf.xlu0
    %v1805 = vpop.trf.xlu0
    %v1806 = vpop.trf.xlu0
    %v1808 = vsel %vm94, %v1791, 0
    %1810 = vmatpush.msra.mxu0 0.0
    %1811 = vmatpush.msra.mxu0 0.0
    %1812 = vmatpush.msra.mxu0 0.0
    %1813 = vmatpush.msra.mxu0 0.0
    %1814 = vmatpush.msra.mxu0 0.0
    %1815 = vmatpush.msra.mxu0 0.0
    %1816 = vmatpush.msra.mxu0 0.0
    %1817 = vmatpush.msra.mxu0 0.0
    %1818 = vmatpush.msra.mxu0 0.0
    %1819 = vmatpush.msra.mxu0 0.0
    %1820 = vmatpush.msra.mxu0 0.0
    %1821 = vmatpush.msra.mxu0 0.0
    %1822 = vmatpush.msra.mxu0 0.0
    %1823 = vmatpush.msra.mxu0 0.0
    %1824 = vmatpush.msra.mxu0 0.0
    %1825 = vmatpush.msra.mxu0 %v1771
    %1826 = vmatmul.f32.gmra.mxu0 %v1808
    %v1827 = vpop.f32.mrf.mxu0
    %v1828 = vadd.f32 0.0, %v1827
    %1829 = vdwg.mxu0
    %1831 = vrot.lane.b32.xlu0 %v1590, 8
    %v1832 = vpop.permute.xlu0 %1831
    %1835 = vrot.lane.b32.xlu0 %v1709, 16
    %v1836 = vpop.permute.xlu0 %1835
    %1839 = vrot.lane.b32.xlu0 %v1828, 24
    %v1840 = vpop.permute.xlu0 %1839
    %v1842 = vsel %vm94, %v1471, %v1832
    %v1843 = vsel %vm580, %v1842, %v1836
    %v1844 = vsel %vm582, %v1843, %v1840
    %1846 = vrot.lane.b32.xlu0 %v1353, 120
    %v1847 = vpop.permute.xlu0 %1846
    %v1848 = vsel %vm94, %v1847, 0
    %v1850 = vsel %vm94, %v1353, 0
    %1852 = vmatpush.xpose.msra.mxu0 0.0
    %1853 = vmatpush.xpose.msra.mxu0 0.0
    %1854 = vmatpush.xpose.msra.mxu0 0.0
    %1855 = vmatpush.xpose.msra.mxu0 0.0
    %1856 = vmatpush.xpose.msra.mxu0 0.0
    %1857 = vmatpush.xpose.msra.mxu0 0.0
    %1858 = vmatpush.xpose.msra.mxu0 0.0
    %1859 = vmatpush.xpose.msra.mxu0 0.0
    %1860 = vmatpush.xpose.msra.mxu0 0.0
    %1861 = vmatpush.xpose.msra.mxu0 0.0
    %1862 = vmatpush.xpose.msra.mxu0 0.0
    %1863 = vmatpush.xpose.msra.mxu0 0.0
    %1864 = vmatpush.xpose.msra.mxu0 0.0
    %1865 = vmatpush.xpose.msra.mxu0 0.0
    %1866 = vmatpush.xpose.msra.mxu0 0.0
    %1867 = vmatpush.xpose.msra.mxu0 %v1850
    %1868 = vmatmul.f32.gmra.mxu0 %v1848
    %v1869 = vpop.f32.mrf.mxu0
    %v1870 = vadd.f32 0.0, %v1869
    %1871 = vdwg.mxu0
    %v1872 = vmul.f32 %v1870, 0.35355338
    %v1873 = vsel %vm94, %v1872, -inf
    %v1874 = vrot.slane %v1873, 4
    %v1875 = vmax.f32 %v1873, %v1874
    %v1876 = vrot.slane %v1875, 2
    %v1877 = vmax.f32 %v1875, %v1876
    %v1878 = vrot.slane %v1877, 1
    %v1879 = vmax.f32 %v1877, %v1878
    %v1880 = vsub.f32 %v1872, %v1879
    %v1881 = vmul.f32 %v1880, 1.442695
    %v1882 = vpow.pop %v1881
    %v1883 = vsel %vm94, %v1882, 0.0
    %v1884 = vrot.slane %v1883, 4
    %v1885 = vadd.f32 %v1883, %v1884
    %v1886 = vrot.slane %v1885, 2
    %v1887 = vadd.f32 %v1885, %v1886
    %v1888 = vrot.slane %v1887, 1
    %v1889 = vadd.f32 %v1887, %v1888
    %v1890 = vrcp.pop %v1889
    %v1891 = vmul.f32 %v1889, %v1890
    %v1892 = vsub.f32 1.0, %v1891
    %v1893 = vmul.f32 %v1890, %v1892
    %v1894 = vadd.f32 %v1890, %v1893
    %vm1895 = vweird.f32 %v1889
    %vm1896 = vweird.f32 %v1890
    %vm1897 = vmor %vm1895, %vm1896
    %v1898 = vsel %vm1897, %v1890, %v1894
    %v1899 = vand.u32 2147483647, %v1889
    %vm1900 = vcmp.eq.f32.partialorder %v1899, 8.507059e+37
    %v1901 = vand.u32 %v1889, 2147483648
    %v1902 = vor.u32 1.1754944e-38, %v1901
    %v1903 = vsel %vm1900, %v1902, %v1898
    %v1904 = vmul.f32 %v1882, %v1903
    %1905 = vrot.lane.b32.xlu0 %v1353, 112
    %v1906 = vpop.permute.xlu0 %1905
    %1908 = vxpose.xlu0.b32.start [1/16] %v1906, 128
    %1909 = vxpose.xlu0.b32.cont [2/16] 0.0, 128
    %1910 = vxpose.xlu0.b32.cont [3/16] 0.0, 128
    %1911 = vxpose.xlu0.b32.cont [4/16] 0.0, 128
    %1912 = vxpose.xlu0.b32.cont [5/16] 0.0, 128
    %1913 = vxpose.xlu0.b32.cont [6/16] 0.0, 128
    %1914 = vxpose.xlu0.b32.cont [7/16] 0.0, 128
    %1915 = vxpose.xlu0.b32.cont [8/16] 0.0, 128
    %1916 = vxpose.xlu0.b32.cont [9/16] 0.0, 128
    %1917 = vxpose.xlu0.b32.cont [10/16] 0.0, 128
    %1918 = vxpose.xlu0.b32.cont [11/16] 0.0, 128
    %1919 = vxpose.xlu0.b32.cont [12/16] 0.0, 128
    %1920 = vxpose.xlu0.b32.cont [13/16] 0.0, 128
    %1921 = vxpose.xlu0.b32.cont [14/16] 0.0, 128
    %1922 = vxpose.xlu0.b32.cont [15/16] 0.0, 128
    %1923 = vxpose.xlu0.b32.end [16/16] 0.0, 128
    %v1924 = vpop.trf.xlu0
    %v1925 = vpop.trf.xlu0
    %v1926 = vpop.trf.xlu0
    %v1927 = vpop.trf.xlu0
    %v1928 = vpop.trf.xlu0
    %v1929 = vpop.trf.xlu0
    %v1930 = vpop.trf.xlu0
    %v1931 = vpop.trf.xlu0
    %v1932 = vpop.trf.xlu0
    %v1933 = vpop.trf.xlu0
    %v1934 = vpop.trf.xlu0
    %v1935 = vpop.trf.xlu0
    %v1936 = vpop.trf.xlu0
    %v1937 = vpop.trf.xlu0
    %v1938 = vpop.trf.xlu0
    %v1939 = vpop.trf.xlu0
    %v1941 = vsel %vm94, %v1924, 0
    %1943 = vmatpush.msra.mxu0 0.0
    %1944 = vmatpush.msra.mxu0 0.0
    %1945 = vmatpush.msra.mxu0 0.0
    %1946 = vmatpush.msra.mxu0 0.0
    %1947 = vmatpush.msra.mxu0 0.0
    %1948 = vmatpush.msra.mxu0 0.0
    %1949 = vmatpush.msra.mxu0 0.0
    %1950 = vmatpush.msra.mxu0 0.0
    %1951 = vmatpush.msra.mxu0 0.0
    %1952 = vmatpush.msra.mxu0 0.0
    %1953 = vmatpush.msra.mxu0 0.0
    %1954 = vmatpush.msra.mxu0 0.0
    %1955 = vmatpush.msra.mxu0 0.0
    %1956 = vmatpush.msra.mxu0 0.0
    %1957 = vmatpush.msra.mxu0 0.0
    %1958 = vmatpush.msra.mxu0 %v1904
    %1959 = vmatmul.f32.gmra.mxu0 %v1941
    %v1960 = vpop.f32.mrf.mxu0
    %v1961 = vadd.f32 0.0, %v1960
    %1962 = vdwg.mxu0
    %1963 = vrot.lane.b32.xlu0 %v1353, 96
    %v1964 = vpop.permute.xlu0 %1963
    %1965 = vrot.lane.b32.xlu0 %v1353, 104
    %v1966 = vpop.permute.xlu0 %1965
    %v1967 = vsel %vm94, %v1964, 0
    %v1969 = vsel %vm94, %v1966, 0
    %1971 = vmatpush.xpose.msra.mxu0 0.0
    %1972 = vmatpush.xpose.msra.mxu0 0.0
    %1973 = vmatpush.xpose.msra.mxu0 0.0
    %1974 = vmatpush.xpose.msra.mxu0 0.0
    %1975 = vmatpush.xpose.msra.mxu0 0.0
    %1976 = vmatpush.xpose.msra.mxu0 0.0
    %1977 = vmatpush.xpose.msra.mxu0 0.0
    %1978 = vmatpush.xpose.msra.mxu0 0.0
    %1979 = vmatpush.xpose.msra.mxu0 0.0
    %1980 = vmatpush.xpose.msra.mxu0 0.0
    %1981 = vmatpush.xpose.msra.mxu0 0.0
    %1982 = vmatpush.xpose.msra.mxu0 0.0
    %1983 = vmatpush.xpose.msra.mxu0 0.0
    %1984 = vmatpush.xpose.msra.mxu0 0.0
    %1985 = vmatpush.xpose.msra.mxu0 0.0
    %1986 = vmatpush.xpose.msra.mxu0 %v1969
    %1987 = vmatmul.f32.gmra.mxu0 %v1967
    %v1988 = vpop.f32.mrf.mxu0
    %v1989 = vadd.f32 0.0, %v1988
    %1990 = vdwg.mxu0
    %v1991 = vmul.f32 %v1989, 0.35355338
    %v1992 = vsel %vm94, %v1991, -inf
    %v1993 = vrot.slane %v1992, 4
    %v1994 = vmax.f32 %v1992, %v1993
    %v1995 = vrot.slane %v1994, 2
    %v1996 = vmax.f32 %v1994, %v1995
    %v1997 = vrot.slane %v1996, 1
    %v1998 = vmax.f32 %v1996, %v1997
    %v1999 = vsub.f32 %v1991, %v1998
    %v2000 = vmul.f32 %v1999, 1.442695
    %v2001 = vpow.pop %v2000
    %v2002 = vsel %vm94, %v2001, 0.0
    %v2003 = vrot.slane %v2002, 4
    %v2004 = vadd.f32 %v2002, %v2003
    %v2005 = vrot.slane %v2004, 2
    %v2006 = vadd.f32 %v2004, %v2005
    %v2007 = vrot.slane %v2006, 1
    %v2008 = vadd.f32 %v2006, %v2007
    %v2009 = vrcp.pop %v2008
    %v2010 = vmul.f32 %v2008, %v2009
    %v2011 = vsub.f32 1.0, %v2010
    %v2012 = vmul.f32 %v2009, %v2011
    %v2013 = vadd.f32 %v2009, %v2012
    %vm2014 = vweird.f32 %v2008
    %vm2015 = vweird.f32 %v2009
    %vm2016 = vmor %vm2014, %vm2015
    %v2017 = vsel %vm2016, %v2009, %v2013
    %v2018 = vand.u32 2147483647, %v2008
    %vm2019 = vcmp.eq.f32.partialorder %v2018, 8.507059e+37
    %v2020 = vand.u32 %v2008, 2147483648
    %v2021 = vor.u32 1.1754944e-38, %v2020
    %v2022 = vsel %vm2019, %v2021, %v2017
    %v2023 = vmul.f32 %v2001, %v2022
    %2024 = vrot.lane.b32.xlu0 %v1353, 88
    %v2025 = vpop.permute.xlu0 %2024
    %2027 = vxpose.xlu0.b32.start [1/16] %v2025, 128
    %2028 = vxpose.xlu0.b32.cont [2/16] 0.0, 128
    %2029 = vxpose.xlu0.b32.cont [3/16] 0.0, 128
    %2030 = vxpose.xlu0.b32.cont [4/16] 0.0, 128
    %2031 = vxpose.xlu0.b32.cont [5/16] 0.0, 128
    %2032 = vxpose.xlu0.b32.cont [6/16] 0.0, 128
    %2033 = vxpose.xlu0.b32.cont [7/16] 0.0, 128
    %2034 = vxpose.xlu0.b32.cont [8/16] 0.0, 128
    %2035 = vxpose.xlu0.b32.cont [9/16] 0.0, 128
    %2036 = vxpose.xlu0.b32.cont [10/16] 0.0, 128
    %2037 = vxpose.xlu0.b32.cont [11/16] 0.0, 128
    %2038 = vxpose.xlu0.b32.cont [12/16] 0.0, 128
    %2039 = vxpose.xlu0.b32.cont [13/16] 0.0, 128
    %2040 = vxpose.xlu0.b32.cont [14/16] 0.0, 128
    %2041 = vxpose.xlu0.b32.cont [15/16] 0.0, 128
    %2042 = vxpose.xlu0.b32.end [16/16] 0.0, 128
    %v2043 = vpop.trf.xlu0
    %v2044 = vpop.trf.xlu0
    %v2045 = vpop.trf.xlu0
    %v2046 = vpop.trf.xlu0
    %v2047 = vpop.trf.xlu0
    %v2048 = vpop.trf.xlu0
    %v2049 = vpop.trf.xlu0
    %v2050 = vpop.trf.xlu0
    %v2051 = vpop.trf.xlu0
    %v2052 = vpop.trf.xlu0
    %v2053 = vpop.trf.xlu0
    %v2054 = vpop.trf.xlu0
    %v2055 = vpop.trf.xlu0
    %v2056 = vpop.trf.xlu0
    %v2057 = vpop.trf.xlu0
    %v2058 = vpop.trf.xlu0
    %v2060 = vsel %vm94, %v2043, 0
    %2062 = vmatpush.msra.mxu0 0.0
    %2063 = vmatpush.msra.mxu0 0.0
    %2064 = vmatpush.msra.mxu0 0.0
    %2065 = vmatpush.msra.mxu0 0.0
    %2066 = vmatpush.msra.mxu0 0.0
    %2067 = vmatpush.msra.mxu0 0.0
    %2068 = vmatpush.msra.mxu0 0.0
    %2069 = vmatpush.msra.mxu0 0.0
    %2070 = vmatpush.msra.mxu0 0.0
    %2071 = vmatpush.msra.mxu0 0.0
    %2072 = vmatpush.msra.mxu0 0.0
    %2073 = vmatpush.msra.mxu0 0.0
    %2074 = vmatpush.msra.mxu0 0.0
    %2075 = vmatpush.msra.mxu0 0.0
    %2076 = vmatpush.msra.mxu0 0.0
    %2077 = vmatpush.msra.mxu0 %v2023
    %2078 = vmatmul.f32.gmra.mxu0 %v2060
    %v2079 = vpop.f32.mrf.mxu0
    %v2080 = vadd.f32 0.0, %v2079
    %2081 = vdwg.mxu0
    %2082 = vrot.lane.b32.xlu0 %v1353, 72
    %v2083 = vpop.permute.xlu0 %2082
    %2084 = vrot.lane.b32.xlu0 %v1353, 80
    %v2085 = vpop.permute.xlu0 %2084
    %v2086 = vsel %vm94, %v2083, 0
    %v2088 = vsel %vm94, %v2085, 0
    %2090 = vmatpush.xpose.msra.mxu0 0.0
    %2091 = vmatpush.xpose.msra.mxu0 0.0
    %2092 = vmatpush.xpose.msra.mxu0 0.0
    %2093 = vmatpush.xpose.msra.mxu0 0.0
    %2094 = vmatpush.xpose.msra.mxu0 0.0
    %2095 = vmatpush.xpose.msra.mxu0 0.0
    %2096 = vmatpush.xpose.msra.mxu0 0.0
    %2097 = vmatpush.xpose.msra.mxu0 0.0
    %2098 = vmatpush.xpose.msra.mxu0 0.0
    %2099 = vmatpush.xpose.msra.mxu0 0.0
    %2100 = vmatpush.xpose.msra.mxu0 0.0
    %2101 = vmatpush.xpose.msra.mxu0 0.0
    %2102 = vmatpush.xpose.msra.mxu0 0.0
    %2103 = vmatpush.xpose.msra.mxu0 0.0
    %2104 = vmatpush.xpose.msra.mxu0 0.0
    %2105 = vmatpush.xpose.msra.mxu0 %v2088
    %2106 = vmatmul.f32.gmra.mxu0 %v2086
    %v2107 = vpop.f32.mrf.mxu0
    %v2108 = vadd.f32 0.0, %v2107
    %2109 = vdwg.mxu0
    %v2110 = vmul.f32 %v2108, 0.35355338
    %v2111 = vsel %vm94, %v2110, -inf
    %v2112 = vrot.slane %v2111, 4
    %v2113 = vmax.f32 %v2111, %v2112
    %v2114 = vrot.slane %v2113, 2
    %v2115 = vmax.f32 %v2113, %v2114
    %v2116 = vrot.slane %v2115, 1
    %v2117 = vmax.f32 %v2115, %v2116
    %v2118 = vsub.f32 %v2110, %v2117
    %v2119 = vmul.f32 %v2118, 1.442695
    %v2120 = vpow.pop %v2119
    %v2121 = vsel %vm94, %v2120, 0.0
    %v2122 = vrot.slane %v2121, 4
    %v2123 = vadd.f32 %v2121, %v2122
    %v2124 = vrot.slane %v2123, 2
    %v2125 = vadd.f32 %v2123, %v2124
    %v2126 = vrot.slane %v2125, 1
    %v2127 = vadd.f32 %v2125, %v2126
    %v2128 = vrcp.pop %v2127
    %v2129 = vmul.f32 %v2127, %v2128
    %v2130 = vsub.f32 1.0, %v2129
    %v2131 = vmul.f32 %v2128, %v2130
    %v2132 = vadd.f32 %v2128, %v2131
    %vm2133 = vweird.f32 %v2127
    %vm2134 = vweird.f32 %v2128
    %vm2135 = vmor %vm2133, %vm2134
    %v2136 = vsel %vm2135, %v2128, %v2132
    %v2137 = vand.u32 2147483647, %v2127
    %vm2138 = vcmp.eq.f32.partialorder %v2137, 8.507059e+37
    %v2139 = vand.u32 %v2127, 2147483648
    %v2140 = vor.u32 1.1754944e-38, %v2139
    %v2141 = vsel %vm2138, %v2140, %v2136
    %v2142 = vmul.f32 %v2120, %v2141
    %2143 = vrot.lane.b32.xlu0 %v1353, 64
    %v2144 = vpop.permute.xlu0 %2143
    %2146 = vxpose.xlu0.b32.start [1/16] %v2144, 128
    %2147 = vxpose.xlu0.b32.cont [2/16] 0.0, 128
    %2148 = vxpose.xlu0.b32.cont [3/16] 0.0, 128
    %2149 = vxpose.xlu0.b32.cont [4/16] 0.0, 128
    %2150 = vxpose.xlu0.b32.cont [5/16] 0.0, 128
    %2151 = vxpose.xlu0.b32.cont [6/16] 0.0, 128
    %2152 = vxpose.xlu0.b32.cont [7/16] 0.0, 128
    %2153 = vxpose.xlu0.b32.cont [8/16] 0.0, 128
    %2154 = vxpose.xlu0.b32.cont [9/16] 0.0, 128
    %2155 = vxpose.xlu0.b32.cont [10/16] 0.0, 128
    %2156 = vxpose.xlu0.b32.cont [11/16] 0.0, 128
    %2157 = vxpose.xlu0.b32.cont [12/16] 0.0, 128
    %2158 = vxpose.xlu0.b32.cont [13/16] 0.0, 128
    %2159 = vxpose.xlu0.b32.cont [14/16] 0.0, 128
    %2160 = vxpose.xlu0.b32.cont [15/16] 0.0, 128
    %2161 = vxpose.xlu0.b32.end [16/16] 0.0, 128
    %v2162 = vpop.trf.xlu0
    %v2163 = vpop.trf.xlu0
    %v2164 = vpop.trf.xlu0
    %v2165 = vpop.trf.xlu0
    %v2166 = vpop.trf.xlu0
    %v2167 = vpop.trf.xlu0
    %v2168 = vpop.trf.xlu0
    %v2169 = vpop.trf.xlu0
    %v2170 = vpop.trf.xlu0
    %v2171 = vpop.trf.xlu0
    %v2172 = vpop.trf.xlu0
    %v2173 = vpop.trf.xlu0
    %v2174 = vpop.trf.xlu0
    %v2175 = vpop.trf.xlu0
    %v2176 = vpop.trf.xlu0
    %v2177 = vpop.trf.xlu0
    %v2179 = vsel %vm94, %v2162, 0
    %2181 = vmatpush.msra.mxu0 0.0
    %2182 = vmatpush.msra.mxu0 0.0
    %2183 = vmatpush.msra.mxu0 0.0
    %2184 = vmatpush.msra.mxu0 0.0
    %2185 = vmatpush.msra.mxu0 0.0
    %2186 = vmatpush.msra.mxu0 0.0
    %2187 = vmatpush.msra.mxu0 0.0
    %2188 = vmatpush.msra.mxu0 0.0
    %2189 = vmatpush.msra.mxu0 0.0
    %2190 = vmatpush.msra.mxu0 0.0
    %2191 = vmatpush.msra.mxu0 0.0
    %2192 = vmatpush.msra.mxu0 0.0
    %2193 = vmatpush.msra.mxu0 0.0
    %2194 = vmatpush.msra.mxu0 0.0
    %2195 = vmatpush.msra.mxu0 0.0
    %2196 = vmatpush.msra.mxu0 %v2142
    %2197 = vmatmul.f32.gmra.mxu0 %v2179
    %v2198 = vpop.f32.mrf.mxu0
    %v2199 = vadd.f32 0.0, %v2198
    %2200 = vdwg.mxu0
    %2201 = vrot.lane.b32.xlu0 %v1353, 48
    %v2202 = vpop.permute.xlu0 %2201
    %2203 = vrot.lane.b32.xlu0 %v1353, 56
    %v2204 = vpop.permute.xlu0 %2203
    %v2205 = vsel %vm94, %v2202, 0
    %v2207 = vsel %vm94, %v2204, 0
    %2209 = vmatpush.xpose.msra.mxu0 0.0
    %2210 = vmatpush.xpose.msra.mxu0 0.0
    %2211 = vmatpush.xpose.msra.mxu0 0.0
    %2212 = vmatpush.xpose.msra.mxu0 0.0
    %2213 = vmatpush.xpose.msra.mxu0 0.0
    %2214 = vmatpush.xpose.msra.mxu0 0.0
    %2215 = vmatpush.xpose.msra.mxu0 0.0
    %2216 = vmatpush.xpose.msra.mxu0 0.0
    %2217 = vmatpush.xpose.msra.mxu0 0.0
    %2218 = vmatpush.xpose.msra.mxu0 0.0
    %2219 = vmatpush.xpose.msra.mxu0 0.0
    %2220 = vmatpush.xpose.msra.mxu0 0.0
    %2221 = vmatpush.xpose.msra.mxu0 0.0
    %2222 = vmatpush.xpose.msra.mxu0 0.0
    %2223 = vmatpush.xpose.msra.mxu0 0.0
    %2224 = vmatpush.xpose.msra.mxu0 %v2207
    %2225 = vmatmul.f32.gmra.mxu0 %v2205
    %v2226 = vpop.f32.mrf.mxu0
    %v2227 = vadd.f32 0.0, %v2226
    %2228 = vdwg.mxu0
    %v2229 = vmul.f32 %v2227, 0.35355338
    %v2230 = vsel %vm94, %v2229, -inf
    %v2231 = vrot.slane %v2230, 4
    %v2232 = vmax.f32 %v2230, %v2231
    %v2233 = vrot.slane %v2232, 2
    %v2234 = vmax.f32 %v2232, %v2233
    %v2235 = vrot.slane %v2234, 1
    %v2236 = vmax.f32 %v2234, %v2235
    %v2237 = vsub.f32 %v2229, %v2236
    %v2238 = vmul.f32 %v2237, 1.442695
    %v2239 = vpow.pop %v2238
    %v2240 = vsel %vm94, %v2239, 0.0
    %v2241 = vrot.slane %v2240, 4
    %v2242 = vadd.f32 %v2240, %v2241
    %v2243 = vrot.slane %v2242, 2
    %v2244 = vadd.f32 %v2242, %v2243
    %v2245 = vrot.slane %v2244, 1
    %v2246 = vadd.f32 %v2244, %v2245
    %v2247 = vrcp.pop %v2246
    %v2248 = vmul.f32 %v2246, %v2247
    %v2249 = vsub.f32 1.0, %v2248
    %v2250 = vmul.f32 %v2247, %v2249
    %v2251 = vadd.f32 %v2247, %v2250
    %vm2252 = vweird.f32 %v2246
    %vm2253 = vweird.f32 %v2247
    %vm2254 = vmor %vm2252, %vm2253
    %v2255 = vsel %vm2254, %v2247, %v2251
    %v2256 = vand.u32 2147483647, %v2246
    %vm2257 = vcmp.eq.f32.partialorder %v2256, 8.507059e+37
    %v2258 = vand.u32 %v2246, 2147483648
    %v2259 = vor.u32 1.1754944e-38, %v2258
    %v2260 = vsel %vm2257, %v2259, %v2255
    %v2261 = vmul.f32 %v2239, %v2260
    %2262 = vrot.lane.b32.xlu0 %v1353, 40
    %v2263 = vpop.permute.xlu0 %2262
    %2265 = vxpose.xlu0.b32.start [1/16] %v2263, 128
    %2266 = vxpose.xlu0.b32.cont [2/16] 0.0, 128
    %2267 = vxpose.xlu0.b32.cont [3/16] 0.0, 128
    %2268 = vxpose.xlu0.b32.cont [4/16] 0.0, 128
    %2269 = vxpose.xlu0.b32.cont [5/16] 0.0, 128
    %2270 = vxpose.xlu0.b32.cont [6/16] 0.0, 128
    %2271 = vxpose.xlu0.b32.cont [7/16] 0.0, 128
    %2272 = vxpose.xlu0.b32.cont [8/16] 0.0, 128
    %2273 = vxpose.xlu0.b32.cont [9/16] 0.0, 128
    %2274 = vxpose.xlu0.b32.cont [10/16] 0.0, 128
    %2275 = vxpose.xlu0.b32.cont [11/16] 0.0, 128
    %2276 = vxpose.xlu0.b32.cont [12/16] 0.0, 128
    %2277 = vxpose.xlu0.b32.cont [13/16] 0.0, 128
    %2278 = vxpose.xlu0.b32.cont [14/16] 0.0, 128
    %2279 = vxpose.xlu0.b32.cont [15/16] 0.0, 128
    %2280 = vxpose.xlu0.b32.end [16/16] 0.0, 128
    %v2281 = vpop.trf.xlu0
    %v2282 = vpop.trf.xlu0
    %v2283 = vpop.trf.xlu0
    %v2284 = vpop.trf.xlu0
    %v2285 = vpop.trf.xlu0
    %v2286 = vpop.trf.xlu0
    %v2287 = vpop.trf.xlu0
    %v2288 = vpop.trf.xlu0
    %v2289 = vpop.trf.xlu0
    %v2290 = vpop.trf.xlu0
    %v2291 = vpop.trf.xlu0
    %v2292 = vpop.trf.xlu0
    %v2293 = vpop.trf.xlu0
    %v2294 = vpop.trf.xlu0
    %v2295 = vpop.trf.xlu0
    %v2296 = vpop.trf.xlu0
    %v2298 = vsel %vm94, %v2281, 0
    %2300 = vmatpush.msra.mxu0 0.0
    %2301 = vmatpush.msra.mxu0 0.0
    %2302 = vmatpush.msra.mxu0 0.0
    %2303 = vmatpush.msra.mxu0 0.0
    %2304 = vmatpush.msra.mxu0 0.0
    %2305 = vmatpush.msra.mxu0 0.0
    %2306 = vmatpush.msra.mxu0 0.0
    %2307 = vmatpush.msra.mxu0 0.0
    %2308 = vmatpush.msra.mxu0 0.0
    %2309 = vmatpush.msra.mxu0 0.0
    %2310 = vmatpush.msra.mxu0 0.0
    %2311 = vmatpush.msra.mxu0 0.0
    %2312 = vmatpush.msra.mxu0 0.0
    %2313 = vmatpush.msra.mxu0 0.0
    %2314 = vmatpush.msra.mxu0 0.0
    %2315 = vmatpush.msra.mxu0 %v2261
    %2316 = vmatmul.f32.gmra.mxu0 %v2298
    %v2317 = vpop.f32.mrf.mxu0
    %v2318 = vadd.f32 0.0, %v2317
    %2319 = vdwg.mxu0
    %2321 = vrot.lane.b32.xlu0 %v2080, 8
    %v2322 = vpop.permute.xlu0 %2321
    %2325 = vrot.lane.b32.xlu0 %v2199, 16
    %v2326 = vpop.permute.xlu0 %2325
    %2329 = vrot.lane.b32.xlu0 %v2318, 24
    %v2330 = vpop.permute.xlu0 %2329
    %v2332 = vsel %vm94, %v1961, %v2322
    %v2333 = vsel %vm580, %v2332, %v2326
    %v2334 = vsel %vm582, %v2333, %v2330
    %s2335 = scalar_lea.vmem %s4, 32
    %v2336 = vld [vmem:[%s2335] sm:$0xff]
    %v2337 = vld [vmem:[%s2335 + $0x8] sm:$0xff]
    %v2338 = vld [vmem:[%s2335 + $0x10] sm:$0xff]
    %v2339 = vld [vmem:[%s2335 + $0x18] sm:$0xff]
    %s2340 = scalar_lea.vmem %s5, 1
    %v2341 = vld [vmem:[%s2340] sm:$0x1]
    %v2343 = vperm.slane %v2341, 0
    %v2346 = vsel %vm61, %v1844, 0
    %v2349 = vsel %vm61, %v2334, 0
    %2351 = vmatpush.msra.mxu0 0.0
    %2352 = vmatpush.msra.mxu0 0.0
    %2353 = vmatpush.msra.mxu0 0.0
    %2354 = vmatpush.msra.mxu0 0.0
    %2355 = vmatpush.msra.mxu0 0.0
    %2356 = vmatpush.msra.mxu0 0.0
    %2357 = vmatpush.msra.mxu0 0.0
    %2358 = vmatpush.msra.mxu0 0.0
    %2359 = vmatpush.msra.mxu0 0.0
    %2360 = vmatpush.msra.mxu0 0.0
    %2361 = vmatpush.msra.mxu0 0.0
    %2362 = vmatpush.msra.mxu0 0.0
    %2363 = vmatpush.msra.mxu0 %v2339
    %2364 = vmatpush.msra.mxu0 %v2338
    %2365 = vmatpush.msra.mxu0 %v2337
    %2366 = vmatpush.msra.mxu0 %v2336
    %2367 = vmatmul.f32.gmra.mxu0 %v2346
    %v2368 = vpop.f32.mrf.mxu0
    %v2369 = vadd.f32 %v2343, %v2368
    %2370 = vmatmul.f32.gmra.mxu0 %v2349
    %v2371 = vpop.f32.mrf.mxu0
    %v2372 = vadd.f32 %v2343, %v2371
    %2373 = vdwg.mxu0
    %v2374 = vadd.f32 %v1314, %v2369
    %v2375 = vadd.f32 %v1315, %v2372
    %s2376 = scalar_lea.vmem %s10, 1
    %v2377 = vld [vmem:[%s2376] sm:$0x1]
    %s2378 = scalar_lea.vmem %s11, 1
    %v2379 = vld [vmem:[%s2378] sm:$0x1]
    %v2380 = vsel %vm61, %v2374, 0.0
    %2381 = vadd.xlane.f32.xlu0 %v2380
    %v2382 = vpop.xlane.xlu0 %2381
    %v2383 = vsel %vm61, %v2375, 0.0
    %2384 = vadd.xlane.f32.xlu0 %v2383
    %v2385 = vpop.xlane.xlu0 %2384
    %v2386 = vmul.f32 %v2382, %v1127
    %v2387 = vmul.f32 %v2385, %v1127
    %v2388 = vsub.f32 %v2374, %v2386
    %v2389 = vsub.f32 %v2375, %v2387
    %v2390 = vmul.f32 %v2388, %v2388
    %v2391 = vmul.f32 %v2389, %v2389
    %v2392 = vsel %vm61, %v2390, 0.0
    %2393 = vadd.xlane.f32.xlu0 %v2392
    %v2394 = vpop.xlane.xlu0 %2393
    %v2395 = vsel %vm61, %v2391, 0.0
    %2396 = vadd.xlane.f32.xlu0 %v2395
    %v2397 = vpop.xlane.xlu0 %2396
    %v2398 = vmul.f32 %v2394, %v1127
    %v2399 = vmul.f32 %v2397, %v1127
    %v2400 = vadd.f32 %v2398, 1e-05
    %v2401 = vadd.f32 %v2399, 1e-05
    %v2402 = vrsqrt.pop %v2400
    %v2403 = vmul.f32 %v2402, %v2400
    %v2404 = vmul.f32 %v2403, %v2402
    %v2405 = vmul.f32 0.5, %v2404
    %v2406 = vsub.f32 1.5, %v2405
    %v2407 = vmul.f32 %v2402, %v2406
    %vm2408 = vweird.f32 %v2400
    %vm2409 = vweird.f32 %v2402
    %vm2410 = vmor %vm2408, %vm2409
    %v2411 = vsel %vm2410, %v2402, %v2407
    %v2412 = vrsqrt.pop %v2401
    %v2413 = vmul.f32 %v2412, %v2401
    %v2414 = vmul.f32 %v2413, %v2412
    %v2415 = vmul.f32 0.5, %v2414
    %v2416 = vsub.f32 1.5, %v2415
    %v2417 = vmul.f32 %v2412, %v2416
    %vm2418 = vweird.f32 %v2401
    %vm2419 = vweird.f32 %v2412
    %vm2420 = vmor %vm2418, %vm2419
    %v2421 = vsel %vm2420, %v2412, %v2417
    %v2422 = vmul.f32 %v2388, %v2411
    %v2423 = vmul.f32 %v2389, %v2421
    %v2425 = vperm.slane %v2377, 0
    %v2427 = vmul.f32 %v2422, %v2425
    %v2428 = vmul.f32 %v2423, %v2425
    %v2430 = vperm.slane %v2379, 0
    %v2432 = vadd.f32 %v2427, %v2430
    %v2433 = vadd.f32 %v2428, %v2430
    %s2434 = scalar_lea.vmem %s6, 32
    %v2435 = vld [vmem:[%s2434] sm:$0xff]
    %v2436 = vld [vmem:[%s2434 + $0x8] sm:$0xff]
    %v2437 = vld [vmem:[%s2434 + $0x10] sm:$0xff]
    %v2438 = vld [vmem:[%s2434 + $0x18] sm:$0xff]
    %s2439 = scalar_lea.vmem %s7, 1
    %v2440 = vld [vmem:[%s2439] sm:$0x1]
    %v2442 = vperm.slane %v2440, 0
    %v2445 = vsel %vm61, %v2432, 0
    %v2448 = vsel %vm61, %v2433, 0
    %2450 = vmatpush.msra.mxu0 0.0
    %2451 = vmatpush.msra.mxu0 0.0
    %2452 = vmatpush.msra.mxu0 0.0
    %2453 = vmatpush.msra.mxu0 0.0
    %2454 = vmatpush.msra.mxu0 0.0
    %2455 = vmatpush.msra.mxu0 0.0
    %2456 = vmatpush.msra.mxu0 0.0
    %2457 = vmatpush.msra.mxu0 0.0
    %2458 = vmatpush.msra.mxu0 0.0
    %2459 = vmatpush.msra.mxu0 0.0
    %2460 = vmatpush.msra.mxu0 0.0
    %2461 = vmatpush.msra.mxu0 0.0
    %2462 = vmatpush.msra.mxu0 %v2438
    %2463 = vmatpush.msra.mxu0 %v2437
    %2464 = vmatpush.msra.mxu0 %v2436
    %2465 = vmatpush.msra.mxu0 %v2435
    %2466 = vmatmul.f32.gmra.mxu0 %v2445
    %v2467 = vpop.f32.mrf.mxu0
    %v2468 = vadd.f32 %v2442, %v2467
    %2469 = vmatmul.f32.gmra.mxu0 %v2448
    %v2470 = vpop.f32.mrf.mxu0
    %v2471 = vadd.f32 %v2442, %v2470
    %2472 = vdwg.mxu0
    %v2473 = vmax.f32 %v2468, 0.0
    %v2474 = vmax.f32 %v2471, 0.0
    %s2475 = scalar_lea.vmem %s8, 128
    %v2476 = vld [vmem:[%s2475] sm:$0xff]
    %v2477 = vld [vmem:[%s2475 + $0x8] sm:$0xff]
    %v2478 = vld [vmem:[%s2475 + $0x10] sm:$0xff]
    %v2479 = vld [vmem:[%s2475 + $0x18] sm:$0xff]
    %v2480 = vld [vmem:[%s2475 + $0x20] sm:$0xff]
    %v2481 = vld [vmem:[%s2475 + $0x28] sm:$0xff]
    %v2482 = vld [vmem:[%s2475 + $0x30] sm:$0xff]
    %v2483 = vld [vmem:[%s2475 + $0x38] sm:$0xff]
    %v2484 = vld [vmem:[%s2475 + $0x40] sm:$0xff]
    %v2485 = vld [vmem:[%s2475 + $0x48] sm:$0xff]
    %v2486 = vld [vmem:[%s2475 + $0x50] sm:$0xff]
    %v2487 = vld [vmem:[%s2475 + $0x58] sm:$0xff]
    %v2488 = vld [vmem:[%s2475 + $0x60] sm:$0xff]
    %v2489 = vld [vmem:[%s2475 + $0x68] sm:$0xff]
    %v2490 = vld [vmem:[%s2475 + $0x70] sm:$0xff]
    %v2491 = vld [vmem:[%s2475 + $0x78] sm:$0xff]
    %s2492 = scalar_lea.vmem %s9, 1
    %v2493 = vld [vmem:[%s2492] sm:$0x1]
    %v2495 = vperm.slane %v2493, 0
    %2497 = vmatpush.msra.mxu0 %v2491
    %2498 = vmatpush.msra.mxu0 %v2490
    %2499 = vmatpush.msra.mxu0 %v2489
    %2500 = vmatpush.msra.mxu0 %v2488
    %2501 = vmatpush.msra.mxu0 %v2487
    %2502 = vmatpush.msra.mxu0 %v2486
    %2503 = vmatpush.msra.mxu0 %v2485
    %2504 = vmatpush.msra.mxu0 %v2484
    %2505 = vmatpush.msra.mxu0 %v2483
    %2506 = vmatpush.msra.mxu0 %v2482
    %2507 = vmatpush.msra.mxu0 %v2481
    %2508 = vmatpush.msra.mxu0 %v2480
    %2509 = vmatpush.msra.mxu0 %v2479
    %2510 = vmatpush.msra.mxu0 %v2478
    %2511 = vmatpush.msra.mxu0 %v2477
    %2512 = vmatpush.msra.mxu0 %v2476
    %2513 = vmatmul.f32.gmra.mxu0 %v2473
    %v2514 = vpop.f32.mrf.mxu0
    %v2515 = vadd.f32 %v2495, %v2514
    %2516 = vmatmul.f32.gmra.mxu0 %v2474
    %v2517 = vpop.f32.mrf.mxu0
    %v2518 = vadd.f32 %v2495, %v2517
    %2519 = vdwg.mxu0
    %v2520 = vadd.f32 %v2432, %v2515
    %v2521 = vadd.f32 %v2433, %v2518
    %s2522 = scalar_lea.vmem %s12, 1
    %v2523 = vld [vmem:[%s2522] sm:$0x1]
    %s2524 = scalar_lea.vmem %s13, 1
    %v2525 = vld [vmem:[%s2524] sm:$0x1]
    %v2526 = vsel %vm61, %v2520, 0.0
    %2527 = vadd.xlane.f32.xlu0 %v2526
    %v2528 = vpop.xlane.xlu0 %2527
    %v2529 = vsel %vm61, %v2521, 0.0
    %2530 = vadd.xlane.f32.xlu0 %v2529
    %v2531 = vpop.xlane.xlu0 %2530
    %v2532 = vmul.f32 %v2528, %v1127
    %v2533 = vmul.f32 %v2531, %v1127
    %v2534 = vsub.f32 %v2520, %v2532
    %v2535 = vsub.f32 %v2521, %v2533
    %v2536 = vmul.f32 %v2534, %v2534
    %v2537 = vmul.f32 %v2535, %v2535
    %v2538 = vsel %vm61, %v2536, 0.0
    %2539 = vadd.xlane.f32.xlu0 %v2538
    %v2540 = vpop.xlane.xlu0 %2539
    %v2541 = vsel %vm61, %v2537, 0.0
    %2542 = vadd.xlane.f32.xlu0 %v2541
    %v2543 = vpop.xlane.xlu0 %2542
    %v2544 = vmul.f32 %v2540, %v1127
    %v2545 = vmul.f32 %v2543, %v1127
    %v2546 = vadd.f32 %v2544, 1e-05
    %v2547 = vadd.f32 %v2545, 1e-05
    %v2548 = vrsqrt.pop %v2546
    %v2549 = vmul.f32 %v2548, %v2546
    %v2550 = vmul.f32 %v2549, %v2548
    %v2551 = vmul.f32 0.5, %v2550
    %v2552 = vsub.f32 1.5, %v2551
    %v2553 = vmul.f32 %v2548, %v2552
    %vm2554 = vweird.f32 %v2546
    %vm2555 = vweird.f32 %v2548
    %vm2556 = vmor %vm2554, %vm2555
    %v2557 = vsel %vm2556, %v2548, %v2553
    %v2558 = vrsqrt.pop %v2547
    %v2559 = vmul.f32 %v2558, %v2547
    %v2560 = vmul.f32 %v2559, %v2558
    %v2561 = vmul.f32 0.5, %v2560
    %v2562 = vsub.f32 1.5, %v2561
    %v2563 = vmul.f32 %v2558, %v2562
    %vm2564 = vweird.f32 %v2547
    %vm2565 = vweird.f32 %v2558
    %vm2566 = vmor %vm2564, %vm2565
    %v2567 = vsel %vm2566, %v2558, %v2563
    %v2568 = vmul.f32 %v2534, %v2557
    %v2569 = vmul.f32 %v2535, %v2567
    %v2571 = vperm.slane %v2523, 0
    %v2573 = vmul.f32 %v2568, %v2571
    %v2574 = vmul.f32 %v2569, %v2571
    %v2576 = vperm.slane %v2525, 0
    %v2578 = vadd.f32 %v2573, %v2576
    %v2579 = vadd.f32 %v2574, %v2576
    %2580 = vst.msk [vmem:[#allocation2] sm:$0xff] %vm61, %v2578
    %2581 = vst.msk [vmem:[#allocation2 + $0x8] sm:$0xff] %vm61, %v2579
    // Predicated region
    $region58: #{_lambda_.1} parent=1 // pred_check
      _
    $region59: #{_lambda_.1} parent=1 // pred_check_branch
      %2583 = sbr.rel (0) target = $region61
    $region60: #{_lambda_.1} parent=1 // pred_region
      %2585 = vsyncadd [#allocation3], 0
      %s2586 = sshll.u32 [#allocation2], 4
      %s2587 = int_to_ptr.vmem [resolvable:$true] %s2586
      %s2588 = sshll.u32 %s14, 4
      %s2589 = int_to_ptr.hbm [resolvable:$true] %s2588
      %2594 = dma.vmem_to_hbm [thread:$0]  %s2587, 256, %s2589, [#allocation3], 128, 128, 8
    $region61: #{_lambda_.1} parent=1 // pred_fallthru
      _
    // Predicated region
    $region62: #{_lambda_.1} parent=1 // pred_check
      _
    $region63: #{_lambda_.1} parent=1 // pred_check_branch
      %2596 = sbr.rel (0) target = $region65
    $region64: #{_lambda_.1} parent=1 // pred_region
      %2598 = dma.done [#allocation3], 256
    $region65: #{_lambda_.1} parent=1 // pred_fallthru
      _
    %2599 = vsyncpa [#allocation3], 1

</llo_original>
